<compile_context>
chip_gen: v7x
topology: tpu7x:2x2x1
jax: 0.10.0
libtpu: 0.0.40
codegen_flags: <defaults>
</compile_context>

<pallas_src>
import functools

import jax
import jax.numpy as jnp
from jax.experimental import pallas as pl
from jax.experimental.pallas import tpu as pltpu


def mha_kernel(x_ref, w_ref, b_ref, o_ref, *, num_heads, head_dim):
    """One batch block: fused QKV projection + head-batched attention.

    x_ref:  (bt, S, E)    input rows for this grid step
    w_ref:  (E, 3E)       bf16 block-diag [Wq.T*scale | Wk.T | Wv.T]
    b_ref:  (1, 3E)       f32 biases [bq*scale | bk | bv]
    o_ref:  (bt, S, E)    heads concatenated along the feature axis
    """
    bt, S, E = x_ref.shape

    # --- Fused QKV projection: a single bf16 MXU pass over all bt*S rows. ---
    x2d = x_ref[...].reshape(bt * S, E).astype(jnp.bfloat16)
    qkv = jnp.dot(x2d, w_ref[...], preferred_element_type=jnp.float32)
    qkv = (qkv + b_ref[...]).reshape(bt, S, 3 * E)

    def to_heads(t):  # (S, E) -> (H, S, hd); hd stays the lane (minor) dim.
        return jnp.transpose(t.reshape(S, num_heads, head_dim), (1, 0, 2))

    outs = []
    for b in range(bt):  # static -> fully unrolled, no grid steps / re-DMA
        q = to_heads(qkv[b, :, :E]).astype(jnp.bfloat16)
        k = to_heads(qkv[b, :, E:2 * E]).astype(jnp.bfloat16)
        v = to_heads(qkv[b, :, 2 * E:]).astype(jnp.bfloat16)

        # Scale already folded into Wq/bq, so scores = (q k^T)/sqrt(H) directly.
        # TODO(synk): for large S, tile the kv axis with an online-softmax
        # accumulator (flash-style) instead of the full (H, S, S) f32 tile
        # (mandatory on v7x's 64 MiB VMEM well before v5e/v6e).
        s = jnp.einsum('hqd,hkd->hqk', q, k,
                       preferred_element_type=jnp.float32)          # (H, S, S)
        s = s - jnp.max(s, axis=-1, keepdims=True)
        p = jnp.exp(s)
        # Exact f32 normalization (pl.reciprocal(approx=True) is ~bf16-accurate
        # under interpret emulation and previously broke the reference check).
        attn = p / jnp.sum(p, axis=-1, keepdims=True)
        o = jnp.einsum('hqk,hkd->hqd', attn.astype(jnp.bfloat16), v,
                       preferred_element_type=jnp.float32)          # (H, S, hd)
        outs.append(jnp.transpose(o, (1, 0, 2)).reshape(S, E))

    # Single lane-dense (bt, S, E) store.
    o_ref[...] = jnp.stack(outs, axis=0).astype(o_ref.dtype)


def _block_diag_transposed(w):
    """(H, hd, hd) PyTorch Linear weights -> (E, E) block-diagonal of W[h].T."""
    num_heads, head_dim, _ = w.shape
    emb = num_heads * head_dim
    wt = jnp.swapaxes(w, 1, 2)                      # (H, in, out) = W[h].T blocks
    eye = jnp.eye(num_heads, dtype=w.dtype)
    return jnp.einsum('gh,hio->giho', eye, wt).reshape(emb, emb)


def multi_head_attention(x, wq, bq, wk, bk, wv, bv, *, num_heads,
                         batch_block=None):
    """x: (B, S, E); w*: (H, hd, hd); b*: (H, hd). Returns (B, S, E)."""
    B, S, E = x.shape
    head_dim = E // num_heads
    assert head_dim * num_heads == E

    if batch_block is None:
        # Tiny inputs: a single fused grid step (MXU sees M = B*S, no per-step
        # overhead). Larger inputs: one batch row per step so BlockSpec
        # double-buffering has depth and both v7x TensorCores get work.
        batch_block = B if B * S <= 1024 else 1
    assert B % batch_block == 0

    # Host-side, one-time weight prep:
    #   * block-diagonal + pre-transposed -> projections are lane-dense matmuls
    #     with no in-kernel transposes of the weights;
    #   * q-scale folded into Wq / bq (module divides by sqrt(num_heads));
    #   * Q|K|V fused along the output axis -> one (E, 3E) MXU pass;
    #   * weights cast to bf16 (f32 accumulation in-kernel).
    # TODO(synk): once E exceeds the MXU tile (128 v5e / 256 v6e+), drop the
    # block-diagonal trick and use per-head (H, hd, hd) batched projections.
    scale = 1.0 / (num_heads ** 0.5)
    wq_bd = _block_diag_transposed(wq) * scale
    wk_bd = _block_diag_transposed(wk)
    wv_bd = _block_diag_transposed(wv)
    w_fused = jnp.concatenate([wq_bd, wk_bd, wv_bd], axis=1).astype(jnp.bfloat16)
    b_fused = jnp.concatenate(
        [bq.reshape(-1) * scale, bk.reshape(-1), bv.reshape(-1)]
    ).reshape(1, 3 * E).astype(jnp.float32)

    x_spec = pl.BlockSpec((batch_block, S, E), lambda i: (i, 0, 0))
    # Constant index_map -> weight/bias blocks stay VMEM-resident across steps.
    # (On v7x with ViT-scale E, additionally single-buffer them via
    #  pipeline_mode=pl.Buffered(1) and set vmem_limit_bytes explicitly.)
    w_spec = pl.BlockSpec((E, 3 * E), lambda i: (0, 0))
    b_spec = pl.BlockSpec((1, 3 * E), lambda i: (0, 0))

    kernel = functools.partial(mha_kernel, num_heads=num_heads,
                               head_dim=head_dim)

    return pl.pallas_call(
        kernel,
        out_shape=jax.ShapeDtypeStruct((B, S, E), x.dtype),
        grid=(B // batch_block,),
        in_specs=[x_spec, w_spec, b_spec],
        out_specs=pl.BlockSpec((batch_block, S, E), lambda i: (i, 0, 0)),
        compiler_params=pltpu.CompilerParams(
            dimension_semantics=("parallel",)),
    )(x, w_fused, b_fused)


def reference_mha(x, wq, bq, wk, bk, wv, bv, *, num_heads):
    """Pure-JAX (f32) mirror of the PyTorch forward, for correctness check."""
    B, S, E = x.shape
    hd = E // num_heads
    outs = []
    for b in range(B):
        heads = []
        for h in range(num_heads):
            seq = x[b, :, h * hd:(h + 1) * hd]
            q = seq @ wq[h].T + bq[h]
            k = seq @ wk[h].T + bk[h]
            v = seq @ wv[h].T + bv[h]
            a = jax.nn.softmax(q @ k.T / (num_heads ** 0.5), axis=-1)
            heads.append(a @ v)
        outs.append(jnp.concatenate(heads, axis=-1))
    return jnp.stack(outs, axis=0)


if __name__ == "__main__":
    B, S, E, H = 2, 8, 64, 8
    hd = E // H

    key = jax.random.PRNGKey(0)
    keys = jax.random.split(key, 7)

    # Deterministic init mimicking PyTorch nn.Linear default (uniform +/- 1/sqrt(fan_in)).
    bound = 1.0 / (hd ** 0.5)
    x = jax.random.normal(keys[0], (B, S, E), dtype=jnp.float32)
    wq = jax.random.uniform(keys[1], (H, hd, hd), jnp.float32, -bound, bound)
    wk = jax.random.uniform(keys[2], (H, hd, hd), jnp.float32, -bound, bound)
    wv = jax.random.uniform(keys[3], (H, hd, hd), jnp.float32, -bound, bound)
    bq = jax.random.uniform(keys[4], (H, hd), jnp.float32, -bound, bound)
    bk = jax.random.uniform(keys[5], (H, hd), jnp.float32, -bound, bound)
    bv = jax.random.uniform(keys[6], (H, hd), jnp.float32, -bound, bound)

    out = multi_head_attention(x, wq, bq, wk, bk, wv, bv, num_heads=H)
    out = jax.block_until_ready(out)

    ref = reference_mha(x, wq, bq, wk, bk, wv, bv, num_heads=H)
    assert out.shape == (B, S, E)
    # bf16 MXU operands (f32 accumulation + f32 softmax) vs. the f32 reference:
    # observed error is O(1e-3); 2e-2 gives comfortable margin.
    max_err = float(jnp.max(jnp.abs(out - ref)))
    assert jnp.allclose(out, ref, atol=2e-2, rtol=2e-2), (
        f"mismatch vs reference, max|diff|={max_err}")

    print("KERNEL_OK")
</pallas_src>

<mosaic_0001>
module attributes {stable_mosaic.version = 11 : i64} {
  func.func @mha_kernel(%arg0: i32, %arg1: memref<2x8x64xf32, #tpu.memory_space<vmem>>, %arg2: memref<64x192xbf16, #tpu.memory_space<vmem>>, %arg3: memref<1x192xf32, #tpu.memory_space<vmem>>, %arg4: memref<2x8x64xf32, #tpu.memory_space<vmem>>) attributes {dimension_semantics = [#tpu.dimension_semantics<parallel>], iteration_bounds = array<i64: 1>, scalar_prefetch = 0 : i64, scratch_operands = 0 : i64, tpu.core_type = #tpu.core_type<tc>, window_params = [{transform_indices = @transform_0, window_bounds = array<i64: 2, 8, 64>}, {pipeline_mode = #tpu.pipeline_mode<synchronous>, transform_indices = @transform_1, window_bounds = array<i64: 64, 192>}, {pipeline_mode = #tpu.pipeline_mode<synchronous>, transform_indices = @transform_2, window_bounds = array<i64: 1, 192>}, {transform_indices = @transform_3, window_bounds = array<i64: 2, 8, 64>}]} {
    %c0 = arith.constant 0 : index
    %c0_0 = arith.constant 0 : index
    %c0_1 = arith.constant 0 : index
    %0 = vector.load %arg1[%c0, %c0_0, %c0_1] : memref<2x8x64xf32, #tpu.memory_space<vmem>>, vector<2x8x64xf32>
    %1 = vector.shape_cast %0 : vector<2x8x64xf32> to vector<16x64xf32>
    %2 = arith.truncf %1 : vector<16x64xf32> to vector<16x64xbf16>
    %c0_2 = arith.constant 0 : index
    %c0_3 = arith.constant 0 : index
    %3 = vector.load %arg2[%c0_2, %c0_3] : memref<64x192xbf16, #tpu.memory_space<vmem>>, vector<64x192xbf16>
    %cst = arith.constant dense<0.000000e+00> : vector<16x192xf32>
    %4 = tpu.matmul %2, %3, %cst {dimension_numbers = #tpu.dot_dimension_numbers<[1], [0], [0], [1], [0, 0, 1, 1], [], []>} : vector<16x64xbf16>, vector<64x192xbf16>, vector<16x192xf32> -> vector<16x192xf32>
    %c0_4 = arith.constant 0 : index
    %c0_5 = arith.constant 0 : index
    %5 = vector.load %arg3[%c0_4, %c0_5] : memref<1x192xf32, #tpu.memory_space<vmem>>, vector<1x192xf32>
    %6 = vector.broadcast %5 : vector<1x192xf32> to vector<16x192xf32>
    %7 = arith.addf %4, %6 : vector<16x192xf32>
    %8 = vector.shape_cast %7 : vector<16x192xf32> to vector<2x8x192xf32>
    %9 = vector.extract_strided_slice %8 {offsets = [0, 0, 0], sizes = [1, 8, 64], strides = [1, 1, 1]} : vector<2x8x192xf32> to vector<1x8x64xf32>
    %10 = vector.shape_cast %9 : vector<1x8x64xf32> to vector<8x64xf32>
    %11 = vector.shape_cast %10 : vector<8x64xf32> to vector<8x8x8xf32>
    %12 = tpu.transpose %11, [1, 0, 2] : vector<8x8x8xf32> -> vector<8x8x8xf32>
    %13 = arith.truncf %12 : vector<8x8x8xf32> to vector<8x8x8xbf16>
    %14 = vector.extract_strided_slice %8 {offsets = [0, 0, 64], sizes = [1, 8, 64], strides = [1, 1, 1]} : vector<2x8x192xf32> to vector<1x8x64xf32>
    %15 = vector.shape_cast %14 : vector<1x8x64xf32> to vector<8x64xf32>
    %16 = vector.shape_cast %15 : vector<8x64xf32> to vector<8x8x8xf32>
    %17 = tpu.transpose %16, [1, 0, 2] : vector<8x8x8xf32> -> vector<8x8x8xf32>
    %18 = arith.truncf %17 : vector<8x8x8xf32> to vector<8x8x8xbf16>
    %19 = vector.extract_strided_slice %8 {offsets = [0, 0, 128], sizes = [1, 8, 64], strides = [1, 1, 1]} : vector<2x8x192xf32> to vector<1x8x64xf32>
    %20 = vector.shape_cast %19 : vector<1x8x64xf32> to vector<8x64xf32>
    %21 = vector.shape_cast %20 : vector<8x64xf32> to vector<8x8x8xf32>
    %22 = tpu.transpose %21, [1, 0, 2] : vector<8x8x8xf32> -> vector<8x8x8xf32>
    %23 = arith.truncf %22 : vector<8x8x8xf32> to vector<8x8x8xbf16>
    "tpu.trace_start"() <{level = 10 : i32, message = "hqd,hkd->hqk"}> : () -> ()
    %cst_6 = arith.constant dense<0.000000e+00> : vector<8x8x8xf32>
    %24 = tpu.matmul %13, %18, %cst_6 {dimension_numbers = #tpu.dot_dimension_numbers<[2], [2], [1], [1], [0, 0, 0, 1, 1, 1], [0], [0]>} : vector<8x8x8xbf16>, vector<8x8x8xbf16>, vector<8x8x8xf32> -> vector<8x8x8xf32>
    "tpu.trace_stop"() : () -> ()
    %cst_7 = arith.constant dense<0xFF800000> : vector<8x8xf32>
    %25 = vector.multi_reduction <maximumf>, %24, %cst_7 [2] : vector<8x8x8xf32> to vector<8x8xf32>
    %26 = vector.shape_cast %25 : vector<8x8xf32> to vector<8x8x1xf32>
    %27 = vector.broadcast %26 : vector<8x8x1xf32> to vector<8x8x8xf32>
    %28 = arith.subf %24, %27 : vector<8x8x8xf32>
    %29 = math.exp %28 : vector<8x8x8xf32>
    %cst_8 = arith.constant dense<0.000000e+00> : vector<8x8xf32>
    %30 = vector.multi_reduction <add>, %29, %cst_8 [2] : vector<8x8x8xf32> to vector<8x8xf32>
    %31 = vector.shape_cast %30 : vector<8x8xf32> to vector<8x8x1xf32>
    %32 = vector.broadcast %31 : vector<8x8x1xf32> to vector<8x8x8xf32>
    %33 = arith.divf %29, %32 : vector<8x8x8xf32>
    %34 = arith.truncf %33 : vector<8x8x8xf32> to vector<8x8x8xbf16>
    "tpu.trace_start"() <{level = 10 : i32, message = "hqk,hkd->hqd"}> : () -> ()
    %cst_9 = arith.constant dense<0.000000e+00> : vector<8x8x8xf32>
    %35 = tpu.matmul %34, %23, %cst_9 {dimension_numbers = #tpu.dot_dimension_numbers<[2], [1], [1], [2], [0, 0, 0, 1, 1, 2], [0], [0]>} : vector<8x8x8xbf16>, vector<8x8x8xbf16>, vector<8x8x8xf32> -> vector<8x8x8xf32>
    "tpu.trace_stop"() : () -> ()
    %36 = tpu.transpose %35, [1, 0, 2] : vector<8x8x8xf32> -> vector<8x8x8xf32>
    %37 = vector.shape_cast %36 : vector<8x8x8xf32> to vector<8x64xf32>
    %38 = vector.extract_strided_slice %8 {offsets = [1, 0, 0], sizes = [1, 8, 64], strides = [1, 1, 1]} : vector<2x8x192xf32> to vector<1x8x64xf32>
    %39 = vector.shape_cast %38 : vector<1x8x64xf32> to vector<8x64xf32>
    %40 = vector.shape_cast %39 : vector<8x64xf32> to vector<8x8x8xf32>
    %41 = tpu.transpose %40, [1, 0, 2] : vector<8x8x8xf32> -> vector<8x8x8xf32>
    %42 = arith.truncf %41 : vector<8x8x8xf32> to vector<8x8x8xbf16>
    %43 = vector.extract_strided_slice %8 {offsets = [1, 0, 64], sizes = [1, 8, 64], strides = [1, 1, 1]} : vector<2x8x192xf32> to vector<1x8x64xf32>
    %44 = vector.shape_cast %43 : vector<1x8x64xf32> to vector<8x64xf32>
    %45 = vector.shape_cast %44 : vector<8x64xf32> to vector<8x8x8xf32>
    %46 = tpu.transpose %45, [1, 0, 2] : vector<8x8x8xf32> -> vector<8x8x8xf32>
    %47 = arith.truncf %46 : vector<8x8x8xf32> to vector<8x8x8xbf16>
    %48 = vector.extract_strided_slice %8 {offsets = [1, 0, 128], sizes = [1, 8, 64], strides = [1, 1, 1]} : vector<2x8x192xf32> to vector<1x8x64xf32>
    %49 = vector.shape_cast %48 : vector<1x8x64xf32> to vector<8x64xf32>
    %50 = vector.shape_cast %49 : vector<8x64xf32> to vector<8x8x8xf32>
    %51 = tpu.transpose %50, [1, 0, 2] : vector<8x8x8xf32> -> vector<8x8x8xf32>
    %52 = arith.truncf %51 : vector<8x8x8xf32> to vector<8x8x8xbf16>
    "tpu.trace_start"() <{level = 10 : i32, message = "hqd,hkd->hqk"}> : () -> ()
    %cst_10 = arith.constant dense<0.000000e+00> : vector<8x8x8xf32>
    %53 = tpu.matmul %42, %47, %cst_10 {dimension_numbers = #tpu.dot_dimension_numbers<[2], [2], [1], [1], [0, 0, 0, 1, 1, 1], [0], [0]>} : vector<8x8x8xbf16>, vector<8x8x8xbf16>, vector<8x8x8xf32> -> vector<8x8x8xf32>
    "tpu.trace_stop"() : () -> ()
    %cst_11 = arith.constant dense<0xFF800000> : vector<8x8xf32>
    %54 = vector.multi_reduction <maximumf>, %53, %cst_11 [2] : vector<8x8x8xf32> to vector<8x8xf32>
    %55 = vector.shape_cast %54 : vector<8x8xf32> to vector<8x8x1xf32>
    %56 = vector.broadcast %55 : vector<8x8x1xf32> to vector<8x8x8xf32>
    %57 = arith.subf %53, %56 : vector<8x8x8xf32>
    %58 = math.exp %57 : vector<8x8x8xf32>
    %cst_12 = arith.constant dense<0.000000e+00> : vector<8x8xf32>
    %59 = vector.multi_reduction <add>, %58, %cst_12 [2] : vector<8x8x8xf32> to vector<8x8xf32>
    %60 = vector.shape_cast %59 : vector<8x8xf32> to vector<8x8x1xf32>
    %61 = vector.broadcast %60 : vector<8x8x1xf32> to vector<8x8x8xf32>
    %62 = arith.divf %58, %61 : vector<8x8x8xf32>
    %63 = arith.truncf %62 : vector<8x8x8xf32> to vector<8x8x8xbf16>
    "tpu.trace_start"() <{level = 10 : i32, message = "hqk,hkd->hqd"}> : () -> ()
    %cst_13 = arith.constant dense<0.000000e+00> : vector<8x8x8xf32>
    %64 = tpu.matmul %63, %52, %cst_13 {dimension_numbers = #tpu.dot_dimension_numbers<[2], [1], [1], [2], [0, 0, 0, 1, 1, 2], [0], [0]>} : vector<8x8x8xbf16>, vector<8x8x8xbf16>, vector<8x8x8xf32> -> vector<8x8x8xf32>
    "tpu.trace_stop"() : () -> ()
    %65 = tpu.transpose %64, [1, 0, 2] : vector<8x8x8xf32> -> vector<8x8x8xf32>
    %66 = vector.shape_cast %65 : vector<8x8x8xf32> to vector<8x64xf32>
    %67 = vector.shape_cast %37 : vector<8x64xf32> to vector<1x8x64xf32>
    %68 = vector.shape_cast %66 : vector<8x64xf32> to vector<1x8x64xf32>
    %69 = tpu.concatenate %67, %68 in 0 : vector<1x8x64xf32>, vector<1x8x64xf32> -> vector<2x8x64xf32>
    %c0_14 = arith.constant 0 : index
    %c0_15 = arith.constant 0 : index
    %c0_16 = arith.constant 0 : index
    %70 = vector.load %arg4[%c0_14, %c0_15, %c0_16] : memref<2x8x64xf32, #tpu.memory_space<vmem>>, vector<2x8x64xf32>
    tpu.vector_store %arg4[%c0_14, %c0_15, %c0_16], %69 {strides = array<i32>} : memref<2x8x64xf32, #tpu.memory_space<vmem>>, vector<2x8x64xf32>,
    return
  }
  func.func @transform_0(%arg0: i32) -> (i32, i32, i32) {
    %c0_i32 = arith.constant 0 : i32
    %c0_i32_0 = arith.constant 0 : i32
    %c0_i32_1 = arith.constant 0 : i32
    return %arg0, %c0_i32, %c0_i32_0 : i32, i32, i32
  }
  func.func @transform_1(%arg0: i32) -> (i32, i32) {
    %c0_i32 = arith.constant 0 : i32
    %c0_i32_0 = arith.constant 0 : i32
    %c0_i32_1 = arith.constant 0 : i32
    return %c0_i32, %c0_i32_0 : i32, i32
  }
  func.func @transform_2(%arg0: i32) -> (i32, i32) {
    %c0_i32 = arith.constant 0 : i32
    %c0_i32_0 = arith.constant 0 : i32
    %c0_i32_1 = arith.constant 0 : i32
    return %c0_i32, %c0_i32_0 : i32, i32
  }
  func.func @transform_3(%arg0: i32) -> (i32, i32, i32) {
    %c0_i32 = arith.constant 0 : i32
    %c0_i32_0 = arith.constant 0 : i32
    %c0_i32_1 = arith.constant 0 : i32
    return %arg0, %c0_i32, %c0_i32_0 : i32, i32, i32
  }
}

</mosaic_0001>

<llo_original>
// kernel: tpu_custom_call.1
$region0: #{tpu_custom_call.1}
  #allocation0 [shape = 'u32[]', space=smem, size = 0x4, offset = 0x4, fixed_abs, tag = 'smem constant byte address 0x4 - core index']
  #allocation1 [shape = 'u32[144,128]{1,0:T(1,128)}', space=vmem, size = 0x12000, scoped, tag = 'internal scratch']
  %s0 = inlined_call_operand.hbm [shape: f32[2,8,64], index: 0, kind: input, shape index: {}]
  %s1 = inlined_call_operand.hbm [shape: bf16[64,192], index: 1, kind: input, shape index: {}]
  %s2 = inlined_call_operand.vmem [shape: f32[1,192], index: 2, kind: input, shape index: {}]
  %s3 = inlined_call_operand.hbm [shape: f32[2,8,64], index: 3, kind: output, shape index: {}]
  %s4 = sld [smem:[#allocation0]]
  $region30: #{tpu_custom_call.1} parent=0
    _
  %s6 = ssub.s32 1, %s4
  %s7 = scalar_select 0, %s6, %s4
  $region1: #{tpu_custom_call.1} parent=0
    #allocation2 [shape = 'u8[8192]{0}', space=vmem, size = 0x2000, scoped, tag = 'input window, operand 0, single buffered']
    #allocation3 [shape = 's32[1]{0}', space=sflag, size = 0x4, scoped, tag = 'scoped memory for tpu_custom_call.1']
    #allocation4 [shape = 's32[1]{0}', space=sflag, size = 0x4, scoped, tag = 'scoped memory for tpu_custom_call.1']
    #allocation5 [shape = 'u8[32768]{0}', space=vmem, size = 0x8000, scoped, tag = 'input window, operand 1, single buffered']
    #allocation6 [shape = 's32[1]{0}', space=sflag, size = 0x4, scoped, tag = 'scoped memory for tpu_custom_call.1']
    #allocation7 [shape = 'u8[8192]{0}', space=vmem, size = 0x2000, scoped, tag = 'output window, operand 0, single buffered']
    %8 = vsyncpa [#allocation3], 0
    %9 = vsyncpa [#allocation6], 0
    %10 = vsyncpa [#allocation4], 0
    // Predicated region
    $region2: #{tpu_custom_call.1} parent=1 // pred_check
      _
    $region3: #{tpu_custom_call.1} parent=1 // pred_check_branch
      %12 = sbr.rel (0) target = $region5
    $region4: #{tpu_custom_call.1} parent=1 // pred_region
      %s14 = ssub.s32 256, 256
      %15 = vsyncadd [#allocation3], %s14
      %s16 = sshll.u32 [#allocation2], 4
      %s17 = int_to_ptr.vmem [resolvable:$true] %s16
      %22 = dma.hbm_to_vmem [thread:$0]  %s0, 256, %s17, [#allocation3], 128, 128, 8
    $region5: #{tpu_custom_call.1} parent=1 // pred_fallthru
      _
    // Predicated region
    $region6: #{tpu_custom_call.1} parent=1 // pred_check
      _
    $region7: #{tpu_custom_call.1} parent=1 // pred_check_branch
      %24 = sbr.rel (0) target = $region9
    $region8: #{tpu_custom_call.1} parent=1 // pred_region
      %s26 = ssub.s32 1024, 1024
      %27 = vsyncadd [#allocation6], %s26
      %s28 = sshll.u32 [#allocation5], 4
      %s29 = int_to_ptr.vmem [resolvable:$true] %s28
      %34 = dma.hbm_to_vmem [thread:$0]  %s1, 1024, %s29, [#allocation6], 128, 128, 8
    $region9: #{tpu_custom_call.1} parent=1 // pred_fallthru
      _
    // Predicated region
    $region10: #{tpu_custom_call.1} parent=1 // pred_check
      _
    $region11: #{tpu_custom_call.1} parent=1 // pred_check_branch
      %36 = sbr.rel (0) target = $region13
    $region12: #{tpu_custom_call.1} parent=1 // pred_region
      _
    $region13: #{tpu_custom_call.1} parent=1 // pred_fallthru
      _
    // Predicated region
    $region14: #{tpu_custom_call.1} parent=1 // pred_check
      _
    $region15: #{tpu_custom_call.1} parent=1 // pred_check_branch
      %38 = sbr.rel (0) target = $region17
    $region16: #{tpu_custom_call.1} parent=1 // pred_region
      %39 = dma.done [#allocation3], 256
    $region17: #{tpu_custom_call.1} parent=1 // pred_fallthru
      _
    // Predicated region
    $region18: #{tpu_custom_call.1} parent=1 // pred_check
      _
    $region19: #{tpu_custom_call.1} parent=1 // pred_check_branch
      %41 = sbr.rel (0) target = $region21
    $region20: #{tpu_custom_call.1} parent=1 // pred_region
      %42 = dma.done [#allocation6], 1024
    $region21: #{tpu_custom_call.1} parent=1 // pred_fallthru
      _
    %v44 = vld [vmem:[#allocation2] sm:$0xff]
    %v45 = vld [vmem:[#allocation2 + $0x8] sm:$0xff]
    %v46 = vpack.c.bf16 %v45, %v44
    %v47 = vld [vmem:[#allocation5] sm:$0xff]
    %v48 = vld [vmem:[#allocation5 + $0x8] sm:$0xff]
    %v49 = vld [vmem:[#allocation5 + $0x10] sm:$0xff]
    %v50 = vld [vmem:[#allocation5 + $0x18] sm:$0xff]
    %v51 = vld [vmem:[#allocation5 + $0x20] sm:$0xff]
    %v52 = vld [vmem:[#allocation5 + $0x28] sm:$0xff]
    %v53 = vld [vmem:[#allocation5 + $0x30] sm:$0xff]
    %v54 = vld [vmem:[#allocation5 + $0x38] sm:$0xff]
    %v55 = vld [vmem:[%s2] sm:$0x3]
    %v57 = vlaneseq
    %v58 = vshrl.u32 %v57, 7
    %v59 = vsub.s32 0, %v58
    %v60 = vrot.slane %v55, %v59
    %v61 = vlaneseq
    %v62 = vshrl.u32 %v61, 7
    %v63 = vsub.s32 1, %v62
    %v64 = vrot.slane %v55, %v63
    %v75 = vunpack.c.l.b16 %v47
    %v76 = vunpack.c.h.b16 %v47
    %v77 = vunpack.c.l.b16 %v48
    %v78 = vunpack.c.h.b16 %v48
    %v79 = vunpack.c.l.b16 %v49
    %v80 = vunpack.c.h.b16 %v49
    %v81 = vunpack.c.l.b16 %v50
    %v82 = vunpack.c.h.b16 %v50
    %v83 = vunpack.c.l.b16 %v51
    %v84 = vunpack.c.h.b16 %v51
    %v85 = vunpack.c.l.b16 %v52
    %v86 = vunpack.c.h.b16 %v52
    %v87 = vunpack.c.l.b16 %v53
    %v88 = vunpack.c.h.b16 %v53
    %v89 = vunpack.c.l.b16 %v54
    %v90 = vunpack.c.h.b16 %v54
    %v91 = vpack.c.b16 %v77, %v75
    %v92 = vpack.c.b16 %v78, %v76
    %v93 = vpack.c.b16 %v81, %v79
    %v94 = vpack.c.b16 %v82, %v80
    %v95 = vpack.c.b16 %v85, %v83
    %v96 = vpack.c.b16 %v86, %v84
    %v97 = vpack.c.b16 %v89, %v87
    %v98 = vpack.c.b16 %v90, %v88
    %vm107 = vcmask 523264
    %v109 = vsel %vm107, %v46, 0
    %111 = vmatprep.subr.bf16.mxu0 %v92
    %112 = vmatpush1.bf16.msra.mxu0 %v91
    %113 = vmatprep.subr.bf16.mxu0 %v94
    %114 = vmatpush1.bf16.msra.mxu0 %v93
    %115 = vmatprep.subr.bf16.mxu0 %v96
    %116 = vmatpush1.bf16.msra.mxu0 %v95
    %117 = vmatprep.subr.bf16.mxu0 %v98
    %118 = vmatpush1.bf16.msra.mxu0 %v97
    %119 = vmatprep.subr.bf16.mxu0 0
    %120 = vmatpush1.bf16.msra.mxu0 0
    %121 = vmatprep.subr.bf16.mxu0 0
    %122 = vmatpush1.bf16.msra.mxu0 0
    %123 = vmatprep.subr.bf16.mxu0 0
    %124 = vmatpush1.bf16.msra.mxu0 0
    %125 = vmatprep.subr.bf16.mxu0 0
    %126 = vmatpush1.bf16.msra.mxu0 0
    %127 = vmatprep.subr.bf16.mxu0 0
    %128 = vmatpush1.bf16.msra.mxu0 0
    %129 = vmatprep.subr.bf16.mxu0 0
    %130 = vmatpush1.bf16.msra.mxu0 0
    %131 = vmatprep.subr.bf16.mxu0 0
    %132 = vmatpush1.bf16.msra.mxu0 0
    %133 = vmatprep.subr.bf16.mxu0 0
    %134 = vmatpush1.bf16.msra.mxu0 0
    %135 = vmatprep.subr.bf16.mxu0 0
    %136 = vmatpush1.bf16.msra.mxu0 0
    %137 = vmatprep.subr.bf16.mxu0 0
    %138 = vmatpush1.bf16.msra.mxu0 0
    %139 = vmatprep.subr.bf16.mxu0 0
    %140 = vmatpush1.bf16.msra.mxu0 0
    %141 = vmatprep.subr.bf16.mxu0 0
    %142 = vmatpush1.bf16.msra.mxu0 0
    %143 = vmatprep.mubr.bf16.mxu0 0
    %144 = vmatmul.mubr.bf16.gmra.mrb[0].mxu0 %v109
    %v145 = vpop.f32.mrb[0].mxu0
    %v146 = vadd.f32 %v60, %v145
    %v147 = vpop.f32.mrb[0].mxu0
    %v148 = vadd.f32 %v64, %v147
    %v149 = vpop.f32.mrb[0].mxu0
    %v150 = vadd.f32 %v60, %v149
    %v151 = vpop.f32.mrb[0].mxu0
    %v152 = vadd.f32 %v64, %v151
    %153 = vdwg.mxu0
    %155 = vrot.lane.b32.xlu0 %v146, 120
    %v156 = vpop.permute.xlu0 %155
    %158 = vrot.lane.b32.xlu0 %v146, 112
    %v159 = vpop.permute.xlu0 %158
    %161 = vrot.lane.b32.xlu0 %v146, 104
    %v162 = vpop.permute.xlu0 %161
    %164 = vrot.lane.b32.xlu0 %v146, 96
    %v165 = vpop.permute.xlu0 %164
    %167 = vrot.lane.b32.xlu0 %v146, 88
    %v168 = vpop.permute.xlu0 %167
    %170 = vrot.lane.b32.xlu0 %v146, 80
    %v171 = vpop.permute.xlu0 %170
    %173 = vrot.lane.b32.xlu0 %v146, 72
    %v174 = vpop.permute.xlu0 %173
    %v176 = vcombine.low %v146, %v159
    %v177 = vcombine.high %v146, %v159
    %v179 = vunpack.c.l.s4 1983009808
    %v180 = vunpack.c.0.s8 %v179
    %v181 = vlaneseq
    %v182 = vshrl.u32 %v181, 7
    %v183 = vsub.s32 %v180, %v182
    %v184 = vrot.slane %v176, %v183
    %v186 = vunpack.c.l.s4 1983009808
    %v187 = vunpack.c.0.s8 %v186
    %v188 = vlaneseq
    %v189 = vshrl.u32 %v188, 7
    %v190 = vsub.s32 %v187, %v189
    %v191 = vrot.slane %v177, %v190
    %v192 = vcombine.low %v156, %v162
    %v193 = vcombine.high %v156, %v162
    %v195 = vunpack.c.l.s4 1983009808
    %v196 = vunpack.c.0.s8 %v195
    %v197 = vlaneseq
    %v198 = vshrl.u32 %v197, 7
    %v199 = vsub.s32 %v196, %v198
    %v200 = vrot.slane %v192, %v199
    %v202 = vunpack.c.l.s4 1983009808
    %v203 = vunpack.c.0.s8 %v202
    %v204 = vlaneseq
    %v205 = vshrl.u32 %v204, 7
    %v206 = vsub.s32 %v203, %v205
    %v207 = vrot.slane %v193, %v206
    %v208 = vcombine.low %v165, %v171
    %v209 = vcombine.high %v165, %v171
    %v211 = vunpack.c.l.s4 1983009808
    %v212 = vunpack.c.0.s8 %v211
    %v213 = vlaneseq
    %v214 = vshrl.u32 %v213, 7
    %v215 = vsub.s32 %v212, %v214
    %v216 = vrot.slane %v208, %v215
    %v218 = vunpack.c.l.s4 1983009808
    %v219 = vunpack.c.0.s8 %v218
    %v220 = vlaneseq
    %v221 = vshrl.u32 %v220, 7
    %v222 = vsub.s32 %v219, %v221
    %v223 = vrot.slane %v209, %v222
    %v224 = vcombine.low %v168, %v174
    %v225 = vcombine.high %v168, %v174
    %v227 = vunpack.c.l.s4 1983009808
    %v228 = vunpack.c.0.s8 %v227
    %v229 = vlaneseq
    %v230 = vshrl.u32 %v229, 7
    %v231 = vsub.s32 %v228, %v230
    %v232 = vrot.slane %v224, %v231
    %v234 = vunpack.c.l.s4 1983009808
    %v235 = vunpack.c.0.s8 %v234
    %v236 = vlaneseq
    %v237 = vshrl.u32 %v236, 7
    %v238 = vsub.s32 %v235, %v237
    %v239 = vrot.slane %v225, %v238
    %v240 = vcombine.low %v184, %v200
    %v241 = vcombine.high %v184, %v200
    %v243 = vunpack.c.l.s4 1934713408
    %v244 = vunpack.c.0.s8 %v243
    %v245 = vlaneseq
    %v246 = vshrl.u32 %v245, 7
    %v247 = vsub.s32 %v244, %v246
    %v248 = vrot.slane %v240, %v247
    %v250 = vunpack.c.l.s4 1934713408
    %v251 = vunpack.c.0.s8 %v250
    %v252 = vlaneseq
    %v253 = vshrl.u32 %v252, 7
    %v254 = vsub.s32 %v251, %v253
    %v255 = vrot.slane %v241, %v254
    %v256 = vcombine.low %v191, %v207
    %v257 = vcombine.high %v191, %v207
    %v259 = vunpack.c.l.s4 1934713408
    %v260 = vunpack.c.0.s8 %v259
    %v261 = vlaneseq
    %v262 = vshrl.u32 %v261, 7
    %v263 = vsub.s32 %v260, %v262
    %v264 = vrot.slane %v256, %v263
    %v266 = vunpack.c.l.s4 1934713408
    %v267 = vunpack.c.0.s8 %v266
    %v268 = vlaneseq
    %v269 = vshrl.u32 %v268, 7
    %v270 = vsub.s32 %v267, %v269
    %v271 = vrot.slane %v257, %v270
    %v272 = vcombine.low %v216, %v232
    %v273 = vcombine.high %v216, %v232
    %v275 = vunpack.c.l.s4 1934713408
    %v276 = vunpack.c.0.s8 %v275
    %v277 = vlaneseq
    %v278 = vshrl.u32 %v277, 7
    %v279 = vsub.s32 %v276, %v278
    %v280 = vrot.slane %v272, %v279
    %v282 = vunpack.c.l.s4 1934713408
    %v283 = vunpack.c.0.s8 %v282
    %v284 = vlaneseq
    %v285 = vshrl.u32 %v284, 7
    %v286 = vsub.s32 %v283, %v285
    %v287 = vrot.slane %v273, %v286
    %v288 = vcombine.low %v223, %v239
    %v289 = vcombine.high %v223, %v239
    %v291 = vunpack.c.l.s4 1934713408
    %v292 = vunpack.c.0.s8 %v291
    %v293 = vlaneseq
    %v294 = vshrl.u32 %v293, 7
    %v295 = vsub.s32 %v292, %v294
    %v296 = vrot.slane %v288, %v295
    %v298 = vunpack.c.l.s4 1934713408
    %v299 = vunpack.c.0.s8 %v298
    %v300 = vlaneseq
    %v301 = vshrl.u32 %v300, 7
    %v302 = vsub.s32 %v299, %v301
    %v303 = vrot.slane %v289, %v302
    %v304 = vcombine.low %v248, %v280
    %v305 = vcombine.high %v248, %v280
    %v306 = vcombine.low %v255, %v287
    %v307 = vcombine.high %v255, %v287
    %v308 = vcombine.low %v264, %v296
    %v309 = vcombine.high %v264, %v296
    %v310 = vcombine.low %v271, %v303
    %v311 = vcombine.high %v271, %v303
    %v312 = vcombine.low %v304, %v306
    %v313 = vcombine.high %v304, %v306
    %v315 = vunpack.c.l.s4 1983009808
    %v316 = vunpack.c.0.s8 %v315
    %v317 = vlaneseq
    %v318 = vshrl.u32 %v317, 7
    %v319 = vsub.s32 %v316, %v318
    %v320 = vrot.slane %v312, %v319
    %v322 = vunpack.c.l.s4 1983009808
    %v323 = vunpack.c.0.s8 %v322
    %v324 = vlaneseq
    %v325 = vshrl.u32 %v324, 7
    %v326 = vsub.s32 %v323, %v325
    %v327 = vrot.slane %v313, %v326
    %v328 = vcombine.low %v305, %v307
    %v329 = vcombine.high %v305, %v307
    %v331 = vunpack.c.l.s4 1983009808
    %v332 = vunpack.c.0.s8 %v331
    %v333 = vlaneseq
    %v334 = vshrl.u32 %v333, 7
    %v335 = vsub.s32 %v332, %v334
    %v336 = vrot.slane %v328, %v335
    %v338 = vunpack.c.l.s4 1983009808
    %v339 = vunpack.c.0.s8 %v338
    %v340 = vlaneseq
    %v341 = vshrl.u32 %v340, 7
    %v342 = vsub.s32 %v339, %v341
    %v343 = vrot.slane %v329, %v342
    %v344 = vcombine.low %v308, %v310
    %v345 = vcombine.high %v308, %v310
    %v347 = vunpack.c.l.s4 1983009808
    %v348 = vunpack.c.0.s8 %v347
    %v349 = vlaneseq
    %v350 = vshrl.u32 %v349, 7
    %v351 = vsub.s32 %v348, %v350
    %v352 = vrot.slane %v344, %v351
    %v354 = vunpack.c.l.s4 1983009808
    %v355 = vunpack.c.0.s8 %v354
    %v356 = vlaneseq
    %v357 = vshrl.u32 %v356, 7
    %v358 = vsub.s32 %v355, %v357
    %v359 = vrot.slane %v345, %v358
    %v360 = vcombine.low %v309, %v311
    %v361 = vcombine.high %v309, %v311
    %v363 = vunpack.c.l.s4 1983009808
    %v364 = vunpack.c.0.s8 %v363
    %v365 = vlaneseq
    %v366 = vshrl.u32 %v365, 7
    %v367 = vsub.s32 %v364, %v366
    %v368 = vrot.slane %v360, %v367
    %v370 = vunpack.c.l.s4 1983009808
    %v371 = vunpack.c.0.s8 %v370
    %v372 = vlaneseq
    %v373 = vshrl.u32 %v372, 7
    %v374 = vsub.s32 %v371, %v373
    %v375 = vrot.slane %v361, %v374
    %v376 = vcombine.low %v320, %v336
    %v377 = vcombine.high %v320, %v336
    %v379 = vunpack.c.l.s4 1934713408
    %v380 = vunpack.c.0.s8 %v379
    %v381 = vlaneseq
    %v382 = vshrl.u32 %v381, 7
    %v383 = vsub.s32 %v380, %v382
    %v384 = vrot.slane %v376, %v383
    %v386 = vunpack.c.l.s4 1934713408
    %v387 = vunpack.c.0.s8 %v386
    %v388 = vlaneseq
    %v389 = vshrl.u32 %v388, 7
    %v390 = vsub.s32 %v387, %v389
    %v391 = vrot.slane %v377, %v390
    %v392 = vcombine.low %v327, %v343
    %v393 = vcombine.high %v327, %v343
    %v395 = vunpack.c.l.s4 1934713408
    %v396 = vunpack.c.0.s8 %v395
    %v397 = vlaneseq
    %v398 = vshrl.u32 %v397, 7
    %v399 = vsub.s32 %v396, %v398
    %v400 = vrot.slane %v392, %v399
    %v402 = vunpack.c.l.s4 1934713408
    %v403 = vunpack.c.0.s8 %v402
    %v404 = vlaneseq
    %v405 = vshrl.u32 %v404, 7
    %v406 = vsub.s32 %v403, %v405
    %v407 = vrot.slane %v393, %v406
    %v408 = vcombine.low %v352, %v368
    %v409 = vcombine.high %v352, %v368
    %v411 = vunpack.c.l.s4 1934713408
    %v412 = vunpack.c.0.s8 %v411
    %v413 = vlaneseq
    %v414 = vshrl.u32 %v413, 7
    %v415 = vsub.s32 %v412, %v414
    %v416 = vrot.slane %v408, %v415
    %v418 = vunpack.c.l.s4 1934713408
    %v419 = vunpack.c.0.s8 %v418
    %v420 = vlaneseq
    %v421 = vshrl.u32 %v420, 7
    %v422 = vsub.s32 %v419, %v421
    %v423 = vrot.slane %v409, %v422
    %v424 = vcombine.low %v359, %v375
    %v425 = vcombine.high %v359, %v375
    %v427 = vunpack.c.l.s4 1934713408
    %v428 = vunpack.c.0.s8 %v427
    %v429 = vlaneseq
    %v430 = vshrl.u32 %v429, 7
    %v431 = vsub.s32 %v428, %v430
    %v432 = vrot.slane %v424, %v431
    %v434 = vunpack.c.l.s4 1934713408
    %v435 = vunpack.c.0.s8 %v434
    %v436 = vlaneseq
    %v437 = vshrl.u32 %v436, 7
    %v438 = vsub.s32 %v435, %v437
    %v439 = vrot.slane %v425, %v438
    %v440 = vcombine.low %v384, %v416
    %v441 = vcombine.high %v384, %v416
    %v442 = vcombine.low %v391, %v423
    %v443 = vcombine.high %v391, %v423
    %v444 = vcombine.low %v400, %v432
    %v445 = vcombine.high %v400, %v432
    %v446 = vcombine.low %v407, %v439
    %v447 = vcombine.high %v407, %v439
    %v448 = vpack.c.bf16 %v440, %v440
    %v449 = vpack.c.bf16 %v441, %v441
    %v450 = vpack.c.bf16 %v442, %v442
    %v451 = vpack.c.bf16 %v443, %v443
    %v452 = vpack.c.bf16 %v444, %v444
    %v453 = vpack.c.bf16 %v445, %v445
    %v454 = vpack.c.bf16 %v446, %v446
    %v455 = vpack.c.bf16 %v447, %v447
    %456 = vrot.lane.b32.xlu0 %v146, 64
    %v457 = vpop.permute.xlu0 %456
    %458 = vrot.lane.b32.xlu0 %v156, 64
    %v459 = vpop.permute.xlu0 %458
    %460 = vrot.lane.b32.xlu0 %v159, 64
    %v461 = vpop.permute.xlu0 %460
    %462 = vrot.lane.b32.xlu0 %v162, 64
    %v463 = vpop.permute.xlu0 %462
    %464 = vrot.lane.b32.xlu0 %v165, 64
    %v465 = vpop.permute.xlu0 %464
    %466 = vrot.lane.b32.xlu0 %v168, 64
    %v467 = vpop.permute.xlu0 %466
    %468 = vrot.lane.b32.xlu0 %v171, 64
    %v469 = vpop.permute.xlu0 %468
    %470 = vrot.lane.b32.xlu0 %v174, 64
    %v471 = vpop.permute.xlu0 %470
    %v480 = vcombine.low %v457, %v461
    %v481 = vcombine.high %v457, %v461
    %v483 = vunpack.c.l.s4 1983009808
    %v484 = vunpack.c.0.s8 %v483
    %v485 = vlaneseq
    %v486 = vshrl.u32 %v485, 7
    %v487 = vsub.s32 %v484, %v486
    %v488 = vrot.slane %v480, %v487
    %v490 = vunpack.c.l.s4 1983009808
    %v491 = vunpack.c.0.s8 %v490
    %v492 = vlaneseq
    %v493 = vshrl.u32 %v492, 7
    %v494 = vsub.s32 %v491, %v493
    %v495 = vrot.slane %v481, %v494
    %v496 = vcombine.low %v459, %v463
    %v497 = vcombine.high %v459, %v463
    %v499 = vunpack.c.l.s4 1983009808
    %v500 = vunpack.c.0.s8 %v499
    %v501 = vlaneseq
    %v502 = vshrl.u32 %v501, 7
    %v503 = vsub.s32 %v500, %v502
    %v504 = vrot.slane %v496, %v503
    %v506 = vunpack.c.l.s4 1983009808
    %v507 = vunpack.c.0.s8 %v506
    %v508 = vlaneseq
    %v509 = vshrl.u32 %v508, 7
    %v510 = vsub.s32 %v507, %v509
    %v511 = vrot.slane %v497, %v510
    %v512 = vcombine.low %v465, %v469
    %v513 = vcombine.high %v465, %v469
    %v515 = vunpack.c.l.s4 1983009808
    %v516 = vunpack.c.0.s8 %v515
    %v517 = vlaneseq
    %v518 = vshrl.u32 %v517, 7
    %v519 = vsub.s32 %v516, %v518
    %v520 = vrot.slane %v512, %v519
    %v522 = vunpack.c.l.s4 1983009808
    %v523 = vunpack.c.0.s8 %v522
    %v524 = vlaneseq
    %v525 = vshrl.u32 %v524, 7
    %v526 = vsub.s32 %v523, %v525
    %v527 = vrot.slane %v513, %v526
    %v528 = vcombine.low %v467, %v471
    %v529 = vcombine.high %v467, %v471
    %v531 = vunpack.c.l.s4 1983009808
    %v532 = vunpack.c.0.s8 %v531
    %v533 = vlaneseq
    %v534 = vshrl.u32 %v533, 7
    %v535 = vsub.s32 %v532, %v534
    %v536 = vrot.slane %v528, %v535
    %v538 = vunpack.c.l.s4 1983009808
    %v539 = vunpack.c.0.s8 %v538
    %v540 = vlaneseq
    %v541 = vshrl.u32 %v540, 7
    %v542 = vsub.s32 %v539, %v541
    %v543 = vrot.slane %v529, %v542
    %v544 = vcombine.low %v488, %v504
    %v545 = vcombine.high %v488, %v504
    %v547 = vunpack.c.l.s4 1934713408
    %v548 = vunpack.c.0.s8 %v547
    %v549 = vlaneseq
    %v550 = vshrl.u32 %v549, 7
    %v551 = vsub.s32 %v548, %v550
    %v552 = vrot.slane %v544, %v551
    %v554 = vunpack.c.l.s4 1934713408
    %v555 = vunpack.c.0.s8 %v554
    %v556 = vlaneseq
    %v557 = vshrl.u32 %v556, 7
    %v558 = vsub.s32 %v555, %v557
    %v559 = vrot.slane %v545, %v558
    %v560 = vcombine.low %v495, %v511
    %v561 = vcombine.high %v495, %v511
    %v563 = vunpack.c.l.s4 1934713408
    %v564 = vunpack.c.0.s8 %v563
    %v565 = vlaneseq
    %v566 = vshrl.u32 %v565, 7
    %v567 = vsub.s32 %v564, %v566
    %v568 = vrot.slane %v560, %v567
    %v570 = vunpack.c.l.s4 1934713408
    %v571 = vunpack.c.0.s8 %v570
    %v572 = vlaneseq
    %v573 = vshrl.u32 %v572, 7
    %v574 = vsub.s32 %v571, %v573
    %v575 = vrot.slane %v561, %v574
    %v576 = vcombine.low %v520, %v536
    %v577 = vcombine.high %v520, %v536
    %v579 = vunpack.c.l.s4 1934713408
    %v580 = vunpack.c.0.s8 %v579
    %v581 = vlaneseq
    %v582 = vshrl.u32 %v581, 7
    %v583 = vsub.s32 %v580, %v582
    %v584 = vrot.slane %v576, %v583
    %v586 = vunpack.c.l.s4 1934713408
    %v587 = vunpack.c.0.s8 %v586
    %v588 = vlaneseq
    %v589 = vshrl.u32 %v588, 7
    %v590 = vsub.s32 %v587, %v589
    %v591 = vrot.slane %v577, %v590
    %v592 = vcombine.low %v527, %v543
    %v593 = vcombine.high %v527, %v543
    %v595 = vunpack.c.l.s4 1934713408
    %v596 = vunpack.c.0.s8 %v595
    %v597 = vlaneseq
    %v598 = vshrl.u32 %v597, 7
    %v599 = vsub.s32 %v596, %v598
    %v600 = vrot.slane %v592, %v599
    %v602 = vunpack.c.l.s4 1934713408
    %v603 = vunpack.c.0.s8 %v602
    %v604 = vlaneseq
    %v605 = vshrl.u32 %v604, 7
    %v606 = vsub.s32 %v603, %v605
    %v607 = vrot.slane %v593, %v606
    %v608 = vcombine.low %v552, %v584
    %v609 = vcombine.high %v552, %v584
    %v610 = vcombine.low %v559, %v591
    %v611 = vcombine.high %v559, %v591
    %v612 = vcombine.low %v568, %v600
    %v613 = vcombine.high %v568, %v600
    %v614 = vcombine.low %v575, %v607
    %v615 = vcombine.high %v575, %v607
    %v616 = vcombine.low %v608, %v610
    %v617 = vcombine.high %v608, %v610
    %v619 = vunpack.c.l.s4 1983009808
    %v620 = vunpack.c.0.s8 %v619
    %v621 = vlaneseq
    %v622 = vshrl.u32 %v621, 7
    %v623 = vsub.s32 %v620, %v622
    %v624 = vrot.slane %v616, %v623
    %v626 = vunpack.c.l.s4 1983009808
    %v627 = vunpack.c.0.s8 %v626
    %v628 = vlaneseq
    %v629 = vshrl.u32 %v628, 7
    %v630 = vsub.s32 %v627, %v629
    %v631 = vrot.slane %v617, %v630
    %v632 = vcombine.low %v609, %v611
    %v633 = vcombine.high %v609, %v611
    %v635 = vunpack.c.l.s4 1983009808
    %v636 = vunpack.c.0.s8 %v635
    %v637 = vlaneseq
    %v638 = vshrl.u32 %v637, 7
    %v639 = vsub.s32 %v636, %v638
    %v640 = vrot.slane %v632, %v639
    %v642 = vunpack.c.l.s4 1983009808
    %v643 = vunpack.c.0.s8 %v642
    %v644 = vlaneseq
    %v645 = vshrl.u32 %v644, 7
    %v646 = vsub.s32 %v643, %v645
    %v647 = vrot.slane %v633, %v646
    %v648 = vcombine.low %v612, %v614
    %v649 = vcombine.high %v612, %v614
    %v651 = vunpack.c.l.s4 1983009808
    %v652 = vunpack.c.0.s8 %v651
    %v653 = vlaneseq
    %v654 = vshrl.u32 %v653, 7
    %v655 = vsub.s32 %v652, %v654
    %v656 = vrot.slane %v648, %v655
    %v658 = vunpack.c.l.s4 1983009808
    %v659 = vunpack.c.0.s8 %v658
    %v660 = vlaneseq
    %v661 = vshrl.u32 %v660, 7
    %v662 = vsub.s32 %v659, %v661
    %v663 = vrot.slane %v649, %v662
    %v664 = vcombine.low %v613, %v615
    %v665 = vcombine.high %v613, %v615
    %v667 = vunpack.c.l.s4 1983009808
    %v668 = vunpack.c.0.s8 %v667
    %v669 = vlaneseq
    %v670 = vshrl.u32 %v669, 7
    %v671 = vsub.s32 %v668, %v670
    %v672 = vrot.slane %v664, %v671
    %v674 = vunpack.c.l.s4 1983009808
    %v675 = vunpack.c.0.s8 %v674
    %v676 = vlaneseq
    %v677 = vshrl.u32 %v676, 7
    %v678 = vsub.s32 %v675, %v677
    %v679 = vrot.slane %v665, %v678
    %v680 = vcombine.low %v624, %v640
    %v681 = vcombine.high %v624, %v640
    %v683 = vunpack.c.l.s4 1934713408
    %v684 = vunpack.c.0.s8 %v683
    %v685 = vlaneseq
    %v686 = vshrl.u32 %v685, 7
    %v687 = vsub.s32 %v684, %v686
    %v688 = vrot.slane %v680, %v687
    %v690 = vunpack.c.l.s4 1934713408
    %v691 = vunpack.c.0.s8 %v690
    %v692 = vlaneseq
    %v693 = vshrl.u32 %v692, 7
    %v694 = vsub.s32 %v691, %v693
    %v695 = vrot.slane %v681, %v694
    %v696 = vcombine.low %v631, %v647
    %v697 = vcombine.high %v631, %v647
    %v699 = vunpack.c.l.s4 1934713408
    %v700 = vunpack.c.0.s8 %v699
    %v701 = vlaneseq
    %v702 = vshrl.u32 %v701, 7
    %v703 = vsub.s32 %v700, %v702
    %v704 = vrot.slane %v696, %v703
    %v706 = vunpack.c.l.s4 1934713408
    %v707 = vunpack.c.0.s8 %v706
    %v708 = vlaneseq
    %v709 = vshrl.u32 %v708, 7
    %v710 = vsub.s32 %v707, %v709
    %v711 = vrot.slane %v697, %v710
    %v712 = vcombine.low %v656, %v672
    %v713 = vcombine.high %v656, %v672
    %v715 = vunpack.c.l.s4 1934713408
    %v716 = vunpack.c.0.s8 %v715
    %v717 = vlaneseq
    %v718 = vshrl.u32 %v717, 7
    %v719 = vsub.s32 %v716, %v718
    %v720 = vrot.slane %v712, %v719
    %v722 = vunpack.c.l.s4 1934713408
    %v723 = vunpack.c.0.s8 %v722
    %v724 = vlaneseq
    %v725 = vshrl.u32 %v724, 7
    %v726 = vsub.s32 %v723, %v725
    %v727 = vrot.slane %v713, %v726
    %v728 = vcombine.low %v663, %v679
    %v729 = vcombine.high %v663, %v679
    %v731 = vunpack.c.l.s4 1934713408
    %v732 = vunpack.c.0.s8 %v731
    %v733 = vlaneseq
    %v734 = vshrl.u32 %v733, 7
    %v735 = vsub.s32 %v732, %v734
    %v736 = vrot.slane %v728, %v735
    %v738 = vunpack.c.l.s4 1934713408
    %v739 = vunpack.c.0.s8 %v738
    %v740 = vlaneseq
    %v741 = vshrl.u32 %v740, 7
    %v742 = vsub.s32 %v739, %v741
    %v743 = vrot.slane %v729, %v742
    %v744 = vcombine.low %v688, %v720
    %v745 = vcombine.high %v688, %v720
    %v746 = vcombine.low %v695, %v727
    %v747 = vcombine.high %v695, %v727
    %v748 = vcombine.low %v704, %v736
    %v749 = vcombine.high %v704, %v736
    %v750 = vcombine.low %v711, %v743
    %v751 = vcombine.high %v711, %v743
    %v752 = vpack.c.bf16 %v744, %v744
    %v753 = vpack.c.bf16 %v745, %v745
    %v754 = vpack.c.bf16 %v746, %v746
    %v755 = vpack.c.bf16 %v747, %v747
    %v756 = vpack.c.bf16 %v748, %v748
    %v757 = vpack.c.bf16 %v749, %v749
    %v758 = vpack.c.bf16 %v750, %v750
    %v759 = vpack.c.bf16 %v751, %v751
    %761 = vrot.lane.b32.xlu0 %v148, 120
    %v762 = vpop.permute.xlu0 %761
    %764 = vrot.lane.b32.xlu0 %v148, 112
    %v765 = vpop.permute.xlu0 %764
    %767 = vrot.lane.b32.xlu0 %v148, 104
    %v768 = vpop.permute.xlu0 %767
    %770 = vrot.lane.b32.xlu0 %v148, 96
    %v771 = vpop.permute.xlu0 %770
    %773 = vrot.lane.b32.xlu0 %v148, 88
    %v774 = vpop.permute.xlu0 %773
    %776 = vrot.lane.b32.xlu0 %v148, 80
    %v777 = vpop.permute.xlu0 %776
    %779 = vrot.lane.b32.xlu0 %v148, 72
    %v780 = vpop.permute.xlu0 %779
    %v782 = vcombine.low %v148, %v765
    %v783 = vcombine.high %v148, %v765
    %v785 = vunpack.c.l.s4 1983009808
    %v786 = vunpack.c.0.s8 %v785
    %v787 = vlaneseq
    %v788 = vshrl.u32 %v787, 7
    %v789 = vsub.s32 %v786, %v788
    %v790 = vrot.slane %v782, %v789
    %v792 = vunpack.c.l.s4 1983009808
    %v793 = vunpack.c.0.s8 %v792
    %v794 = vlaneseq
    %v795 = vshrl.u32 %v794, 7
    %v796 = vsub.s32 %v793, %v795
    %v797 = vrot.slane %v783, %v796
    %v798 = vcombine.low %v762, %v768
    %v799 = vcombine.high %v762, %v768
    %v801 = vunpack.c.l.s4 1983009808
    %v802 = vunpack.c.0.s8 %v801
    %v803 = vlaneseq
    %v804 = vshrl.u32 %v803, 7
    %v805 = vsub.s32 %v802, %v804
    %v806 = vrot.slane %v798, %v805
    %v808 = vunpack.c.l.s4 1983009808
    %v809 = vunpack.c.0.s8 %v808
    %v810 = vlaneseq
    %v811 = vshrl.u32 %v810, 7
    %v812 = vsub.s32 %v809, %v811
    %v813 = vrot.slane %v799, %v812
    %v814 = vcombine.low %v771, %v777
    %v815 = vcombine.high %v771, %v777
    %v817 = vunpack.c.l.s4 1983009808
    %v818 = vunpack.c.0.s8 %v817
    %v819 = vlaneseq
    %v820 = vshrl.u32 %v819, 7
    %v821 = vsub.s32 %v818, %v820
    %v822 = vrot.slane %v814, %v821
    %v824 = vunpack.c.l.s4 1983009808
    %v825 = vunpack.c.0.s8 %v824
    %v826 = vlaneseq
    %v827 = vshrl.u32 %v826, 7
    %v828 = vsub.s32 %v825, %v827
    %v829 = vrot.slane %v815, %v828
    %v830 = vcombine.low %v774, %v780
    %v831 = vcombine.high %v774, %v780
    %v833 = vunpack.c.l.s4 1983009808
    %v834 = vunpack.c.0.s8 %v833
    %v835 = vlaneseq
    %v836 = vshrl.u32 %v835, 7
    %v837 = vsub.s32 %v834, %v836
    %v838 = vrot.slane %v830, %v837
    %v840 = vunpack.c.l.s4 1983009808
    %v841 = vunpack.c.0.s8 %v840
    %v842 = vlaneseq
    %v843 = vshrl.u32 %v842, 7
    %v844 = vsub.s32 %v841, %v843
    %v845 = vrot.slane %v831, %v844
    %v846 = vcombine.low %v790, %v806
    %v847 = vcombine.high %v790, %v806
    %v849 = vunpack.c.l.s4 1934713408
    %v850 = vunpack.c.0.s8 %v849
    %v851 = vlaneseq
    %v852 = vshrl.u32 %v851, 7
    %v853 = vsub.s32 %v850, %v852
    %v854 = vrot.slane %v846, %v853
    %v856 = vunpack.c.l.s4 1934713408
    %v857 = vunpack.c.0.s8 %v856
    %v858 = vlaneseq
    %v859 = vshrl.u32 %v858, 7
    %v860 = vsub.s32 %v857, %v859
    %v861 = vrot.slane %v847, %v860
    %v862 = vcombine.low %v797, %v813
    %v863 = vcombine.high %v797, %v813
    %v865 = vunpack.c.l.s4 1934713408
    %v866 = vunpack.c.0.s8 %v865
    %v867 = vlaneseq
    %v868 = vshrl.u32 %v867, 7
    %v869 = vsub.s32 %v866, %v868
    %v870 = vrot.slane %v862, %v869
    %v872 = vunpack.c.l.s4 1934713408
    %v873 = vunpack.c.0.s8 %v872
    %v874 = vlaneseq
    %v875 = vshrl.u32 %v874, 7
    %v876 = vsub.s32 %v873, %v875
    %v877 = vrot.slane %v863, %v876
    %v878 = vcombine.low %v822, %v838
    %v879 = vcombine.high %v822, %v838
    %v881 = vunpack.c.l.s4 1934713408
    %v882 = vunpack.c.0.s8 %v881
    %v883 = vlaneseq
    %v884 = vshrl.u32 %v883, 7
    %v885 = vsub.s32 %v882, %v884
    %v886 = vrot.slane %v878, %v885
    %v888 = vunpack.c.l.s4 1934713408
    %v889 = vunpack.c.0.s8 %v888
    %v890 = vlaneseq
    %v891 = vshrl.u32 %v890, 7
    %v892 = vsub.s32 %v889, %v891
    %v893 = vrot.slane %v879, %v892
    %v894 = vcombine.low %v829, %v845
    %v895 = vcombine.high %v829, %v845
    %v897 = vunpack.c.l.s4 1934713408
    %v898 = vunpack.c.0.s8 %v897
    %v899 = vlaneseq
    %v900 = vshrl.u32 %v899, 7
    %v901 = vsub.s32 %v898, %v900
    %v902 = vrot.slane %v894, %v901
    %v904 = vunpack.c.l.s4 1934713408
    %v905 = vunpack.c.0.s8 %v904
    %v906 = vlaneseq
    %v907 = vshrl.u32 %v906, 7
    %v908 = vsub.s32 %v905, %v907
    %v909 = vrot.slane %v895, %v908
    %v910 = vcombine.low %v854, %v886
    %v911 = vcombine.high %v854, %v886
    %v912 = vcombine.low %v861, %v893
    %v913 = vcombine.high %v861, %v893
    %v914 = vcombine.low %v870, %v902
    %v915 = vcombine.high %v870, %v902
    %v916 = vcombine.low %v877, %v909
    %v917 = vcombine.high %v877, %v909
    %v918 = vcombine.low %v910, %v912
    %v919 = vcombine.high %v910, %v912
    %v921 = vunpack.c.l.s4 1983009808
    %v922 = vunpack.c.0.s8 %v921
    %v923 = vlaneseq
    %v924 = vshrl.u32 %v923, 7
    %v925 = vsub.s32 %v922, %v924
    %v926 = vrot.slane %v918, %v925
    %v928 = vunpack.c.l.s4 1983009808
    %v929 = vunpack.c.0.s8 %v928
    %v930 = vlaneseq
    %v931 = vshrl.u32 %v930, 7
    %v932 = vsub.s32 %v929, %v931
    %v933 = vrot.slane %v919, %v932
    %v934 = vcombine.low %v911, %v913
    %v935 = vcombine.high %v911, %v913
    %v937 = vunpack.c.l.s4 1983009808
    %v938 = vunpack.c.0.s8 %v937
    %v939 = vlaneseq
    %v940 = vshrl.u32 %v939, 7
    %v941 = vsub.s32 %v938, %v940
    %v942 = vrot.slane %v934, %v941
    %v944 = vunpack.c.l.s4 1983009808
    %v945 = vunpack.c.0.s8 %v944
    %v946 = vlaneseq
    %v947 = vshrl.u32 %v946, 7
    %v948 = vsub.s32 %v945, %v947
    %v949 = vrot.slane %v935, %v948
    %v950 = vcombine.low %v914, %v916
    %v951 = vcombine.high %v914, %v916
    %v953 = vunpack.c.l.s4 1983009808
    %v954 = vunpack.c.0.s8 %v953
    %v955 = vlaneseq
    %v956 = vshrl.u32 %v955, 7
    %v957 = vsub.s32 %v954, %v956
    %v958 = vrot.slane %v950, %v957
    %v960 = vunpack.c.l.s4 1983009808
    %v961 = vunpack.c.0.s8 %v960
    %v962 = vlaneseq
    %v963 = vshrl.u32 %v962, 7
    %v964 = vsub.s32 %v961, %v963
    %v965 = vrot.slane %v951, %v964
    %v966 = vcombine.low %v915, %v917
    %v967 = vcombine.high %v915, %v917
    %v969 = vunpack.c.l.s4 1983009808
    %v970 = vunpack.c.0.s8 %v969
    %v971 = vlaneseq
    %v972 = vshrl.u32 %v971, 7
    %v973 = vsub.s32 %v970, %v972
    %v974 = vrot.slane %v966, %v973
    %v976 = vunpack.c.l.s4 1983009808
    %v977 = vunpack.c.0.s8 %v976
    %v978 = vlaneseq
    %v979 = vshrl.u32 %v978, 7
    %v980 = vsub.s32 %v977, %v979
    %v981 = vrot.slane %v967, %v980
    %v982 = vcombine.low %v926, %v942
    %v983 = vcombine.high %v926, %v942
    %v985 = vunpack.c.l.s4 1934713408
    %v986 = vunpack.c.0.s8 %v985
    %v987 = vlaneseq
    %v988 = vshrl.u32 %v987, 7
    %v989 = vsub.s32 %v986, %v988
    %v990 = vrot.slane %v982, %v989
    %v992 = vunpack.c.l.s4 1934713408
    %v993 = vunpack.c.0.s8 %v992
    %v994 = vlaneseq
    %v995 = vshrl.u32 %v994, 7
    %v996 = vsub.s32 %v993, %v995
    %v997 = vrot.slane %v983, %v996
    %v998 = vcombine.low %v933, %v949
    %v999 = vcombine.high %v933, %v949
    %v1001 = vunpack.c.l.s4 1934713408
    %v1002 = vunpack.c.0.s8 %v1001
    %v1003 = vlaneseq
    %v1004 = vshrl.u32 %v1003, 7
    %v1005 = vsub.s32 %v1002, %v1004
    %v1006 = vrot.slane %v998, %v1005
    %v1008 = vunpack.c.l.s4 1934713408
    %v1009 = vunpack.c.0.s8 %v1008
    %v1010 = vlaneseq
    %v1011 = vshrl.u32 %v1010, 7
    %v1012 = vsub.s32 %v1009, %v1011
    %v1013 = vrot.slane %v999, %v1012
    %v1014 = vcombine.low %v958, %v974
    %v1015 = vcombine.high %v958, %v974
    %v1017 = vunpack.c.l.s4 1934713408
    %v1018 = vunpack.c.0.s8 %v1017
    %v1019 = vlaneseq
    %v1020 = vshrl.u32 %v1019, 7
    %v1021 = vsub.s32 %v1018, %v1020
    %v1022 = vrot.slane %v1014, %v1021
    %v1024 = vunpack.c.l.s4 1934713408
    %v1025 = vunpack.c.0.s8 %v1024
    %v1026 = vlaneseq
    %v1027 = vshrl.u32 %v1026, 7
    %v1028 = vsub.s32 %v1025, %v1027
    %v1029 = vrot.slane %v1015, %v1028
    %v1030 = vcombine.low %v965, %v981
    %v1031 = vcombine.high %v965, %v981
    %v1033 = vunpack.c.l.s4 1934713408
    %v1034 = vunpack.c.0.s8 %v1033
    %v1035 = vlaneseq
    %v1036 = vshrl.u32 %v1035, 7
    %v1037 = vsub.s32 %v1034, %v1036
    %v1038 = vrot.slane %v1030, %v1037
    %v1040 = vunpack.c.l.s4 1934713408
    %v1041 = vunpack.c.0.s8 %v1040
    %v1042 = vlaneseq
    %v1043 = vshrl.u32 %v1042, 7
    %v1044 = vsub.s32 %v1041, %v1043
    %v1045 = vrot.slane %v1031, %v1044
    %v1046 = vcombine.low %v990, %v1022
    %v1047 = vcombine.high %v990, %v1022
    %v1048 = vcombine.low %v997, %v1029
    %v1049 = vcombine.high %v997, %v1029
    %v1050 = vcombine.low %v1006, %v1038
    %v1051 = vcombine.high %v1006, %v1038
    %v1052 = vcombine.low %v1013, %v1045
    %v1053 = vcombine.high %v1013, %v1045
    %v1054 = vpack.c.bf16 %v1046, %v1046
    %v1055 = vpack.c.bf16 %v1047, %v1047
    %v1056 = vpack.c.bf16 %v1048, %v1048
    %v1057 = vpack.c.bf16 %v1049, %v1049
    %v1058 = vpack.c.bf16 %v1050, %v1050
    %v1059 = vpack.c.bf16 %v1051, %v1051
    %v1060 = vpack.c.bf16 %v1052, %v1052
    %v1061 = vpack.c.bf16 %v1053, %v1053
    %vm1062 = vcmask 64512
    %v1064 = vsel %vm1062, %v448, 0
    %v1067 = vsel %vm1062, %v752, 0
    %1069 = vmatprep.subr.bf16.mxu0 0
    %1070 = vmatpush1.bf16.xpose.msra.mxu0 %v1067
    %1071 = vmatprep.subr.bf16.mxu0 0
    %1072 = vmatpush1.bf16.xpose.msra.mxu0 0
    %1073 = vmatprep.subr.bf16.mxu0 0
    %1074 = vmatpush1.bf16.xpose.msra.mxu0 0
    %1075 = vmatprep.subr.bf16.mxu0 0
    %1076 = vmatpush1.bf16.xpose.msra.mxu0 0
    %1077 = vmatprep.subr.bf16.mxu0 0
    %1078 = vmatpush1.bf16.xpose.msra.mxu0 0
    %1079 = vmatprep.subr.bf16.mxu0 0
    %1080 = vmatpush1.bf16.xpose.msra.mxu0 0
    %1081 = vmatprep.subr.bf16.mxu0 0
    %1082 = vmatpush1.bf16.xpose.msra.mxu0 0
    %1083 = vmatprep.subr.bf16.mxu0 0
    %1084 = vmatpush1.bf16.xpose.msra.mxu0 0
    %1085 = vmatprep.subr.bf16.mxu0 0
    %1086 = vmatpush1.bf16.xpose.msra.mxu0 0
    %1087 = vmatprep.subr.bf16.mxu0 0
    %1088 = vmatpush1.bf16.xpose.msra.mxu0 0
    %1089 = vmatprep.subr.bf16.mxu0 0
    %1090 = vmatpush1.bf16.xpose.msra.mxu0 0
    %1091 = vmatprep.subr.bf16.mxu0 0
    %1092 = vmatpush1.bf16.xpose.msra.mxu0 0
    %1093 = vmatprep.subr.bf16.mxu0 0
    %1094 = vmatpush1.bf16.xpose.msra.mxu0 0
    %1095 = vmatprep.subr.bf16.mxu0 0
    %1096 = vmatpush1.bf16.xpose.msra.mxu0 0
    %1097 = vmatprep.subr.bf16.mxu0 0
    %1098 = vmatpush1.bf16.xpose.msra.mxu0 0
    %1099 = vmatprep.subr.bf16.mxu0 0
    %1100 = vmatpush1.bf16.xpose.msra.mxu0 0
    %1101 = vmatprep.mubr.bf16.mxu0 0
    %1102 = vmatmul.mubr.bf16.gmra.mrb[0].mxu0 %v1064
    %v1103 = vpop.f32.mrb[0].mxu0
    %v1104 = vadd.f32 0.0, %v1103
    %v1105 = vpop.f32.mrb[0].mxu0
    %v1106 = vpop.f32.mrb[0].mxu0
    %v1107 = vpop.f32.mrb[0].mxu0
    %1108 = vdwg.mxu0
    %v1110 = vsel %vm1062, %v449, 0
    %v1113 = vsel %vm1062, %v753, 0
    %1115 = vmatprep.subr.bf16.mxu0 0
    %1116 = vmatpush1.bf16.xpose.msra.mxu0 %v1113
    %1117 = vmatprep.subr.bf16.mxu0 0
    %1118 = vmatpush1.bf16.xpose.msra.mxu0 0
    %1119 = vmatprep.subr.bf16.mxu0 0
    %1120 = vmatpush1.bf16.xpose.msra.mxu0 0
    %1121 = vmatprep.subr.bf16.mxu0 0
    %1122 = vmatpush1.bf16.xpose.msra.mxu0 0
    %1123 = vmatprep.subr.bf16.mxu0 0
    %1124 = vmatpush1.bf16.xpose.msra.mxu0 0
    %1125 = vmatprep.subr.bf16.mxu0 0
    %1126 = vmatpush1.bf16.xpose.msra.mxu0 0
    %1127 = vmatprep.subr.bf16.mxu0 0
    %1128 = vmatpush1.bf16.xpose.msra.mxu0 0
    %1129 = vmatprep.subr.bf16.mxu0 0
    %1130 = vmatpush1.bf16.xpose.msra.mxu0 0
    %1131 = vmatprep.subr.bf16.mxu0 0
    %1132 = vmatpush1.bf16.xpose.msra.mxu0 0
    %1133 = vmatprep.subr.bf16.mxu0 0
    %1134 = vmatpush1.bf16.xpose.msra.mxu0 0
    %1135 = vmatprep.subr.bf16.mxu0 0
    %1136 = vmatpush1.bf16.xpose.msra.mxu0 0
    %1137 = vmatprep.subr.bf16.mxu0 0
    %1138 = vmatpush1.bf16.xpose.msra.mxu0 0
    %1139 = vmatprep.subr.bf16.mxu0 0
    %1140 = vmatpush1.bf16.xpose.msra.mxu0 0
    %1141 = vmatprep.subr.bf16.mxu0 0
    %1142 = vmatpush1.bf16.xpose.msra.mxu0 0
    %1143 = vmatprep.subr.bf16.mxu0 0
    %1144 = vmatpush1.bf16.xpose.msra.mxu0 0
    %1145 = vmatprep.subr.bf16.mxu0 0
    %1146 = vmatpush1.bf16.xpose.msra.mxu0 0
    %1147 = vmatprep.mubr.bf16.mxu0 0
    %1148 = vmatmul.mubr.bf16.gmra.mrb[0].mxu0 %v1110
    %v1149 = vpop.f32.mrb[0].mxu0
    %v1150 = vadd.f32 0.0, %v1149
    %v1151 = vpop.f32.mrb[0].mxu0
    %v1152 = vpop.f32.mrb[0].mxu0
    %v1153 = vpop.f32.mrb[0].mxu0
    %1154 = vdwg.mxu0
    %v1156 = vsel %vm1062, %v450, 0
    %v1159 = vsel %vm1062, %v754, 0
    %1161 = vmatprep.subr.bf16.mxu0 0
    %1162 = vmatpush1.bf16.xpose.msra.mxu0 %v1159
    %1163 = vmatprep.subr.bf16.mxu0 0
    %1164 = vmatpush1.bf16.xpose.msra.mxu0 0
    %1165 = vmatprep.subr.bf16.mxu0 0
    %1166 = vmatpush1.bf16.xpose.msra.mxu0 0
    %1167 = vmatprep.subr.bf16.mxu0 0
    %1168 = vmatpush1.bf16.xpose.msra.mxu0 0
    %1169 = vmatprep.subr.bf16.mxu0 0
    %1170 = vmatpush1.bf16.xpose.msra.mxu0 0
    %1171 = vmatprep.subr.bf16.mxu0 0
    %1172 = vmatpush1.bf16.xpose.msra.mxu0 0
    %1173 = vmatprep.subr.bf16.mxu0 0
    %1174 = vmatpush1.bf16.xpose.msra.mxu0 0
    %1175 = vmatprep.subr.bf16.mxu0 0
    %1176 = vmatpush1.bf16.xpose.msra.mxu0 0
    %1177 = vmatprep.subr.bf16.mxu0 0
    %1178 = vmatpush1.bf16.xpose.msra.mxu0 0
    %1179 = vmatprep.subr.bf16.mxu0 0
    %1180 = vmatpush1.bf16.xpose.msra.mxu0 0
    %1181 = vmatprep.subr.bf16.mxu0 0
    %1182 = vmatpush1.bf16.xpose.msra.mxu0 0
    %1183 = vmatprep.subr.bf16.mxu0 0
    %1184 = vmatpush1.bf16.xpose.msra.mxu0 0
    %1185 = vmatprep.subr.bf16.mxu0 0
    %1186 = vmatpush1.bf16.xpose.msra.mxu0 0
    %1187 = vmatprep.subr.bf16.mxu0 0
    %1188 = vmatpush1.bf16.xpose.msra.mxu0 0
    %1189 = vmatprep.subr.bf16.mxu0 0
    %1190 = vmatpush1.bf16.xpose.msra.mxu0 0
    %1191 = vmatprep.subr.bf16.mxu0 0
    %1192 = vmatpush1.bf16.xpose.msra.mxu0 0
    %1193 = vmatprep.mubr.bf16.mxu0 0
    %1194 = vmatmul.mubr.bf16.gmra.mrb[0].mxu0 %v1156
    %v1195 = vpop.f32.mrb[0].mxu0
    %v1196 = vadd.f32 0.0, %v1195
    %v1197 = vpop.f32.mrb[0].mxu0
    %v1198 = vpop.f32.mrb[0].mxu0
    %v1199 = vpop.f32.mrb[0].mxu0
    %1200 = vdwg.mxu0
    %v1202 = vsel %vm1062, %v451, 0
    %v1205 = vsel %vm1062, %v755, 0
    %1207 = vmatprep.subr.bf16.mxu0 0
    %1208 = vmatpush1.bf16.xpose.msra.mxu0 %v1205
    %1209 = vmatprep.subr.bf16.mxu0 0
    %1210 = vmatpush1.bf16.xpose.msra.mxu0 0
    %1211 = vmatprep.subr.bf16.mxu0 0
    %1212 = vmatpush1.bf16.xpose.msra.mxu0 0
    %1213 = vmatprep.subr.bf16.mxu0 0
    %1214 = vmatpush1.bf16.xpose.msra.mxu0 0
    %1215 = vmatprep.subr.bf16.mxu0 0
    %1216 = vmatpush1.bf16.xpose.msra.mxu0 0
    %1217 = vmatprep.subr.bf16.mxu0 0
    %1218 = vmatpush1.bf16.xpose.msra.mxu0 0
    %1219 = vmatprep.subr.bf16.mxu0 0
    %1220 = vmatpush1.bf16.xpose.msra.mxu0 0
    %1221 = vmatprep.subr.bf16.mxu0 0
    %1222 = vmatpush1.bf16.xpose.msra.mxu0 0
    %1223 = vmatprep.subr.bf16.mxu0 0
    %1224 = vmatpush1.bf16.xpose.msra.mxu0 0
    %1225 = vmatprep.subr.bf16.mxu0 0
    %1226 = vmatpush1.bf16.xpose.msra.mxu0 0
    %1227 = vmatprep.subr.bf16.mxu0 0
    %1228 = vmatpush1.bf16.xpose.msra.mxu0 0
    %1229 = vmatprep.subr.bf16.mxu0 0
    %1230 = vmatpush1.bf16.xpose.msra.mxu0 0
    %1231 = vmatprep.subr.bf16.mxu0 0
    %1232 = vmatpush1.bf16.xpose.msra.mxu0 0
    %1233 = vmatprep.subr.bf16.mxu0 0
    %1234 = vmatpush1.bf16.xpose.msra.mxu0 0
    %1235 = vmatprep.subr.bf16.mxu0 0
    %1236 = vmatpush1.bf16.xpose.msra.mxu0 0
    %1237 = vmatprep.subr.bf16.mxu0 0
    %1238 = vmatpush1.bf16.xpose.msra.mxu0 0
    %1239 = vmatprep.mubr.bf16.mxu0 0
    %1240 = vmatmul.mubr.bf16.gmra.mrb[0].mxu0 %v1202
    %v1241 = vpop.f32.mrb[0].mxu0
    %v1242 = vadd.f32 0.0, %v1241
    %v1243 = vpop.f32.mrb[0].mxu0
    %v1244 = vpop.f32.mrb[0].mxu0
    %v1245 = vpop.f32.mrb[0].mxu0
    %1246 = vdwg.mxu0
    %v1248 = vsel %vm1062, %v452, 0
    %v1251 = vsel %vm1062, %v756, 0
    %1253 = vmatprep.subr.bf16.mxu0 0
    %1254 = vmatpush1.bf16.xpose.msra.mxu0 %v1251
    %1255 = vmatprep.subr.bf16.mxu0 0
    %1256 = vmatpush1.bf16.xpose.msra.mxu0 0
    %1257 = vmatprep.subr.bf16.mxu0 0
    %1258 = vmatpush1.bf16.xpose.msra.mxu0 0
    %1259 = vmatprep.subr.bf16.mxu0 0
    %1260 = vmatpush1.bf16.xpose.msra.mxu0 0
    %1261 = vmatprep.subr.bf16.mxu0 0
    %1262 = vmatpush1.bf16.xpose.msra.mxu0 0
    %1263 = vmatprep.subr.bf16.mxu0 0
    %1264 = vmatpush1.bf16.xpose.msra.mxu0 0
    %1265 = vmatprep.subr.bf16.mxu0 0
    %1266 = vmatpush1.bf16.xpose.msra.mxu0 0
    %1267 = vmatprep.subr.bf16.mxu0 0
    %1268 = vmatpush1.bf16.xpose.msra.mxu0 0
    %1269 = vmatprep.subr.bf16.mxu0 0
    %1270 = vmatpush1.bf16.xpose.msra.mxu0 0
    %1271 = vmatprep.subr.bf16.mxu0 0
    %1272 = vmatpush1.bf16.xpose.msra.mxu0 0
    %1273 = vmatprep.subr.bf16.mxu0 0
    %1274 = vmatpush1.bf16.xpose.msra.mxu0 0
    %1275 = vmatprep.subr.bf16.mxu0 0
    %1276 = vmatpush1.bf16.xpose.msra.mxu0 0
    %1277 = vmatprep.subr.bf16.mxu0 0
    %1278 = vmatpush1.bf16.xpose.msra.mxu0 0
    %1279 = vmatprep.subr.bf16.mxu0 0
    %1280 = vmatpush1.bf16.xpose.msra.mxu0 0
    %1281 = vmatprep.subr.bf16.mxu0 0
    %1282 = vmatpush1.bf16.xpose.msra.mxu0 0
    %1283 = vmatprep.subr.bf16.mxu0 0
    %1284 = vmatpush1.bf16.xpose.msra.mxu0 0
    %1285 = vmatprep.mubr.bf16.mxu0 0
    %1286 = vmatmul.mubr.bf16.gmra.mrb[0].mxu0 %v1248
    %v1287 = vpop.f32.mrb[0].mxu0
    %v1288 = vadd.f32 0.0, %v1287
    %v1289 = vpop.f32.mrb[0].mxu0
    %v1290 = vpop.f32.mrb[0].mxu0
    %v1291 = vpop.f32.mrb[0].mxu0
    %1292 = vdwg.mxu0
    %v1294 = vsel %vm1062, %v453, 0
    %v1297 = vsel %vm1062, %v757, 0
    %1299 = vmatprep.subr.bf16.mxu0 0
    %1300 = vmatpush1.bf16.xpose.msra.mxu0 %v1297
    %1301 = vmatprep.subr.bf16.mxu0 0
    %1302 = vmatpush1.bf16.xpose.msra.mxu0 0
    %1303 = vmatprep.subr.bf16.mxu0 0
    %1304 = vmatpush1.bf16.xpose.msra.mxu0 0
    %1305 = vmatprep.subr.bf16.mxu0 0
    %1306 = vmatpush1.bf16.xpose.msra.mxu0 0
    %1307 = vmatprep.subr.bf16.mxu0 0
    %1308 = vmatpush1.bf16.xpose.msra.mxu0 0
    %1309 = vmatprep.subr.bf16.mxu0 0
    %1310 = vmatpush1.bf16.xpose.msra.mxu0 0
    %1311 = vmatprep.subr.bf16.mxu0 0
    %1312 = vmatpush1.bf16.xpose.msra.mxu0 0
    %1313 = vmatprep.subr.bf16.mxu0 0
    %1314 = vmatpush1.bf16.xpose.msra.mxu0 0
    %1315 = vmatprep.subr.bf16.mxu0 0
    %1316 = vmatpush1.bf16.xpose.msra.mxu0 0
    %1317 = vmatprep.subr.bf16.mxu0 0
    %1318 = vmatpush1.bf16.xpose.msra.mxu0 0
    %1319 = vmatprep.subr.bf16.mxu0 0
    %1320 = vmatpush1.bf16.xpose.msra.mxu0 0
    %1321 = vmatprep.subr.bf16.mxu0 0
    %1322 = vmatpush1.bf16.xpose.msra.mxu0 0
    %1323 = vmatprep.subr.bf16.mxu0 0
    %1324 = vmatpush1.bf16.xpose.msra.mxu0 0
    %1325 = vmatprep.subr.bf16.mxu0 0
    %1326 = vmatpush1.bf16.xpose.msra.mxu0 0
    %1327 = vmatprep.subr.bf16.mxu0 0
    %1328 = vmatpush1.bf16.xpose.msra.mxu0 0
    %1329 = vmatprep.subr.bf16.mxu0 0
    %1330 = vmatpush1.bf16.xpose.msra.mxu0 0
    %1331 = vmatprep.mubr.bf16.mxu0 0
    %1332 = vmatmul.mubr.bf16.gmra.mrb[0].mxu0 %v1294
    %v1333 = vpop.f32.mrb[0].mxu0
    %v1334 = vadd.f32 0.0, %v1333
    %v1335 = vpop.f32.mrb[0].mxu0
    %v1336 = vpop.f32.mrb[0].mxu0
    %v1337 = vpop.f32.mrb[0].mxu0
    %1338 = vdwg.mxu0
    %v1340 = vsel %vm1062, %v454, 0
    %v1343 = vsel %vm1062, %v758, 0
    %1345 = vmatprep.subr.bf16.mxu0 0
    %1346 = vmatpush1.bf16.xpose.msra.mxu0 %v1343
    %1347 = vmatprep.subr.bf16.mxu0 0
    %1348 = vmatpush1.bf16.xpose.msra.mxu0 0
    %1349 = vmatprep.subr.bf16.mxu0 0
    %1350 = vmatpush1.bf16.xpose.msra.mxu0 0
    %1351 = vmatprep.subr.bf16.mxu0 0
    %1352 = vmatpush1.bf16.xpose.msra.mxu0 0
    %1353 = vmatprep.subr.bf16.mxu0 0
    %1354 = vmatpush1.bf16.xpose.msra.mxu0 0
    %1355 = vmatprep.subr.bf16.mxu0 0
    %1356 = vmatpush1.bf16.xpose.msra.mxu0 0
    %1357 = vmatprep.subr.bf16.mxu0 0
    %1358 = vmatpush1.bf16.xpose.msra.mxu0 0
    %1359 = vmatprep.subr.bf16.mxu0 0
    %1360 = vmatpush1.bf16.xpose.msra.mxu0 0
    %1361 = vmatprep.subr.bf16.mxu0 0
    %1362 = vmatpush1.bf16.xpose.msra.mxu0 0
    %1363 = vmatprep.subr.bf16.mxu0 0
    %1364 = vmatpush1.bf16.xpose.msra.mxu0 0
    %1365 = vmatprep.subr.bf16.mxu0 0
    %1366 = vmatpush1.bf16.xpose.msra.mxu0 0
    %1367 = vmatprep.subr.bf16.mxu0 0
    %1368 = vmatpush1.bf16.xpose.msra.mxu0 0
    %1369 = vmatprep.subr.bf16.mxu0 0
    %1370 = vmatpush1.bf16.xpose.msra.mxu0 0
    %1371 = vmatprep.subr.bf16.mxu0 0
    %1372 = vmatpush1.bf16.xpose.msra.mxu0 0
    %1373 = vmatprep.subr.bf16.mxu0 0
    %1374 = vmatpush1.bf16.xpose.msra.mxu0 0
    %1375 = vmatprep.subr.bf16.mxu0 0
    %1376 = vmatpush1.bf16.xpose.msra.mxu0 0
    %1377 = vmatprep.mubr.bf16.mxu0 0
    %1378 = vmatmul.mubr.bf16.gmra.mrb[0].mxu0 %v1340
    %v1379 = vpop.f32.mrb[0].mxu0
    %v1380 = vadd.f32 0.0, %v1379
    %v1381 = vpop.f32.mrb[0].mxu0
    %v1382 = vpop.f32.mrb[0].mxu0
    %v1383 = vpop.f32.mrb[0].mxu0
    %1384 = vdwg.mxu0
    %v1386 = vsel %vm1062, %v455, 0
    %v1389 = vsel %vm1062, %v759, 0
    %1391 = vmatprep.subr.bf16.mxu0 0
    %1392 = vmatpush1.bf16.xpose.msra.mxu0 %v1389
    %1393 = vmatprep.subr.bf16.mxu0 0
    %1394 = vmatpush1.bf16.xpose.msra.mxu0 0
    %1395 = vmatprep.subr.bf16.mxu0 0
    %1396 = vmatpush1.bf16.xpose.msra.mxu0 0
    %1397 = vmatprep.subr.bf16.mxu0 0
    %1398 = vmatpush1.bf16.xpose.msra.mxu0 0
    %1399 = vmatprep.subr.bf16.mxu0 0
    %1400 = vmatpush1.bf16.xpose.msra.mxu0 0
    %1401 = vmatprep.subr.bf16.mxu0 0
    %1402 = vmatpush1.bf16.xpose.msra.mxu0 0
    %1403 = vmatprep.subr.bf16.mxu0 0
    %1404 = vmatpush1.bf16.xpose.msra.mxu0 0
    %1405 = vmatprep.subr.bf16.mxu0 0
    %1406 = vmatpush1.bf16.xpose.msra.mxu0 0
    %1407 = vmatprep.subr.bf16.mxu0 0
    %1408 = vmatpush1.bf16.xpose.msra.mxu0 0
    %1409 = vmatprep.subr.bf16.mxu0 0
    %1410 = vmatpush1.bf16.xpose.msra.mxu0 0
    %1411 = vmatprep.subr.bf16.mxu0 0
    %1412 = vmatpush1.bf16.xpose.msra.mxu0 0
    %1413 = vmatprep.subr.bf16.mxu0 0
    %1414 = vmatpush1.bf16.xpose.msra.mxu0 0
    %1415 = vmatprep.subr.bf16.mxu0 0
    %1416 = vmatpush1.bf16.xpose.msra.mxu0 0
    %1417 = vmatprep.subr.bf16.mxu0 0
    %1418 = vmatpush1.bf16.xpose.msra.mxu0 0
    %1419 = vmatprep.subr.bf16.mxu0 0
    %1420 = vmatpush1.bf16.xpose.msra.mxu0 0
    %1421 = vmatprep.subr.bf16.mxu0 0
    %1422 = vmatpush1.bf16.xpose.msra.mxu0 0
    %1423 = vmatprep.mubr.bf16.mxu0 0
    %1424 = vmatmul.mubr.bf16.gmra.mrb[0].mxu0 %v1386
    %v1425 = vpop.f32.mrb[0].mxu0
    %v1426 = vadd.f32 0.0, %v1425
    %v1427 = vpop.f32.mrb[0].mxu0
    %v1428 = vpop.f32.mrb[0].mxu0
    %v1429 = vpop.f32.mrb[0].mxu0
    %1430 = vdwg.mxu0
    %v1431 = vsel %vm1062, %v1104, -inf
    %1432 = vmax.xlane.f32.xlu0 %v1431
    %v1433 = vpop.xlane.xlu0 %1432
    %v1434 = vsel %vm1062, %v1150, -inf
    %1435 = vmax.xlane.f32.xlu0 %v1434
    %v1436 = vpop.xlane.xlu0 %1435
    %v1437 = vsel %vm1062, %v1196, -inf
    %1438 = vmax.xlane.f32.xlu0 %v1437
    %v1439 = vpop.xlane.xlu0 %1438
    %v1440 = vsel %vm1062, %v1242, -inf
    %1441 = vmax.xlane.f32.xlu0 %v1440
    %v1442 = vpop.xlane.xlu0 %1441
    %v1443 = vsel %vm1062, %v1288, -inf
    %1444 = vmax.xlane.f32.xlu0 %v1443
    %v1445 = vpop.xlane.xlu0 %1444
    %v1446 = vsel %vm1062, %v1334, -inf
    %1447 = vmax.xlane.f32.xlu0 %v1446
    %v1448 = vpop.xlane.xlu0 %1447
    %v1449 = vsel %vm1062, %v1380, -inf
    %1450 = vmax.xlane.f32.xlu0 %v1449
    %v1451 = vpop.xlane.xlu0 %1450
    %v1452 = vsel %vm1062, %v1426, -inf
    %1453 = vmax.xlane.f32.xlu0 %v1452
    %v1454 = vpop.xlane.xlu0 %1453
    %v1455 = vsub.f32 %v1104, %v1433
    %v1456 = vsub.f32 %v1150, %v1436
    %v1457 = vsub.f32 %v1196, %v1439
    %v1458 = vsub.f32 %v1242, %v1442
    %v1459 = vsub.f32 %v1288, %v1445
    %v1460 = vsub.f32 %v1334, %v1448
    %v1461 = vsub.f32 %v1380, %v1451
    %v1462 = vsub.f32 %v1426, %v1454
    %v1463 = vmul.f32 %v1455, 1.442695
    %v1464 = vpow.pop %v1463
    %v1465 = vmul.f32 %v1456, 1.442695
    %v1466 = vpow.pop %v1465
    %v1467 = vmul.f32 %v1457, 1.442695
    %v1468 = vpow.pop %v1467
    %v1469 = vmul.f32 %v1458, 1.442695
    %v1470 = vpow.pop %v1469
    %v1471 = vmul.f32 %v1459, 1.442695
    %v1472 = vpow.pop %v1471
    %v1473 = vmul.f32 %v1460, 1.442695
    %v1474 = vpow.pop %v1473
    %v1475 = vmul.f32 %v1461, 1.442695
    %v1476 = vpow.pop %v1475
    %v1477 = vmul.f32 %v1462, 1.442695
    %v1478 = vpow.pop %v1477
    %v1479 = vsel %vm1062, %v1464, 0.0
    %1480 = vadd.xlane.f32.xlu0 %v1479
    %v1481 = vpop.xlane.xlu0 %1480
    %v1482 = vsel %vm1062, %v1466, 0.0
    %1483 = vadd.xlane.f32.xlu0 %v1482
    %v1484 = vpop.xlane.xlu0 %1483
    %v1485 = vsel %vm1062, %v1468, 0.0
    %1486 = vadd.xlane.f32.xlu0 %v1485
    %v1487 = vpop.xlane.xlu0 %1486
    %v1488 = vsel %vm1062, %v1470, 0.0
    %1489 = vadd.xlane.f32.xlu0 %v1488
    %v1490 = vpop.xlane.xlu0 %1489
    %v1491 = vsel %vm1062, %v1472, 0.0
    %1492 = vadd.xlane.f32.xlu0 %v1491
    %v1493 = vpop.xlane.xlu0 %1492
    %v1494 = vsel %vm1062, %v1474, 0.0
    %1495 = vadd.xlane.f32.xlu0 %v1494
    %v1496 = vpop.xlane.xlu0 %1495
    %v1497 = vsel %vm1062, %v1476, 0.0
    %1498 = vadd.xlane.f32.xlu0 %v1497
    %v1499 = vpop.xlane.xlu0 %1498
    %v1500 = vsel %vm1062, %v1478, 0.0
    %1501 = vadd.xlane.f32.xlu0 %v1500
    %v1502 = vpop.xlane.xlu0 %1501
    %v1503 = vrcp.pop %v1481
    %v1504 = vmul.f32 %v1464, %v1503
    %v1505 = vrcp.pop %v1484
    %v1506 = vmul.f32 %v1466, %v1505
    %v1507 = vrcp.pop %v1487
    %v1508 = vmul.f32 %v1468, %v1507
    %v1509 = vrcp.pop %v1490
    %v1510 = vmul.f32 %v1470, %v1509
    %v1511 = vrcp.pop %v1493
    %v1512 = vmul.f32 %v1472, %v1511
    %v1513 = vrcp.pop %v1496
    %v1514 = vmul.f32 %v1474, %v1513
    %v1515 = vrcp.pop %v1499
    %v1516 = vmul.f32 %v1476, %v1515
    %v1517 = vrcp.pop %v1502
    %v1518 = vmul.f32 %v1478, %v1517
    %v1519 = vpack.c.bf16 %v1504, %v1504
    %v1520 = vpack.c.bf16 %v1506, %v1506
    %v1521 = vpack.c.bf16 %v1508, %v1508
    %v1522 = vpack.c.bf16 %v1510, %v1510
    %v1523 = vpack.c.bf16 %v1512, %v1512
    %v1524 = vpack.c.bf16 %v1514, %v1514
    %v1525 = vpack.c.bf16 %v1516, %v1516
    %v1526 = vpack.c.bf16 %v1518, %v1518
    %v1528 = vsel %vm1062, %v1519, 0
    %vm1530 = vcmask 1043456
    %v1532 = vsel %vm1530, %v1054, 0
    %1534 = vmatprep.subr.bf16.mxu0 0
    %1535 = vmatpush1.bf16.msra.mxu0 %v1532
    %1536 = vmatprep.subr.bf16.mxu0 0
    %1537 = vmatpush1.bf16.msra.mxu0 0
    %1538 = vmatprep.subr.bf16.mxu0 0
    %1539 = vmatpush1.bf16.msra.mxu0 0
    %1540 = vmatprep.subr.bf16.mxu0 0
    %1541 = vmatpush1.bf16.msra.mxu0 0
    %1542 = vmatprep.subr.bf16.mxu0 0
    %1543 = vmatpush1.bf16.msra.mxu0 0
    %1544 = vmatprep.subr.bf16.mxu0 0
    %1545 = vmatpush1.bf16.msra.mxu0 0
    %1546 = vmatprep.subr.bf16.mxu0 0
    %1547 = vmatpush1.bf16.msra.mxu0 0
    %1548 = vmatprep.subr.bf16.mxu0 0
    %1549 = vmatpush1.bf16.msra.mxu0 0
    %1550 = vmatprep.subr.bf16.mxu0 0
    %1551 = vmatpush1.bf16.msra.mxu0 0
    %1552 = vmatprep.subr.bf16.mxu0 0
    %1553 = vmatpush1.bf16.msra.mxu0 0
    %1554 = vmatprep.subr.bf16.mxu0 0
    %1555 = vmatpush1.bf16.msra.mxu0 0
    %1556 = vmatprep.subr.bf16.mxu0 0
    %1557 = vmatpush1.bf16.msra.mxu0 0
    %1558 = vmatprep.subr.bf16.mxu0 0
    %1559 = vmatpush1.bf16.msra.mxu0 0
    %1560 = vmatprep.subr.bf16.mxu0 0
    %1561 = vmatpush1.bf16.msra.mxu0 0
    %1562 = vmatprep.subr.bf16.mxu0 0
    %1563 = vmatpush1.bf16.msra.mxu0 0
    %1564 = vmatprep.subr.bf16.mxu0 0
    %1565 = vmatpush1.bf16.msra.mxu0 0
    %1566 = vmatprep.mubr.bf16.mxu0 0
    %1567 = vmatmul.mubr.bf16.gmra.mrb[0].mxu0 %v1528
    %v1568 = vpop.f32.mrb[0].mxu0
    %v1569 = vadd.f32 0.0, %v1568
    %v1570 = vpop.f32.mrb[0].mxu0
    %v1571 = vpop.f32.mrb[0].mxu0
    %v1572 = vpop.f32.mrb[0].mxu0
    %1573 = vdwg.mxu0
    %v1575 = vsel %vm1062, %v1520, 0
    %v1578 = vsel %vm1530, %v1055, 0
    %1580 = vmatprep.subr.bf16.mxu0 0
    %1581 = vmatpush1.bf16.msra.mxu0 %v1578
    %1582 = vmatprep.subr.bf16.mxu0 0
    %1583 = vmatpush1.bf16.msra.mxu0 0
    %1584 = vmatprep.subr.bf16.mxu0 0
    %1585 = vmatpush1.bf16.msra.mxu0 0
    %1586 = vmatprep.subr.bf16.mxu0 0
    %1587 = vmatpush1.bf16.msra.mxu0 0
    %1588 = vmatprep.subr.bf16.mxu0 0
    %1589 = vmatpush1.bf16.msra.mxu0 0
    %1590 = vmatprep.subr.bf16.mxu0 0
    %1591 = vmatpush1.bf16.msra.mxu0 0
    %1592 = vmatprep.subr.bf16.mxu0 0
    %1593 = vmatpush1.bf16.msra.mxu0 0
    %1594 = vmatprep.subr.bf16.mxu0 0
    %1595 = vmatpush1.bf16.msra.mxu0 0
    %1596 = vmatprep.subr.bf16.mxu0 0
    %1597 = vmatpush1.bf16.msra.mxu0 0
    %1598 = vmatprep.subr.bf16.mxu0 0
    %1599 = vmatpush1.bf16.msra.mxu0 0
    %1600 = vmatprep.subr.bf16.mxu0 0
    %1601 = vmatpush1.bf16.msra.mxu0 0
    %1602 = vmatprep.subr.bf16.mxu0 0
    %1603 = vmatpush1.bf16.msra.mxu0 0
    %1604 = vmatprep.subr.bf16.mxu0 0
    %1605 = vmatpush1.bf16.msra.mxu0 0
    %1606 = vmatprep.subr.bf16.mxu0 0
    %1607 = vmatpush1.bf16.msra.mxu0 0
    %1608 = vmatprep.subr.bf16.mxu0 0
    %1609 = vmatpush1.bf16.msra.mxu0 0
    %1610 = vmatprep.subr.bf16.mxu0 0
    %1611 = vmatpush1.bf16.msra.mxu0 0
    %1612 = vmatprep.mubr.bf16.mxu0 0
    %1613 = vmatmul.mubr.bf16.gmra.mrb[0].mxu0 %v1575
    %v1614 = vpop.f32.mrb[0].mxu0
    %v1615 = vadd.f32 0.0, %v1614
    %v1616 = vpop.f32.mrb[0].mxu0
    %v1617 = vpop.f32.mrb[0].mxu0
    %v1618 = vpop.f32.mrb[0].mxu0
    %1619 = vdwg.mxu0
    %v1621 = vsel %vm1062, %v1521, 0
    %v1624 = vsel %vm1530, %v1056, 0
    %1626 = vmatprep.subr.bf16.mxu0 0
    %1627 = vmatpush1.bf16.msra.mxu0 %v1624
    %1628 = vmatprep.subr.bf16.mxu0 0
    %1629 = vmatpush1.bf16.msra.mxu0 0
    %1630 = vmatprep.subr.bf16.mxu0 0
    %1631 = vmatpush1.bf16.msra.mxu0 0
    %1632 = vmatprep.subr.bf16.mxu0 0
    %1633 = vmatpush1.bf16.msra.mxu0 0
    %1634 = vmatprep.subr.bf16.mxu0 0
    %1635 = vmatpush1.bf16.msra.mxu0 0
    %1636 = vmatprep.subr.bf16.mxu0 0
    %1637 = vmatpush1.bf16.msra.mxu0 0
    %1638 = vmatprep.subr.bf16.mxu0 0
    %1639 = vmatpush1.bf16.msra.mxu0 0
    %1640 = vmatprep.subr.bf16.mxu0 0
    %1641 = vmatpush1.bf16.msra.mxu0 0
    %1642 = vmatprep.subr.bf16.mxu0 0
    %1643 = vmatpush1.bf16.msra.mxu0 0
    %1644 = vmatprep.subr.bf16.mxu0 0
    %1645 = vmatpush1.bf16.msra.mxu0 0
    %1646 = vmatprep.subr.bf16.mxu0 0
    %1647 = vmatpush1.bf16.msra.mxu0 0
    %1648 = vmatprep.subr.bf16.mxu0 0
    %1649 = vmatpush1.bf16.msra.mxu0 0
    %1650 = vmatprep.subr.bf16.mxu0 0
    %1651 = vmatpush1.bf16.msra.mxu0 0
    %1652 = vmatprep.subr.bf16.mxu0 0
    %1653 = vmatpush1.bf16.msra.mxu0 0
    %1654 = vmatprep.subr.bf16.mxu0 0
    %1655 = vmatpush1.bf16.msra.mxu0 0
    %1656 = vmatprep.subr.bf16.mxu0 0
    %1657 = vmatpush1.bf16.msra.mxu0 0
    %1658 = vmatprep.mubr.bf16.mxu0 0
    %1659 = vmatmul.mubr.bf16.gmra.mrb[0].mxu0 %v1621
    %v1660 = vpop.f32.mrb[0].mxu0
    %v1661 = vadd.f32 0.0, %v1660
    %v1662 = vpop.f32.mrb[0].mxu0
    %v1663 = vpop.f32.mrb[0].mxu0
    %v1664 = vpop.f32.mrb[0].mxu0
    %1665 = vdwg.mxu0
    %v1667 = vsel %vm1062, %v1522, 0
    %v1670 = vsel %vm1530, %v1057, 0
    %1672 = vmatprep.subr.bf16.mxu0 0
    %1673 = vmatpush1.bf16.msra.mxu0 %v1670
    %1674 = vmatprep.subr.bf16.mxu0 0
    %1675 = vmatpush1.bf16.msra.mxu0 0
    %1676 = vmatprep.subr.bf16.mxu0 0
    %1677 = vmatpush1.bf16.msra.mxu0 0
    %1678 = vmatprep.subr.bf16.mxu0 0
    %1679 = vmatpush1.bf16.msra.mxu0 0
    %1680 = vmatprep.subr.bf16.mxu0 0
    %1681 = vmatpush1.bf16.msra.mxu0 0
    %1682 = vmatprep.subr.bf16.mxu0 0
    %1683 = vmatpush1.bf16.msra.mxu0 0
    %1684 = vmatprep.subr.bf16.mxu0 0
    %1685 = vmatpush1.bf16.msra.mxu0 0
    %1686 = vmatprep.subr.bf16.mxu0 0
    %1687 = vmatpush1.bf16.msra.mxu0 0
    %1688 = vmatprep.subr.bf16.mxu0 0
    %1689 = vmatpush1.bf16.msra.mxu0 0
    %1690 = vmatprep.subr.bf16.mxu0 0
    %1691 = vmatpush1.bf16.msra.mxu0 0
    %1692 = vmatprep.subr.bf16.mxu0 0
    %1693 = vmatpush1.bf16.msra.mxu0 0
    %1694 = vmatprep.subr.bf16.mxu0 0
    %1695 = vmatpush1.bf16.msra.mxu0 0
    %1696 = vmatprep.subr.bf16.mxu0 0
    %1697 = vmatpush1.bf16.msra.mxu0 0
    %1698 = vmatprep.subr.bf16.mxu0 0
    %1699 = vmatpush1.bf16.msra.mxu0 0
    %1700 = vmatprep.subr.bf16.mxu0 0
    %1701 = vmatpush1.bf16.msra.mxu0 0
    %1702 = vmatprep.subr.bf16.mxu0 0
    %1703 = vmatpush1.bf16.msra.mxu0 0
    %1704 = vmatprep.mubr.bf16.mxu0 0
    %1705 = vmatmul.mubr.bf16.gmra.mrb[0].mxu0 %v1667
    %v1706 = vpop.f32.mrb[0].mxu0
    %v1707 = vadd.f32 0.0, %v1706
    %v1708 = vpop.f32.mrb[0].mxu0
    %v1709 = vpop.f32.mrb[0].mxu0
    %v1710 = vpop.f32.mrb[0].mxu0
    %1711 = vdwg.mxu0
    %v1713 = vsel %vm1062, %v1523, 0
    %v1716 = vsel %vm1530, %v1058, 0
    %1718 = vmatprep.subr.bf16.mxu0 0
    %1719 = vmatpush1.bf16.msra.mxu0 %v1716
    %1720 = vmatprep.subr.bf16.mxu0 0
    %1721 = vmatpush1.bf16.msra.mxu0 0
    %1722 = vmatprep.subr.bf16.mxu0 0
    %1723 = vmatpush1.bf16.msra.mxu0 0
    %1724 = vmatprep.subr.bf16.mxu0 0
    %1725 = vmatpush1.bf16.msra.mxu0 0
    %1726 = vmatprep.subr.bf16.mxu0 0
    %1727 = vmatpush1.bf16.msra.mxu0 0
    %1728 = vmatprep.subr.bf16.mxu0 0
    %1729 = vmatpush1.bf16.msra.mxu0 0
    %1730 = vmatprep.subr.bf16.mxu0 0
    %1731 = vmatpush1.bf16.msra.mxu0 0
    %1732 = vmatprep.subr.bf16.mxu0 0
    %1733 = vmatpush1.bf16.msra.mxu0 0
    %1734 = vmatprep.subr.bf16.mxu0 0
    %1735 = vmatpush1.bf16.msra.mxu0 0
    %1736 = vmatprep.subr.bf16.mxu0 0
    %1737 = vmatpush1.bf16.msra.mxu0 0
    %1738 = vmatprep.subr.bf16.mxu0 0
    %1739 = vmatpush1.bf16.msra.mxu0 0
    %1740 = vmatprep.subr.bf16.mxu0 0
    %1741 = vmatpush1.bf16.msra.mxu0 0
    %1742 = vmatprep.subr.bf16.mxu0 0
    %1743 = vmatpush1.bf16.msra.mxu0 0
    %1744 = vmatprep.subr.bf16.mxu0 0
    %1745 = vmatpush1.bf16.msra.mxu0 0
    %1746 = vmatprep.subr.bf16.mxu0 0
    %1747 = vmatpush1.bf16.msra.mxu0 0
    %1748 = vmatprep.subr.bf16.mxu0 0
    %1749 = vmatpush1.bf16.msra.mxu0 0
    %1750 = vmatprep.mubr.bf16.mxu0 0
    %1751 = vmatmul.mubr.bf16.gmra.mrb[0].mxu0 %v1713
    %v1752 = vpop.f32.mrb[0].mxu0
    %v1753 = vadd.f32 0.0, %v1752
    %v1754 = vpop.f32.mrb[0].mxu0
    %v1755 = vpop.f32.mrb[0].mxu0
    %v1756 = vpop.f32.mrb[0].mxu0
    %1757 = vdwg.mxu0
    %v1759 = vsel %vm1062, %v1524, 0
    %v1762 = vsel %vm1530, %v1059, 0
    %1764 = vmatprep.subr.bf16.mxu0 0
    %1765 = vmatpush1.bf16.msra.mxu0 %v1762
    %1766 = vmatprep.subr.bf16.mxu0 0
    %1767 = vmatpush1.bf16.msra.mxu0 0
    %1768 = vmatprep.subr.bf16.mxu0 0
    %1769 = vmatpush1.bf16.msra.mxu0 0
    %1770 = vmatprep.subr.bf16.mxu0 0
    %1771 = vmatpush1.bf16.msra.mxu0 0
    %1772 = vmatprep.subr.bf16.mxu0 0
    %1773 = vmatpush1.bf16.msra.mxu0 0
    %1774 = vmatprep.subr.bf16.mxu0 0
    %1775 = vmatpush1.bf16.msra.mxu0 0
    %1776 = vmatprep.subr.bf16.mxu0 0
    %1777 = vmatpush1.bf16.msra.mxu0 0
    %1778 = vmatprep.subr.bf16.mxu0 0
    %1779 = vmatpush1.bf16.msra.mxu0 0
    %1780 = vmatprep.subr.bf16.mxu0 0
    %1781 = vmatpush1.bf16.msra.mxu0 0
    %1782 = vmatprep.subr.bf16.mxu0 0
    %1783 = vmatpush1.bf16.msra.mxu0 0
    %1784 = vmatprep.subr.bf16.mxu0 0
    %1785 = vmatpush1.bf16.msra.mxu0 0
    %1786 = vmatprep.subr.bf16.mxu0 0
    %1787 = vmatpush1.bf16.msra.mxu0 0
    %1788 = vmatprep.subr.bf16.mxu0 0
    %1789 = vmatpush1.bf16.msra.mxu0 0
    %1790 = vmatprep.subr.bf16.mxu0 0
    %1791 = vmatpush1.bf16.msra.mxu0 0
    %1792 = vmatprep.subr.bf16.mxu0 0
    %1793 = vmatpush1.bf16.msra.mxu0 0
    %1794 = vmatprep.subr.bf16.mxu0 0
    %1795 = vmatpush1.bf16.msra.mxu0 0
    %1796 = vmatprep.mubr.bf16.mxu0 0
    %1797 = vmatmul.mubr.bf16.gmra.mrb[0].mxu0 %v1759
    %v1798 = vpop.f32.mrb[0].mxu0
    %v1799 = vadd.f32 0.0, %v1798
    %v1800 = vpop.f32.mrb[0].mxu0
    %v1801 = vpop.f32.mrb[0].mxu0
    %v1802 = vpop.f32.mrb[0].mxu0
    %1803 = vdwg.mxu0
    %v1805 = vsel %vm1062, %v1525, 0
    %v1808 = vsel %vm1530, %v1060, 0
    %1810 = vmatprep.subr.bf16.mxu0 0
    %1811 = vmatpush1.bf16.msra.mxu0 %v1808
    %1812 = vmatprep.subr.bf16.mxu0 0
    %1813 = vmatpush1.bf16.msra.mxu0 0
    %1814 = vmatprep.subr.bf16.mxu0 0
    %1815 = vmatpush1.bf16.msra.mxu0 0
    %1816 = vmatprep.subr.bf16.mxu0 0
    %1817 = vmatpush1.bf16.msra.mxu0 0
    %1818 = vmatprep.subr.bf16.mxu0 0
    %1819 = vmatpush1.bf16.msra.mxu0 0
    %1820 = vmatprep.subr.bf16.mxu0 0
    %1821 = vmatpush1.bf16.msra.mxu0 0
    %1822 = vmatprep.subr.bf16.mxu0 0
    %1823 = vmatpush1.bf16.msra.mxu0 0
    %1824 = vmatprep.subr.bf16.mxu0 0
    %1825 = vmatpush1.bf16.msra.mxu0 0
    %1826 = vmatprep.subr.bf16.mxu0 0
    %1827 = vmatpush1.bf16.msra.mxu0 0
    %1828 = vmatprep.subr.bf16.mxu0 0
    %1829 = vmatpush1.bf16.msra.mxu0 0
    %1830 = vmatprep.subr.bf16.mxu0 0
    %1831 = vmatpush1.bf16.msra.mxu0 0
    %1832 = vmatprep.subr.bf16.mxu0 0
    %1833 = vmatpush1.bf16.msra.mxu0 0
    %1834 = vmatprep.subr.bf16.mxu0 0
    %1835 = vmatpush1.bf16.msra.mxu0 0
    %1836 = vmatprep.subr.bf16.mxu0 0
    %1837 = vmatpush1.bf16.msra.mxu0 0
    %1838 = vmatprep.subr.bf16.mxu0 0
    %1839 = vmatpush1.bf16.msra.mxu0 0
    %1840 = vmatprep.subr.bf16.mxu0 0
    %1841 = vmatpush1.bf16.msra.mxu0 0
    %1842 = vmatprep.mubr.bf16.mxu0 0
    %1843 = vmatmul.mubr.bf16.gmra.mrb[0].mxu0 %v1805
    %v1844 = vpop.f32.mrb[0].mxu0
    %v1845 = vadd.f32 0.0, %v1844
    %v1846 = vpop.f32.mrb[0].mxu0
    %v1847 = vpop.f32.mrb[0].mxu0
    %v1848 = vpop.f32.mrb[0].mxu0
    %1849 = vdwg.mxu0
    %v1851 = vsel %vm1062, %v1526, 0
    %v1854 = vsel %vm1530, %v1061, 0
    %1856 = vmatprep.subr.bf16.mxu0 0
    %1857 = vmatpush1.bf16.msra.mxu0 %v1854
    %1858 = vmatprep.subr.bf16.mxu0 0
    %1859 = vmatpush1.bf16.msra.mxu0 0
    %1860 = vmatprep.subr.bf16.mxu0 0
    %1861 = vmatpush1.bf16.msra.mxu0 0
    %1862 = vmatprep.subr.bf16.mxu0 0
    %1863 = vmatpush1.bf16.msra.mxu0 0
    %1864 = vmatprep.subr.bf16.mxu0 0
    %1865 = vmatpush1.bf16.msra.mxu0 0
    %1866 = vmatprep.subr.bf16.mxu0 0
    %1867 = vmatpush1.bf16.msra.mxu0 0
    %1868 = vmatprep.subr.bf16.mxu0 0
    %1869 = vmatpush1.bf16.msra.mxu0 0
    %1870 = vmatprep.subr.bf16.mxu0 0
    %1871 = vmatpush1.bf16.msra.mxu0 0
    %1872 = vmatprep.subr.bf16.mxu0 0
    %1873 = vmatpush1.bf16.msra.mxu0 0
    %1874 = vmatprep.subr.bf16.mxu0 0
    %1875 = vmatpush1.bf16.msra.mxu0 0
    %1876 = vmatprep.subr.bf16.mxu0 0
    %1877 = vmatpush1.bf16.msra.mxu0 0
    %1878 = vmatprep.subr.bf16.mxu0 0
    %1879 = vmatpush1.bf16.msra.mxu0 0
    %1880 = vmatprep.subr.bf16.mxu0 0
    %1881 = vmatpush1.bf16.msra.mxu0 0
    %1882 = vmatprep.subr.bf16.mxu0 0
    %1883 = vmatpush1.bf16.msra.mxu0 0
    %1884 = vmatprep.subr.bf16.mxu0 0
    %1885 = vmatpush1.bf16.msra.mxu0 0
    %1886 = vmatprep.subr.bf16.mxu0 0
    %1887 = vmatpush1.bf16.msra.mxu0 0
    %1888 = vmatprep.mubr.bf16.mxu0 0
    %1889 = vmatmul.mubr.bf16.gmra.mrb[0].mxu0 %v1851
    %v1890 = vpop.f32.mrb[0].mxu0
    %v1891 = vadd.f32 0.0, %v1890
    %v1892 = vpop.f32.mrb[0].mxu0
    %v1893 = vpop.f32.mrb[0].mxu0
    %v1894 = vpop.f32.mrb[0].mxu0
    %1895 = vdwg.mxu0
    %v1896 = vcombine.low %v1569, %v1661
    %v1897 = vcombine.high %v1569, %v1661
    %v1899 = vunpack.c.l.s4 1983009808
    %v1900 = vunpack.c.0.s8 %v1899
    %v1901 = vlaneseq
    %v1902 = vshrl.u32 %v1901, 7
    %v1903 = vsub.s32 %v1900, %v1902
    %v1904 = vrot.slane %v1896, %v1903
    %v1906 = vunpack.c.l.s4 1983009808
    %v1907 = vunpack.c.0.s8 %v1906
    %v1908 = vlaneseq
    %v1909 = vshrl.u32 %v1908, 7
    %v1910 = vsub.s32 %v1907, %v1909
    %v1911 = vrot.slane %v1897, %v1910
    %v1912 = vcombine.low %v1615, %v1707
    %v1913 = vcombine.high %v1615, %v1707
    %v1915 = vunpack.c.l.s4 1983009808
    %v1916 = vunpack.c.0.s8 %v1915
    %v1917 = vlaneseq
    %v1918 = vshrl.u32 %v1917, 7
    %v1919 = vsub.s32 %v1916, %v1918
    %v1920 = vrot.slane %v1912, %v1919
    %v1922 = vunpack.c.l.s4 1983009808
    %v1923 = vunpack.c.0.s8 %v1922
    %v1924 = vlaneseq
    %v1925 = vshrl.u32 %v1924, 7
    %v1926 = vsub.s32 %v1923, %v1925
    %v1927 = vrot.slane %v1913, %v1926
    %v1928 = vcombine.low %v1753, %v1845
    %v1929 = vcombine.high %v1753, %v1845
    %v1931 = vunpack.c.l.s4 1983009808
    %v1932 = vunpack.c.0.s8 %v1931
    %v1933 = vlaneseq
    %v1934 = vshrl.u32 %v1933, 7
    %v1935 = vsub.s32 %v1932, %v1934
    %v1936 = vrot.slane %v1928, %v1935
    %v1938 = vunpack.c.l.s4 1983009808
    %v1939 = vunpack.c.0.s8 %v1938
    %v1940 = vlaneseq
    %v1941 = vshrl.u32 %v1940, 7
    %v1942 = vsub.s32 %v1939, %v1941
    %v1943 = vrot.slane %v1929, %v1942
    %v1944 = vcombine.low %v1799, %v1891
    %v1945 = vcombine.high %v1799, %v1891
    %v1947 = vunpack.c.l.s4 1983009808
    %v1948 = vunpack.c.0.s8 %v1947
    %v1949 = vlaneseq
    %v1950 = vshrl.u32 %v1949, 7
    %v1951 = vsub.s32 %v1948, %v1950
    %v1952 = vrot.slane %v1944, %v1951
    %v1954 = vunpack.c.l.s4 1983009808
    %v1955 = vunpack.c.0.s8 %v1954
    %v1956 = vlaneseq
    %v1957 = vshrl.u32 %v1956, 7
    %v1958 = vsub.s32 %v1955, %v1957
    %v1959 = vrot.slane %v1945, %v1958
    %v1960 = vcombine.low %v1904, %v1920
    %v1961 = vcombine.high %v1904, %v1920
    %v1963 = vunpack.c.l.s4 1934713408
    %v1964 = vunpack.c.0.s8 %v1963
    %v1965 = vlaneseq
    %v1966 = vshrl.u32 %v1965, 7
    %v1967 = vsub.s32 %v1964, %v1966
    %v1968 = vrot.slane %v1960, %v1967
    %v1970 = vunpack.c.l.s4 1934713408
    %v1971 = vunpack.c.0.s8 %v1970
    %v1972 = vlaneseq
    %v1973 = vshrl.u32 %v1972, 7
    %v1974 = vsub.s32 %v1971, %v1973
    %v1975 = vrot.slane %v1961, %v1974
    %v1976 = vcombine.low %v1911, %v1927
    %v1977 = vcombine.high %v1911, %v1927
    %v1979 = vunpack.c.l.s4 1934713408
    %v1980 = vunpack.c.0.s8 %v1979
    %v1981 = vlaneseq
    %v1982 = vshrl.u32 %v1981, 7
    %v1983 = vsub.s32 %v1980, %v1982
    %v1984 = vrot.slane %v1976, %v1983
    %v1986 = vunpack.c.l.s4 1934713408
    %v1987 = vunpack.c.0.s8 %v1986
    %v1988 = vlaneseq
    %v1989 = vshrl.u32 %v1988, 7
    %v1990 = vsub.s32 %v1987, %v1989
    %v1991 = vrot.slane %v1977, %v1990
    %v1992 = vcombine.low %v1936, %v1952
    %v1993 = vcombine.high %v1936, %v1952
    %v1995 = vunpack.c.l.s4 1934713408
    %v1996 = vunpack.c.0.s8 %v1995
    %v1997 = vlaneseq
    %v1998 = vshrl.u32 %v1997, 7
    %v1999 = vsub.s32 %v1996, %v1998
    %v2000 = vrot.slane %v1992, %v1999
    %v2002 = vunpack.c.l.s4 1934713408
    %v2003 = vunpack.c.0.s8 %v2002
    %v2004 = vlaneseq
    %v2005 = vshrl.u32 %v2004, 7
    %v2006 = vsub.s32 %v2003, %v2005
    %v2007 = vrot.slane %v1993, %v2006
    %v2008 = vcombine.low %v1943, %v1959
    %v2009 = vcombine.high %v1943, %v1959
    %v2011 = vunpack.c.l.s4 1934713408
    %v2012 = vunpack.c.0.s8 %v2011
    %v2013 = vlaneseq
    %v2014 = vshrl.u32 %v2013, 7
    %v2015 = vsub.s32 %v2012, %v2014
    %v2016 = vrot.slane %v2008, %v2015
    %v2018 = vunpack.c.l.s4 1934713408
    %v2019 = vunpack.c.0.s8 %v2018
    %v2020 = vlaneseq
    %v2021 = vshrl.u32 %v2020, 7
    %v2022 = vsub.s32 %v2019, %v2021
    %v2023 = vrot.slane %v2009, %v2022
    %v2024 = vcombine.low %v1968, %v2000
    %v2025 = vcombine.high %v1968, %v2000
    %v2026 = vcombine.low %v1975, %v2007
    %v2027 = vcombine.high %v1975, %v2007
    %v2028 = vcombine.low %v1984, %v2016
    %v2029 = vcombine.high %v1984, %v2016
    %v2030 = vcombine.low %v1991, %v2023
    %v2031 = vcombine.high %v1991, %v2023
    %2033 = vrot.lane.b32.xlu0 %v150, 120
    %v2034 = vpop.permute.xlu0 %2033
    %2036 = vrot.lane.b32.xlu0 %v150, 112
    %v2037 = vpop.permute.xlu0 %2036
    %2039 = vrot.lane.b32.xlu0 %v150, 104
    %v2040 = vpop.permute.xlu0 %2039
    %2042 = vrot.lane.b32.xlu0 %v150, 96
    %v2043 = vpop.permute.xlu0 %2042
    %2045 = vrot.lane.b32.xlu0 %v150, 88
    %v2046 = vpop.permute.xlu0 %2045
    %2048 = vrot.lane.b32.xlu0 %v150, 80
    %v2049 = vpop.permute.xlu0 %2048
    %2051 = vrot.lane.b32.xlu0 %v150, 72
    %v2052 = vpop.permute.xlu0 %2051
    %v2054 = vcombine.low %v150, %v2037
    %v2055 = vcombine.high %v150, %v2037
    %v2057 = vunpack.c.l.s4 1983009808
    %v2058 = vunpack.c.0.s8 %v2057
    %v2059 = vlaneseq
    %v2060 = vshrl.u32 %v2059, 7
    %v2061 = vsub.s32 %v2058, %v2060
    %v2062 = vrot.slane %v2054, %v2061
    %v2064 = vunpack.c.l.s4 1983009808
    %v2065 = vunpack.c.0.s8 %v2064
    %v2066 = vlaneseq
    %v2067 = vshrl.u32 %v2066, 7
    %v2068 = vsub.s32 %v2065, %v2067
    %v2069 = vrot.slane %v2055, %v2068
    %v2070 = vcombine.low %v2034, %v2040
    %v2071 = vcombine.high %v2034, %v2040
    %v2073 = vunpack.c.l.s4 1983009808
    %v2074 = vunpack.c.0.s8 %v2073
    %v2075 = vlaneseq
    %v2076 = vshrl.u32 %v2075, 7
    %v2077 = vsub.s32 %v2074, %v2076
    %v2078 = vrot.slane %v2070, %v2077
    %v2080 = vunpack.c.l.s4 1983009808
    %v2081 = vunpack.c.0.s8 %v2080
    %v2082 = vlaneseq
    %v2083 = vshrl.u32 %v2082, 7
    %v2084 = vsub.s32 %v2081, %v2083
    %v2085 = vrot.slane %v2071, %v2084
    %v2086 = vcombine.low %v2043, %v2049
    %v2087 = vcombine.high %v2043, %v2049
    %v2089 = vunpack.c.l.s4 1983009808
    %v2090 = vunpack.c.0.s8 %v2089
    %v2091 = vlaneseq
    %v2092 = vshrl.u32 %v2091, 7
    %v2093 = vsub.s32 %v2090, %v2092
    %v2094 = vrot.slane %v2086, %v2093
    %v2096 = vunpack.c.l.s4 1983009808
    %v2097 = vunpack.c.0.s8 %v2096
    %v2098 = vlaneseq
    %v2099 = vshrl.u32 %v2098, 7
    %v2100 = vsub.s32 %v2097, %v2099
    %v2101 = vrot.slane %v2087, %v2100
    %v2102 = vcombine.low %v2046, %v2052
    %v2103 = vcombine.high %v2046, %v2052
    %v2105 = vunpack.c.l.s4 1983009808
    %v2106 = vunpack.c.0.s8 %v2105
    %v2107 = vlaneseq
    %v2108 = vshrl.u32 %v2107, 7
    %v2109 = vsub.s32 %v2106, %v2108
    %v2110 = vrot.slane %v2102, %v2109
    %v2112 = vunpack.c.l.s4 1983009808
    %v2113 = vunpack.c.0.s8 %v2112
    %v2114 = vlaneseq
    %v2115 = vshrl.u32 %v2114, 7
    %v2116 = vsub.s32 %v2113, %v2115
    %v2117 = vrot.slane %v2103, %v2116
    %v2118 = vcombine.low %v2062, %v2078
    %v2119 = vcombine.high %v2062, %v2078
    %v2121 = vunpack.c.l.s4 1934713408
    %v2122 = vunpack.c.0.s8 %v2121
    %v2123 = vlaneseq
    %v2124 = vshrl.u32 %v2123, 7
    %v2125 = vsub.s32 %v2122, %v2124
    %v2126 = vrot.slane %v2118, %v2125
    %v2128 = vunpack.c.l.s4 1934713408
    %v2129 = vunpack.c.0.s8 %v2128
    %v2130 = vlaneseq
    %v2131 = vshrl.u32 %v2130, 7
    %v2132 = vsub.s32 %v2129, %v2131
    %v2133 = vrot.slane %v2119, %v2132
    %v2134 = vcombine.low %v2069, %v2085
    %v2135 = vcombine.high %v2069, %v2085
    %v2137 = vunpack.c.l.s4 1934713408
    %v2138 = vunpack.c.0.s8 %v2137
    %v2139 = vlaneseq
    %v2140 = vshrl.u32 %v2139, 7
    %v2141 = vsub.s32 %v2138, %v2140
    %v2142 = vrot.slane %v2134, %v2141
    %v2144 = vunpack.c.l.s4 1934713408
    %v2145 = vunpack.c.0.s8 %v2144
    %v2146 = vlaneseq
    %v2147 = vshrl.u32 %v2146, 7
    %v2148 = vsub.s32 %v2145, %v2147
    %v2149 = vrot.slane %v2135, %v2148
    %v2150 = vcombine.low %v2094, %v2110
    %v2151 = vcombine.high %v2094, %v2110
    %v2153 = vunpack.c.l.s4 1934713408
    %v2154 = vunpack.c.0.s8 %v2153
    %v2155 = vlaneseq
    %v2156 = vshrl.u32 %v2155, 7
    %v2157 = vsub.s32 %v2154, %v2156
    %v2158 = vrot.slane %v2150, %v2157
    %v2160 = vunpack.c.l.s4 1934713408
    %v2161 = vunpack.c.0.s8 %v2160
    %v2162 = vlaneseq
    %v2163 = vshrl.u32 %v2162, 7
    %v2164 = vsub.s32 %v2161, %v2163
    %v2165 = vrot.slane %v2151, %v2164
    %v2166 = vcombine.low %v2101, %v2117
    %v2167 = vcombine.high %v2101, %v2117
    %v2169 = vunpack.c.l.s4 1934713408
    %v2170 = vunpack.c.0.s8 %v2169
    %v2171 = vlaneseq
    %v2172 = vshrl.u32 %v2171, 7
    %v2173 = vsub.s32 %v2170, %v2172
    %v2174 = vrot.slane %v2166, %v2173
    %v2176 = vunpack.c.l.s4 1934713408
    %v2177 = vunpack.c.0.s8 %v2176
    %v2178 = vlaneseq
    %v2179 = vshrl.u32 %v2178, 7
    %v2180 = vsub.s32 %v2177, %v2179
    %v2181 = vrot.slane %v2167, %v2180
    %v2182 = vcombine.low %v2126, %v2158
    %v2183 = vcombine.high %v2126, %v2158
    %v2184 = vcombine.low %v2133, %v2165
    %v2185 = vcombine.high %v2133, %v2165
    %v2186 = vcombine.low %v2142, %v2174
    %v2187 = vcombine.high %v2142, %v2174
    %v2188 = vcombine.low %v2149, %v2181
    %v2189 = vcombine.high %v2149, %v2181
    %v2190 = vcombine.low %v2182, %v2184
    %v2191 = vcombine.high %v2182, %v2184
    %v2193 = vunpack.c.l.s4 1983009808
    %v2194 = vunpack.c.0.s8 %v2193
    %v2195 = vlaneseq
    %v2196 = vshrl.u32 %v2195, 7
    %v2197 = vsub.s32 %v2194, %v2196
    %v2198 = vrot.slane %v2190, %v2197
    %v2200 = vunpack.c.l.s4 1983009808
    %v2201 = vunpack.c.0.s8 %v2200
    %v2202 = vlaneseq
    %v2203 = vshrl.u32 %v2202, 7
    %v2204 = vsub.s32 %v2201, %v2203
    %v2205 = vrot.slane %v2191, %v2204
    %v2206 = vcombine.low %v2183, %v2185
    %v2207 = vcombine.high %v2183, %v2185
    %v2209 = vunpack.c.l.s4 1983009808
    %v2210 = vunpack.c.0.s8 %v2209
    %v2211 = vlaneseq
    %v2212 = vshrl.u32 %v2211, 7
    %v2213 = vsub.s32 %v2210, %v2212
    %v2214 = vrot.slane %v2206, %v2213
    %v2216 = vunpack.c.l.s4 1983009808
    %v2217 = vunpack.c.0.s8 %v2216
    %v2218 = vlaneseq
    %v2219 = vshrl.u32 %v2218, 7
    %v2220 = vsub.s32 %v2217, %v2219
    %v2221 = vrot.slane %v2207, %v2220
    %v2222 = vcombine.low %v2186, %v2188
    %v2223 = vcombine.high %v2186, %v2188
    %v2225 = vunpack.c.l.s4 1983009808
    %v2226 = vunpack.c.0.s8 %v2225
    %v2227 = vlaneseq
    %v2228 = vshrl.u32 %v2227, 7
    %v2229 = vsub.s32 %v2226, %v2228
    %v2230 = vrot.slane %v2222, %v2229
    %v2232 = vunpack.c.l.s4 1983009808
    %v2233 = vunpack.c.0.s8 %v2232
    %v2234 = vlaneseq
    %v2235 = vshrl.u32 %v2234, 7
    %v2236 = vsub.s32 %v2233, %v2235
    %v2237 = vrot.slane %v2223, %v2236
    %v2238 = vcombine.low %v2187, %v2189
    %v2239 = vcombine.high %v2187, %v2189
    %v2241 = vunpack.c.l.s4 1983009808
    %v2242 = vunpack.c.0.s8 %v2241
    %v2243 = vlaneseq
    %v2244 = vshrl.u32 %v2243, 7
    %v2245 = vsub.s32 %v2242, %v2244
    %v2246 = vrot.slane %v2238, %v2245
    %v2248 = vunpack.c.l.s4 1983009808
    %v2249 = vunpack.c.0.s8 %v2248
    %v2250 = vlaneseq
    %v2251 = vshrl.u32 %v2250, 7
    %v2252 = vsub.s32 %v2249, %v2251
    %v2253 = vrot.slane %v2239, %v2252
    %v2254 = vcombine.low %v2198, %v2214
    %v2255 = vcombine.high %v2198, %v2214
    %v2257 = vunpack.c.l.s4 1934713408
    %v2258 = vunpack.c.0.s8 %v2257
    %v2259 = vlaneseq
    %v2260 = vshrl.u32 %v2259, 7
    %v2261 = vsub.s32 %v2258, %v2260
    %v2262 = vrot.slane %v2254, %v2261
    %v2264 = vunpack.c.l.s4 1934713408
    %v2265 = vunpack.c.0.s8 %v2264
    %v2266 = vlaneseq
    %v2267 = vshrl.u32 %v2266, 7
    %v2268 = vsub.s32 %v2265, %v2267
    %v2269 = vrot.slane %v2255, %v2268
    %v2270 = vcombine.low %v2205, %v2221
    %v2271 = vcombine.high %v2205, %v2221
    %v2273 = vunpack.c.l.s4 1934713408
    %v2274 = vunpack.c.0.s8 %v2273
    %v2275 = vlaneseq
    %v2276 = vshrl.u32 %v2275, 7
    %v2277 = vsub.s32 %v2274, %v2276
    %v2278 = vrot.slane %v2270, %v2277
    %v2280 = vunpack.c.l.s4 1934713408
    %v2281 = vunpack.c.0.s8 %v2280
    %v2282 = vlaneseq
    %v2283 = vshrl.u32 %v2282, 7
    %v2284 = vsub.s32 %v2281, %v2283
    %v2285 = vrot.slane %v2271, %v2284
    %v2286 = vcombine.low %v2230, %v2246
    %v2287 = vcombine.high %v2230, %v2246
    %v2289 = vunpack.c.l.s4 1934713408
    %v2290 = vunpack.c.0.s8 %v2289
    %v2291 = vlaneseq
    %v2292 = vshrl.u32 %v2291, 7
    %v2293 = vsub.s32 %v2290, %v2292
    %v2294 = vrot.slane %v2286, %v2293
    %v2296 = vunpack.c.l.s4 1934713408
    %v2297 = vunpack.c.0.s8 %v2296
    %v2298 = vlaneseq
    %v2299 = vshrl.u32 %v2298, 7
    %v2300 = vsub.s32 %v2297, %v2299
    %v2301 = vrot.slane %v2287, %v2300
    %v2302 = vcombine.low %v2237, %v2253
    %v2303 = vcombine.high %v2237, %v2253
    %v2305 = vunpack.c.l.s4 1934713408
    %v2306 = vunpack.c.0.s8 %v2305
    %v2307 = vlaneseq
    %v2308 = vshrl.u32 %v2307, 7
    %v2309 = vsub.s32 %v2306, %v2308
    %v2310 = vrot.slane %v2302, %v2309
    %v2312 = vunpack.c.l.s4 1934713408
    %v2313 = vunpack.c.0.s8 %v2312
    %v2314 = vlaneseq
    %v2315 = vshrl.u32 %v2314, 7
    %v2316 = vsub.s32 %v2313, %v2315
    %v2317 = vrot.slane %v2303, %v2316
    %v2318 = vcombine.low %v2262, %v2294
    %v2319 = vcombine.high %v2262, %v2294
    %v2320 = vcombine.low %v2269, %v2301
    %v2321 = vcombine.high %v2269, %v2301
    %v2322 = vcombine.low %v2278, %v2310
    %v2323 = vcombine.high %v2278, %v2310
    %v2324 = vcombine.low %v2285, %v2317
    %v2325 = vcombine.high %v2285, %v2317
    %v2326 = vpack.c.bf16 %v2318, %v2318
    %v2327 = vpack.c.bf16 %v2319, %v2319
    %v2328 = vpack.c.bf16 %v2320, %v2320
    %v2329 = vpack.c.bf16 %v2321, %v2321
    %v2330 = vpack.c.bf16 %v2322, %v2322
    %v2331 = vpack.c.bf16 %v2323, %v2323
    %v2332 = vpack.c.bf16 %v2324, %v2324
    %v2333 = vpack.c.bf16 %v2325, %v2325
    %2334 = vrot.lane.b32.xlu0 %v150, 64
    %v2335 = vpop.permute.xlu0 %2334
    %2336 = vrot.lane.b32.xlu0 %v2034, 64
    %v2337 = vpop.permute.xlu0 %2336
    %2338 = vrot.lane.b32.xlu0 %v2037, 64
    %v2339 = vpop.permute.xlu0 %2338
    %2340 = vrot.lane.b32.xlu0 %v2040, 64
    %v2341 = vpop.permute.xlu0 %2340
    %2342 = vrot.lane.b32.xlu0 %v2043, 64
    %v2343 = vpop.permute.xlu0 %2342
    %2344 = vrot.lane.b32.xlu0 %v2046, 64
    %v2345 = vpop.permute.xlu0 %2344
    %2346 = vrot.lane.b32.xlu0 %v2049, 64
    %v2347 = vpop.permute.xlu0 %2346
    %2348 = vrot.lane.b32.xlu0 %v2052, 64
    %v2349 = vpop.permute.xlu0 %2348
    %v2358 = vcombine.low %v2335, %v2339
    %v2359 = vcombine.high %v2335, %v2339
    %v2361 = vunpack.c.l.s4 1983009808
    %v2362 = vunpack.c.0.s8 %v2361
    %v2363 = vlaneseq
    %v2364 = vshrl.u32 %v2363, 7
    %v2365 = vsub.s32 %v2362, %v2364
    %v2366 = vrot.slane %v2358, %v2365
    %v2368 = vunpack.c.l.s4 1983009808
    %v2369 = vunpack.c.0.s8 %v2368
    %v2370 = vlaneseq
    %v2371 = vshrl.u32 %v2370, 7
    %v2372 = vsub.s32 %v2369, %v2371
    %v2373 = vrot.slane %v2359, %v2372
    %v2374 = vcombine.low %v2337, %v2341
    %v2375 = vcombine.high %v2337, %v2341
    %v2377 = vunpack.c.l.s4 1983009808
    %v2378 = vunpack.c.0.s8 %v2377
    %v2379 = vlaneseq
    %v2380 = vshrl.u32 %v2379, 7
    %v2381 = vsub.s32 %v2378, %v2380
    %v2382 = vrot.slane %v2374, %v2381
    %v2384 = vunpack.c.l.s4 1983009808
    %v2385 = vunpack.c.0.s8 %v2384
    %v2386 = vlaneseq
    %v2387 = vshrl.u32 %v2386, 7
    %v2388 = vsub.s32 %v2385, %v2387
    %v2389 = vrot.slane %v2375, %v2388
    %v2390 = vcombine.low %v2343, %v2347
    %v2391 = vcombine.high %v2343, %v2347
    %v2393 = vunpack.c.l.s4 1983009808
    %v2394 = vunpack.c.0.s8 %v2393
    %v2395 = vlaneseq
    %v2396 = vshrl.u32 %v2395, 7
    %v2397 = vsub.s32 %v2394, %v2396
    %v2398 = vrot.slane %v2390, %v2397
    %v2400 = vunpack.c.l.s4 1983009808
    %v2401 = vunpack.c.0.s8 %v2400
    %v2402 = vlaneseq
    %v2403 = vshrl.u32 %v2402, 7
    %v2404 = vsub.s32 %v2401, %v2403
    %v2405 = vrot.slane %v2391, %v2404
    %v2406 = vcombine.low %v2345, %v2349
    %v2407 = vcombine.high %v2345, %v2349
    %v2409 = vunpack.c.l.s4 1983009808
    %v2410 = vunpack.c.0.s8 %v2409
    %v2411 = vlaneseq
    %v2412 = vshrl.u32 %v2411, 7
    %v2413 = vsub.s32 %v2410, %v2412
    %v2414 = vrot.slane %v2406, %v2413
    %v2416 = vunpack.c.l.s4 1983009808
    %v2417 = vunpack.c.0.s8 %v2416
    %v2418 = vlaneseq
    %v2419 = vshrl.u32 %v2418, 7
    %v2420 = vsub.s32 %v2417, %v2419
    %v2421 = vrot.slane %v2407, %v2420
    %v2422 = vcombine.low %v2366, %v2382
    %v2423 = vcombine.high %v2366, %v2382
    %v2425 = vunpack.c.l.s4 1934713408
    %v2426 = vunpack.c.0.s8 %v2425
    %v2427 = vlaneseq
    %v2428 = vshrl.u32 %v2427, 7
    %v2429 = vsub.s32 %v2426, %v2428
    %v2430 = vrot.slane %v2422, %v2429
    %v2432 = vunpack.c.l.s4 1934713408
    %v2433 = vunpack.c.0.s8 %v2432
    %v2434 = vlaneseq
    %v2435 = vshrl.u32 %v2434, 7
    %v2436 = vsub.s32 %v2433, %v2435
    %v2437 = vrot.slane %v2423, %v2436
    %v2438 = vcombine.low %v2373, %v2389
    %v2439 = vcombine.high %v2373, %v2389
    %v2441 = vunpack.c.l.s4 1934713408
    %v2442 = vunpack.c.0.s8 %v2441
    %v2443 = vlaneseq
    %v2444 = vshrl.u32 %v2443, 7
    %v2445 = vsub.s32 %v2442, %v2444
    %v2446 = vrot.slane %v2438, %v2445
    %v2448 = vunpack.c.l.s4 1934713408
    %v2449 = vunpack.c.0.s8 %v2448
    %v2450 = vlaneseq
    %v2451 = vshrl.u32 %v2450, 7
    %v2452 = vsub.s32 %v2449, %v2451
    %v2453 = vrot.slane %v2439, %v2452
    %v2454 = vcombine.low %v2398, %v2414
    %v2455 = vcombine.high %v2398, %v2414
    %v2457 = vunpack.c.l.s4 1934713408
    %v2458 = vunpack.c.0.s8 %v2457
    %v2459 = vlaneseq
    %v2460 = vshrl.u32 %v2459, 7
    %v2461 = vsub.s32 %v2458, %v2460
    %v2462 = vrot.slane %v2454, %v2461
    %v2464 = vunpack.c.l.s4 1934713408
    %v2465 = vunpack.c.0.s8 %v2464
    %v2466 = vlaneseq
    %v2467 = vshrl.u32 %v2466, 7
    %v2468 = vsub.s32 %v2465, %v2467
    %v2469 = vrot.slane %v2455, %v2468
    %v2470 = vcombine.low %v2405, %v2421
    %v2471 = vcombine.high %v2405, %v2421
    %v2473 = vunpack.c.l.s4 1934713408
    %v2474 = vunpack.c.0.s8 %v2473
    %v2475 = vlaneseq
    %v2476 = vshrl.u32 %v2475, 7
    %v2477 = vsub.s32 %v2474, %v2476
    %v2478 = vrot.slane %v2470, %v2477
    %v2480 = vunpack.c.l.s4 1934713408
    %v2481 = vunpack.c.0.s8 %v2480
    %v2482 = vlaneseq
    %v2483 = vshrl.u32 %v2482, 7
    %v2484 = vsub.s32 %v2481, %v2483
    %v2485 = vrot.slane %v2471, %v2484
    %v2486 = vcombine.low %v2430, %v2462
    %v2487 = vcombine.high %v2430, %v2462
    %v2488 = vcombine.low %v2437, %v2469
    %v2489 = vcombine.high %v2437, %v2469
    %v2490 = vcombine.low %v2446, %v2478
    %v2491 = vcombine.high %v2446, %v2478
    %v2492 = vcombine.low %v2453, %v2485
    %v2493 = vcombine.high %v2453, %v2485
    %v2494 = vcombine.low %v2486, %v2488
    %v2495 = vcombine.high %v2486, %v2488
    %v2497 = vunpack.c.l.s4 1983009808
    %v2498 = vunpack.c.0.s8 %v2497
    %v2499 = vlaneseq
    %v2500 = vshrl.u32 %v2499, 7
    %v2501 = vsub.s32 %v2498, %v2500
    %v2502 = vrot.slane %v2494, %v2501
    %v2504 = vunpack.c.l.s4 1983009808
    %v2505 = vunpack.c.0.s8 %v2504
    %v2506 = vlaneseq
    %v2507 = vshrl.u32 %v2506, 7
    %v2508 = vsub.s32 %v2505, %v2507
    %v2509 = vrot.slane %v2495, %v2508
    %v2510 = vcombine.low %v2487, %v2489
    %v2511 = vcombine.high %v2487, %v2489
    %v2513 = vunpack.c.l.s4 1983009808
    %v2514 = vunpack.c.0.s8 %v2513
    %v2515 = vlaneseq
    %v2516 = vshrl.u32 %v2515, 7
    %v2517 = vsub.s32 %v2514, %v2516
    %v2518 = vrot.slane %v2510, %v2517
    %v2520 = vunpack.c.l.s4 1983009808
    %v2521 = vunpack.c.0.s8 %v2520
    %v2522 = vlaneseq
    %v2523 = vshrl.u32 %v2522, 7
    %v2524 = vsub.s32 %v2521, %v2523
    %v2525 = vrot.slane %v2511, %v2524
    %v2526 = vcombine.low %v2490, %v2492
    %v2527 = vcombine.high %v2490, %v2492
    %v2529 = vunpack.c.l.s4 1983009808
    %v2530 = vunpack.c.0.s8 %v2529
    %v2531 = vlaneseq
    %v2532 = vshrl.u32 %v2531, 7
    %v2533 = vsub.s32 %v2530, %v2532
    %v2534 = vrot.slane %v2526, %v2533
    %v2536 = vunpack.c.l.s4 1983009808
    %v2537 = vunpack.c.0.s8 %v2536
    %v2538 = vlaneseq
    %v2539 = vshrl.u32 %v2538, 7
    %v2540 = vsub.s32 %v2537, %v2539
    %v2541 = vrot.slane %v2527, %v2540
    %v2542 = vcombine.low %v2491, %v2493
    %v2543 = vcombine.high %v2491, %v2493
    %v2545 = vunpack.c.l.s4 1983009808
    %v2546 = vunpack.c.0.s8 %v2545
    %v2547 = vlaneseq
    %v2548 = vshrl.u32 %v2547, 7
    %v2549 = vsub.s32 %v2546, %v2548
    %v2550 = vrot.slane %v2542, %v2549
    %v2552 = vunpack.c.l.s4 1983009808
    %v2553 = vunpack.c.0.s8 %v2552
    %v2554 = vlaneseq
    %v2555 = vshrl.u32 %v2554, 7
    %v2556 = vsub.s32 %v2553, %v2555
    %v2557 = vrot.slane %v2543, %v2556
    %v2558 = vcombine.low %v2502, %v2518
    %v2559 = vcombine.high %v2502, %v2518
    %v2561 = vunpack.c.l.s4 1934713408
    %v2562 = vunpack.c.0.s8 %v2561
    %v2563 = vlaneseq
    %v2564 = vshrl.u32 %v2563, 7
    %v2565 = vsub.s32 %v2562, %v2564
    %v2566 = vrot.slane %v2558, %v2565
    %v2568 = vunpack.c.l.s4 1934713408
    %v2569 = vunpack.c.0.s8 %v2568
    %v2570 = vlaneseq
    %v2571 = vshrl.u32 %v2570, 7
    %v2572 = vsub.s32 %v2569, %v2571
    %v2573 = vrot.slane %v2559, %v2572
    %v2574 = vcombine.low %v2509, %v2525
    %v2575 = vcombine.high %v2509, %v2525
    %v2577 = vunpack.c.l.s4 1934713408
    %v2578 = vunpack.c.0.s8 %v2577
    %v2579 = vlaneseq
    %v2580 = vshrl.u32 %v2579, 7
    %v2581 = vsub.s32 %v2578, %v2580
    %v2582 = vrot.slane %v2574, %v2581
    %v2584 = vunpack.c.l.s4 1934713408
    %v2585 = vunpack.c.0.s8 %v2584
    %v2586 = vlaneseq
    %v2587 = vshrl.u32 %v2586, 7
    %v2588 = vsub.s32 %v2585, %v2587
    %v2589 = vrot.slane %v2575, %v2588
    %v2590 = vcombine.low %v2534, %v2550
    %v2591 = vcombine.high %v2534, %v2550
    %v2593 = vunpack.c.l.s4 1934713408
    %v2594 = vunpack.c.0.s8 %v2593
    %v2595 = vlaneseq
    %v2596 = vshrl.u32 %v2595, 7
    %v2597 = vsub.s32 %v2594, %v2596
    %v2598 = vrot.slane %v2590, %v2597
    %v2600 = vunpack.c.l.s4 1934713408
    %v2601 = vunpack.c.0.s8 %v2600
    %v2602 = vlaneseq
    %v2603 = vshrl.u32 %v2602, 7
    %v2604 = vsub.s32 %v2601, %v2603
    %v2605 = vrot.slane %v2591, %v2604
    %v2606 = vcombine.low %v2541, %v2557
    %v2607 = vcombine.high %v2541, %v2557
    %v2609 = vunpack.c.l.s4 1934713408
    %v2610 = vunpack.c.0.s8 %v2609
    %v2611 = vlaneseq
    %v2612 = vshrl.u32 %v2611, 7
    %v2613 = vsub.s32 %v2610, %v2612
    %v2614 = vrot.slane %v2606, %v2613
    %v2616 = vunpack.c.l.s4 1934713408
    %v2617 = vunpack.c.0.s8 %v2616
    %v2618 = vlaneseq
    %v2619 = vshrl.u32 %v2618, 7
    %v2620 = vsub.s32 %v2617, %v2619
    %v2621 = vrot.slane %v2607, %v2620
    %v2622 = vcombine.low %v2566, %v2598
    %v2623 = vcombine.high %v2566, %v2598
    %v2624 = vcombine.low %v2573, %v2605
    %v2625 = vcombine.high %v2573, %v2605
    %v2626 = vcombine.low %v2582, %v2614
    %v2627 = vcombine.high %v2582, %v2614
    %v2628 = vcombine.low %v2589, %v2621
    %v2629 = vcombine.high %v2589, %v2621
    %v2630 = vpack.c.bf16 %v2622, %v2622
    %v2631 = vpack.c.bf16 %v2623, %v2623
    %v2632 = vpack.c.bf16 %v2624, %v2624
    %v2633 = vpack.c.bf16 %v2625, %v2625
    %v2634 = vpack.c.bf16 %v2626, %v2626
    %v2635 = vpack.c.bf16 %v2627, %v2627
    %v2636 = vpack.c.bf16 %v2628, %v2628
    %v2637 = vpack.c.bf16 %v2629, %v2629
    %2639 = vrot.lane.b32.xlu0 %v152, 120
    %v2640 = vpop.permute.xlu0 %2639
    %2642 = vrot.lane.b32.xlu0 %v152, 112
    %v2643 = vpop.permute.xlu0 %2642
    %2645 = vrot.lane.b32.xlu0 %v152, 104
    %v2646 = vpop.permute.xlu0 %2645
    %2648 = vrot.lane.b32.xlu0 %v152, 96
    %v2649 = vpop.permute.xlu0 %2648
    %2651 = vrot.lane.b32.xlu0 %v152, 88
    %v2652 = vpop.permute.xlu0 %2651
    %2654 = vrot.lane.b32.xlu0 %v152, 80
    %v2655 = vpop.permute.xlu0 %2654
    %2657 = vrot.lane.b32.xlu0 %v152, 72
    %v2658 = vpop.permute.xlu0 %2657
    %v2660 = vcombine.low %v152, %v2643
    %v2661 = vcombine.high %v152, %v2643
    %v2663 = vunpack.c.l.s4 1983009808
    %v2664 = vunpack.c.0.s8 %v2663
    %v2665 = vlaneseq
    %v2666 = vshrl.u32 %v2665, 7
    %v2667 = vsub.s32 %v2664, %v2666
    %v2668 = vrot.slane %v2660, %v2667
    %v2670 = vunpack.c.l.s4 1983009808
    %v2671 = vunpack.c.0.s8 %v2670
    %v2672 = vlaneseq
    %v2673 = vshrl.u32 %v2672, 7
    %v2674 = vsub.s32 %v2671, %v2673
    %v2675 = vrot.slane %v2661, %v2674
    %v2676 = vcombine.low %v2640, %v2646
    %v2677 = vcombine.high %v2640, %v2646
    %v2679 = vunpack.c.l.s4 1983009808
    %v2680 = vunpack.c.0.s8 %v2679
    %v2681 = vlaneseq
    %v2682 = vshrl.u32 %v2681, 7
    %v2683 = vsub.s32 %v2680, %v2682
    %v2684 = vrot.slane %v2676, %v2683
    %v2686 = vunpack.c.l.s4 1983009808
    %v2687 = vunpack.c.0.s8 %v2686
    %v2688 = vlaneseq
    %v2689 = vshrl.u32 %v2688, 7
    %v2690 = vsub.s32 %v2687, %v2689
    %v2691 = vrot.slane %v2677, %v2690
    %v2692 = vcombine.low %v2649, %v2655
    %v2693 = vcombine.high %v2649, %v2655
    %v2695 = vunpack.c.l.s4 1983009808
    %v2696 = vunpack.c.0.s8 %v2695
    %v2697 = vlaneseq
    %v2698 = vshrl.u32 %v2697, 7
    %v2699 = vsub.s32 %v2696, %v2698
    %v2700 = vrot.slane %v2692, %v2699
    %v2702 = vunpack.c.l.s4 1983009808
    %v2703 = vunpack.c.0.s8 %v2702
    %v2704 = vlaneseq
    %v2705 = vshrl.u32 %v2704, 7
    %v2706 = vsub.s32 %v2703, %v2705
    %v2707 = vrot.slane %v2693, %v2706
    %v2708 = vcombine.low %v2652, %v2658
    %v2709 = vcombine.high %v2652, %v2658
    %v2711 = vunpack.c.l.s4 1983009808
    %v2712 = vunpack.c.0.s8 %v2711
    %v2713 = vlaneseq
    %v2714 = vshrl.u32 %v2713, 7
    %v2715 = vsub.s32 %v2712, %v2714
    %v2716 = vrot.slane %v2708, %v2715
    %v2718 = vunpack.c.l.s4 1983009808
    %v2719 = vunpack.c.0.s8 %v2718
    %v2720 = vlaneseq
    %v2721 = vshrl.u32 %v2720, 7
    %v2722 = vsub.s32 %v2719, %v2721
    %v2723 = vrot.slane %v2709, %v2722
    %v2724 = vcombine.low %v2668, %v2684
    %v2725 = vcombine.high %v2668, %v2684
    %v2727 = vunpack.c.l.s4 1934713408
    %v2728 = vunpack.c.0.s8 %v2727
    %v2729 = vlaneseq
    %v2730 = vshrl.u32 %v2729, 7
    %v2731 = vsub.s32 %v2728, %v2730
    %v2732 = vrot.slane %v2724, %v2731
    %v2734 = vunpack.c.l.s4 1934713408
    %v2735 = vunpack.c.0.s8 %v2734
    %v2736 = vlaneseq
    %v2737 = vshrl.u32 %v2736, 7
    %v2738 = vsub.s32 %v2735, %v2737
    %v2739 = vrot.slane %v2725, %v2738
    %v2740 = vcombine.low %v2675, %v2691
    %v2741 = vcombine.high %v2675, %v2691
    %v2743 = vunpack.c.l.s4 1934713408
    %v2744 = vunpack.c.0.s8 %v2743
    %v2745 = vlaneseq
    %v2746 = vshrl.u32 %v2745, 7
    %v2747 = vsub.s32 %v2744, %v2746
    %v2748 = vrot.slane %v2740, %v2747
    %v2750 = vunpack.c.l.s4 1934713408
    %v2751 = vunpack.c.0.s8 %v2750
    %v2752 = vlaneseq
    %v2753 = vshrl.u32 %v2752, 7
    %v2754 = vsub.s32 %v2751, %v2753
    %v2755 = vrot.slane %v2741, %v2754
    %v2756 = vcombine.low %v2700, %v2716
    %v2757 = vcombine.high %v2700, %v2716
    %v2759 = vunpack.c.l.s4 1934713408
    %v2760 = vunpack.c.0.s8 %v2759
    %v2761 = vlaneseq
    %v2762 = vshrl.u32 %v2761, 7
    %v2763 = vsub.s32 %v2760, %v2762
    %v2764 = vrot.slane %v2756, %v2763
    %v2766 = vunpack.c.l.s4 1934713408
    %v2767 = vunpack.c.0.s8 %v2766
    %v2768 = vlaneseq
    %v2769 = vshrl.u32 %v2768, 7
    %v2770 = vsub.s32 %v2767, %v2769
    %v2771 = vrot.slane %v2757, %v2770
    %v2772 = vcombine.low %v2707, %v2723
    %v2773 = vcombine.high %v2707, %v2723
    %v2775 = vunpack.c.l.s4 1934713408
    %v2776 = vunpack.c.0.s8 %v2775
    %v2777 = vlaneseq
    %v2778 = vshrl.u32 %v2777, 7
    %v2779 = vsub.s32 %v2776, %v2778
    %v2780 = vrot.slane %v2772, %v2779
    %v2782 = vunpack.c.l.s4 1934713408
    %v2783 = vunpack.c.0.s8 %v2782
    %v2784 = vlaneseq
    %v2785 = vshrl.u32 %v2784, 7
    %v2786 = vsub.s32 %v2783, %v2785
    %v2787 = vrot.slane %v2773, %v2786
    %v2788 = vcombine.low %v2732, %v2764
    %v2789 = vcombine.high %v2732, %v2764
    %v2790 = vcombine.low %v2739, %v2771
    %v2791 = vcombine.high %v2739, %v2771
    %v2792 = vcombine.low %v2748, %v2780
    %v2793 = vcombine.high %v2748, %v2780
    %v2794 = vcombine.low %v2755, %v2787
    %v2795 = vcombine.high %v2755, %v2787
    %v2796 = vcombine.low %v2788, %v2790
    %v2797 = vcombine.high %v2788, %v2790
    %v2799 = vunpack.c.l.s4 1983009808
    %v2800 = vunpack.c.0.s8 %v2799
    %v2801 = vlaneseq
    %v2802 = vshrl.u32 %v2801, 7
    %v2803 = vsub.s32 %v2800, %v2802
    %v2804 = vrot.slane %v2796, %v2803
    %v2806 = vunpack.c.l.s4 1983009808
    %v2807 = vunpack.c.0.s8 %v2806
    %v2808 = vlaneseq
    %v2809 = vshrl.u32 %v2808, 7
    %v2810 = vsub.s32 %v2807, %v2809
    %v2811 = vrot.slane %v2797, %v2810
    %v2812 = vcombine.low %v2789, %v2791
    %v2813 = vcombine.high %v2789, %v2791
    %v2815 = vunpack.c.l.s4 1983009808
    %v2816 = vunpack.c.0.s8 %v2815
    %v2817 = vlaneseq
    %v2818 = vshrl.u32 %v2817, 7
    %v2819 = vsub.s32 %v2816, %v2818
    %v2820 = vrot.slane %v2812, %v2819
    %v2822 = vunpack.c.l.s4 1983009808
    %v2823 = vunpack.c.0.s8 %v2822
    %v2824 = vlaneseq
    %v2825 = vshrl.u32 %v2824, 7
    %v2826 = vsub.s32 %v2823, %v2825
    %v2827 = vrot.slane %v2813, %v2826
    %v2828 = vcombine.low %v2792, %v2794
    %v2829 = vcombine.high %v2792, %v2794
    %v2831 = vunpack.c.l.s4 1983009808
    %v2832 = vunpack.c.0.s8 %v2831
    %v2833 = vlaneseq
    %v2834 = vshrl.u32 %v2833, 7
    %v2835 = vsub.s32 %v2832, %v2834
    %v2836 = vrot.slane %v2828, %v2835
    %v2838 = vunpack.c.l.s4 1983009808
    %v2839 = vunpack.c.0.s8 %v2838
    %v2840 = vlaneseq
    %v2841 = vshrl.u32 %v2840, 7
    %v2842 = vsub.s32 %v2839, %v2841
    %v2843 = vrot.slane %v2829, %v2842
    %v2844 = vcombine.low %v2793, %v2795
    %v2845 = vcombine.high %v2793, %v2795
    %v2847 = vunpack.c.l.s4 1983009808
    %v2848 = vunpack.c.0.s8 %v2847
    %v2849 = vlaneseq
    %v2850 = vshrl.u32 %v2849, 7
    %v2851 = vsub.s32 %v2848, %v2850
    %v2852 = vrot.slane %v2844, %v2851
    %v2854 = vunpack.c.l.s4 1983009808
    %v2855 = vunpack.c.0.s8 %v2854
    %v2856 = vlaneseq
    %v2857 = vshrl.u32 %v2856, 7
    %v2858 = vsub.s32 %v2855, %v2857
    %v2859 = vrot.slane %v2845, %v2858
    %v2860 = vcombine.low %v2804, %v2820
    %v2861 = vcombine.high %v2804, %v2820
    %v2863 = vunpack.c.l.s4 1934713408
    %v2864 = vunpack.c.0.s8 %v2863
    %v2865 = vlaneseq
    %v2866 = vshrl.u32 %v2865, 7
    %v2867 = vsub.s32 %v2864, %v2866
    %v2868 = vrot.slane %v2860, %v2867
    %v2870 = vunpack.c.l.s4 1934713408
    %v2871 = vunpack.c.0.s8 %v2870
    %v2872 = vlaneseq
    %v2873 = vshrl.u32 %v2872, 7
    %v2874 = vsub.s32 %v2871, %v2873
    %v2875 = vrot.slane %v2861, %v2874
    %v2876 = vcombine.low %v2811, %v2827
    %v2877 = vcombine.high %v2811, %v2827
    %v2879 = vunpack.c.l.s4 1934713408
    %v2880 = vunpack.c.0.s8 %v2879
    %v2881 = vlaneseq
    %v2882 = vshrl.u32 %v2881, 7
    %v2883 = vsub.s32 %v2880, %v2882
    %v2884 = vrot.slane %v2876, %v2883
    %v2886 = vunpack.c.l.s4 1934713408
    %v2887 = vunpack.c.0.s8 %v2886
    %v2888 = vlaneseq
    %v2889 = vshrl.u32 %v2888, 7
    %v2890 = vsub.s32 %v2887, %v2889
    %v2891 = vrot.slane %v2877, %v2890
    %v2892 = vcombine.low %v2836, %v2852
    %v2893 = vcombine.high %v2836, %v2852
    %v2895 = vunpack.c.l.s4 1934713408
    %v2896 = vunpack.c.0.s8 %v2895
    %v2897 = vlaneseq
    %v2898 = vshrl.u32 %v2897, 7
    %v2899 = vsub.s32 %v2896, %v2898
    %v2900 = vrot.slane %v2892, %v2899
    %v2902 = vunpack.c.l.s4 1934713408
    %v2903 = vunpack.c.0.s8 %v2902
    %v2904 = vlaneseq
    %v2905 = vshrl.u32 %v2904, 7
    %v2906 = vsub.s32 %v2903, %v2905
    %v2907 = vrot.slane %v2893, %v2906
    %v2908 = vcombine.low %v2843, %v2859
    %v2909 = vcombine.high %v2843, %v2859
    %v2911 = vunpack.c.l.s4 1934713408
    %v2912 = vunpack.c.0.s8 %v2911
    %v2913 = vlaneseq
    %v2914 = vshrl.u32 %v2913, 7
    %v2915 = vsub.s32 %v2912, %v2914
    %v2916 = vrot.slane %v2908, %v2915
    %v2918 = vunpack.c.l.s4 1934713408
    %v2919 = vunpack.c.0.s8 %v2918
    %v2920 = vlaneseq
    %v2921 = vshrl.u32 %v2920, 7
    %v2922 = vsub.s32 %v2919, %v2921
    %v2923 = vrot.slane %v2909, %v2922
    %v2924 = vcombine.low %v2868, %v2900
    %v2925 = vcombine.high %v2868, %v2900
    %v2926 = vcombine.low %v2875, %v2907
    %v2927 = vcombine.high %v2875, %v2907
    %v2928 = vcombine.low %v2884, %v2916
    %v2929 = vcombine.high %v2884, %v2916
    %v2930 = vcombine.low %v2891, %v2923
    %v2931 = vcombine.high %v2891, %v2923
    %v2932 = vpack.c.bf16 %v2924, %v2924
    %v2933 = vpack.c.bf16 %v2925, %v2925
    %v2934 = vpack.c.bf16 %v2926, %v2926
    %v2935 = vpack.c.bf16 %v2927, %v2927
    %v2936 = vpack.c.bf16 %v2928, %v2928
    %v2937 = vpack.c.bf16 %v2929, %v2929
    %v2938 = vpack.c.bf16 %v2930, %v2930
    %v2939 = vpack.c.bf16 %v2931, %v2931
    %v2941 = vsel %vm1062, %v2326, 0
    %v2944 = vsel %vm1062, %v2630, 0
    %2946 = vmatprep.subr.bf16.mxu0 0
    %2947 = vmatpush1.bf16.xpose.msra.mxu0 %v2944
    %2948 = vmatprep.subr.bf16.mxu0 0
    %2949 = vmatpush1.bf16.xpose.msra.mxu0 0
    %2950 = vmatprep.subr.bf16.mxu0 0
    %2951 = vmatpush1.bf16.xpose.msra.mxu0 0
    %2952 = vmatprep.subr.bf16.mxu0 0
    %2953 = vmatpush1.bf16.xpose.msra.mxu0 0
    %2954 = vmatprep.subr.bf16.mxu0 0
    %2955 = vmatpush1.bf16.xpose.msra.mxu0 0
    %2956 = vmatprep.subr.bf16.mxu0 0
    %2957 = vmatpush1.bf16.xpose.msra.mxu0 0
    %2958 = vmatprep.subr.bf16.mxu0 0
    %2959 = vmatpush1.bf16.xpose.msra.mxu0 0
    %2960 = vmatprep.subr.bf16.mxu0 0
    %2961 = vmatpush1.bf16.xpose.msra.mxu0 0
    %2962 = vmatprep.subr.bf16.mxu0 0
    %2963 = vmatpush1.bf16.xpose.msra.mxu0 0
    %2964 = vmatprep.subr.bf16.mxu0 0
    %2965 = vmatpush1.bf16.xpose.msra.mxu0 0
    %2966 = vmatprep.subr.bf16.mxu0 0
    %2967 = vmatpush1.bf16.xpose.msra.mxu0 0
    %2968 = vmatprep.subr.bf16.mxu0 0
    %2969 = vmatpush1.bf16.xpose.msra.mxu0 0
    %2970 = vmatprep.subr.bf16.mxu0 0
    %2971 = vmatpush1.bf16.xpose.msra.mxu0 0
    %2972 = vmatprep.subr.bf16.mxu0 0
    %2973 = vmatpush1.bf16.xpose.msra.mxu0 0
    %2974 = vmatprep.subr.bf16.mxu0 0
    %2975 = vmatpush1.bf16.xpose.msra.mxu0 0
    %2976 = vmatprep.subr.bf16.mxu0 0
    %2977 = vmatpush1.bf16.xpose.msra.mxu0 0
    %2978 = vmatprep.mubr.bf16.mxu0 0
    %2979 = vmatmul.mubr.bf16.gmra.mrb[0].mxu0 %v2941
    %v2980 = vpop.f32.mrb[0].mxu0
    %v2981 = vadd.f32 0.0, %v2980
    %v2982 = vpop.f32.mrb[0].mxu0
    %v2983 = vpop.f32.mrb[0].mxu0
    %v2984 = vpop.f32.mrb[0].mxu0
    %2985 = vdwg.mxu0
    %v2987 = vsel %vm1062, %v2327, 0
    %v2990 = vsel %vm1062, %v2631, 0
    %2992 = vmatprep.subr.bf16.mxu0 0
    %2993 = vmatpush1.bf16.xpose.msra.mxu0 %v2990
    %2994 = vmatprep.subr.bf16.mxu0 0
    %2995 = vmatpush1.bf16.xpose.msra.mxu0 0
    %2996 = vmatprep.subr.bf16.mxu0 0
    %2997 = vmatpush1.bf16.xpose.msra.mxu0 0
    %2998 = vmatprep.subr.bf16.mxu0 0
    %2999 = vmatpush1.bf16.xpose.msra.mxu0 0
    %3000 = vmatprep.subr.bf16.mxu0 0
    %3001 = vmatpush1.bf16.xpose.msra.mxu0 0
    %3002 = vmatprep.subr.bf16.mxu0 0
    %3003 = vmatpush1.bf16.xpose.msra.mxu0 0
    %3004 = vmatprep.subr.bf16.mxu0 0
    %3005 = vmatpush1.bf16.xpose.msra.mxu0 0
    %3006 = vmatprep.subr.bf16.mxu0 0
    %3007 = vmatpush1.bf16.xpose.msra.mxu0 0
    %3008 = vmatprep.subr.bf16.mxu0 0
    %3009 = vmatpush1.bf16.xpose.msra.mxu0 0
    %3010 = vmatprep.subr.bf16.mxu0 0
    %3011 = vmatpush1.bf16.xpose.msra.mxu0 0
    %3012 = vmatprep.subr.bf16.mxu0 0
    %3013 = vmatpush1.bf16.xpose.msra.mxu0 0
    %3014 = vmatprep.subr.bf16.mxu0 0
    %3015 = vmatpush1.bf16.xpose.msra.mxu0 0
    %3016 = vmatprep.subr.bf16.mxu0 0
    %3017 = vmatpush1.bf16.xpose.msra.mxu0 0
    %3018 = vmatprep.subr.bf16.mxu0 0
    %3019 = vmatpush1.bf16.xpose.msra.mxu0 0
    %3020 = vmatprep.subr.bf16.mxu0 0
    %3021 = vmatpush1.bf16.xpose.msra.mxu0 0
    %3022 = vmatprep.subr.bf16.mxu0 0
    %3023 = vmatpush1.bf16.xpose.msra.mxu0 0
    %3024 = vmatprep.mubr.bf16.mxu0 0
    %3025 = vmatmul.mubr.bf16.gmra.mrb[0].mxu0 %v2987
    %v3026 = vpop.f32.mrb[0].mxu0
    %v3027 = vadd.f32 0.0, %v3026
    %v3028 = vpop.f32.mrb[0].mxu0
    %v3029 = vpop.f32.mrb[0].mxu0
    %v3030 = vpop.f32.mrb[0].mxu0
    %3031 = vdwg.mxu0
    %v3033 = vsel %vm1062, %v2328, 0
    %v3036 = vsel %vm1062, %v2632, 0
    %3038 = vmatprep.subr.bf16.mxu0 0
    %3039 = vmatpush1.bf16.xpose.msra.mxu0 %v3036
    %3040 = vmatprep.subr.bf16.mxu0 0
    %3041 = vmatpush1.bf16.xpose.msra.mxu0 0
    %3042 = vmatprep.subr.bf16.mxu0 0
    %3043 = vmatpush1.bf16.xpose.msra.mxu0 0
    %3044 = vmatprep.subr.bf16.mxu0 0
    %3045 = vmatpush1.bf16.xpose.msra.mxu0 0
    %3046 = vmatprep.subr.bf16.mxu0 0
    %3047 = vmatpush1.bf16.xpose.msra.mxu0 0
    %3048 = vmatprep.subr.bf16.mxu0 0
    %3049 = vmatpush1.bf16.xpose.msra.mxu0 0
    %3050 = vmatprep.subr.bf16.mxu0 0
    %3051 = vmatpush1.bf16.xpose.msra.mxu0 0
    %3052 = vmatprep.subr.bf16.mxu0 0
    %3053 = vmatpush1.bf16.xpose.msra.mxu0 0
    %3054 = vmatprep.subr.bf16.mxu0 0
    %3055 = vmatpush1.bf16.xpose.msra.mxu0 0
    %3056 = vmatprep.subr.bf16.mxu0 0
    %3057 = vmatpush1.bf16.xpose.msra.mxu0 0
    %3058 = vmatprep.subr.bf16.mxu0 0
    %3059 = vmatpush1.bf16.xpose.msra.mxu0 0
    %3060 = vmatprep.subr.bf16.mxu0 0
    %3061 = vmatpush1.bf16.xpose.msra.mxu0 0
    %3062 = vmatprep.subr.bf16.mxu0 0
    %3063 = vmatpush1.bf16.xpose.msra.mxu0 0
    %3064 = vmatprep.subr.bf16.mxu0 0
    %3065 = vmatpush1.bf16.xpose.msra.mxu0 0
    %3066 = vmatprep.subr.bf16.mxu0 0
    %3067 = vmatpush1.bf16.xpose.msra.mxu0 0
    %3068 = vmatprep.subr.bf16.mxu0 0
    %3069 = vmatpush1.bf16.xpose.msra.mxu0 0
    %3070 = vmatprep.mubr.bf16.mxu0 0
    %3071 = vmatmul.mubr.bf16.gmra.mrb[0].mxu0 %v3033
    %v3072 = vpop.f32.mrb[0].mxu0
    %v3073 = vadd.f32 0.0, %v3072
    %v3074 = vpop.f32.mrb[0].mxu0
    %v3075 = vpop.f32.mrb[0].mxu0
    %v3076 = vpop.f32.mrb[0].mxu0
    %3077 = vdwg.mxu0
    %v3079 = vsel %vm1062, %v2329, 0
    %v3082 = vsel %vm1062, %v2633, 0
    %3084 = vmatprep.subr.bf16.mxu0 0
    %3085 = vmatpush1.bf16.xpose.msra.mxu0 %v3082
    %3086 = vmatprep.subr.bf16.mxu0 0
    %3087 = vmatpush1.bf16.xpose.msra.mxu0 0
    %3088 = vmatprep.subr.bf16.mxu0 0
    %3089 = vmatpush1.bf16.xpose.msra.mxu0 0
    %3090 = vmatprep.subr.bf16.mxu0 0
    %3091 = vmatpush1.bf16.xpose.msra.mxu0 0
    %3092 = vmatprep.subr.bf16.mxu0 0
    %3093 = vmatpush1.bf16.xpose.msra.mxu0 0
    %3094 = vmatprep.subr.bf16.mxu0 0
    %3095 = vmatpush1.bf16.xpose.msra.mxu0 0
    %3096 = vmatprep.subr.bf16.mxu0 0
    %3097 = vmatpush1.bf16.xpose.msra.mxu0 0
    %3098 = vmatprep.subr.bf16.mxu0 0
    %3099 = vmatpush1.bf16.xpose.msra.mxu0 0
    %3100 = vmatprep.subr.bf16.mxu0 0
    %3101 = vmatpush1.bf16.xpose.msra.mxu0 0
    %3102 = vmatprep.subr.bf16.mxu0 0
    %3103 = vmatpush1.bf16.xpose.msra.mxu0 0
    %3104 = vmatprep.subr.bf16.mxu0 0
    %3105 = vmatpush1.bf16.xpose.msra.mxu0 0
    %3106 = vmatprep.subr.bf16.mxu0 0
    %3107 = vmatpush1.bf16.xpose.msra.mxu0 0
    %3108 = vmatprep.subr.bf16.mxu0 0
    %3109 = vmatpush1.bf16.xpose.msra.mxu0 0
    %3110 = vmatprep.subr.bf16.mxu0 0
    %3111 = vmatpush1.bf16.xpose.msra.mxu0 0
    %3112 = vmatprep.subr.bf16.mxu0 0
    %3113 = vmatpush1.bf16.xpose.msra.mxu0 0
    %3114 = vmatprep.subr.bf16.mxu0 0
    %3115 = vmatpush1.bf16.xpose.msra.mxu0 0
    %3116 = vmatprep.mubr.bf16.mxu0 0
    %3117 = vmatmul.mubr.bf16.gmra.mrb[0].mxu0 %v3079
    %v3118 = vpop.f32.mrb[0].mxu0
    %v3119 = vadd.f32 0.0, %v3118
    %v3120 = vpop.f32.mrb[0].mxu0
    %v3121 = vpop.f32.mrb[0].mxu0
    %v3122 = vpop.f32.mrb[0].mxu0
    %3123 = vdwg.mxu0
    %v3125 = vsel %vm1062, %v2330, 0
    %v3128 = vsel %vm1062, %v2634, 0
    %3130 = vmatprep.subr.bf16.mxu0 0
    %3131 = vmatpush1.bf16.xpose.msra.mxu0 %v3128
    %3132 = vmatprep.subr.bf16.mxu0 0
    %3133 = vmatpush1.bf16.xpose.msra.mxu0 0
    %3134 = vmatprep.subr.bf16.mxu0 0
    %3135 = vmatpush1.bf16.xpose.msra.mxu0 0
    %3136 = vmatprep.subr.bf16.mxu0 0
    %3137 = vmatpush1.bf16.xpose.msra.mxu0 0
    %3138 = vmatprep.subr.bf16.mxu0 0
    %3139 = vmatpush1.bf16.xpose.msra.mxu0 0
    %3140 = vmatprep.subr.bf16.mxu0 0
    %3141 = vmatpush1.bf16.xpose.msra.mxu0 0
    %3142 = vmatprep.subr.bf16.mxu0 0
    %3143 = vmatpush1.bf16.xpose.msra.mxu0 0
    %3144 = vmatprep.subr.bf16.mxu0 0
    %3145 = vmatpush1.bf16.xpose.msra.mxu0 0
    %3146 = vmatprep.subr.bf16.mxu0 0
    %3147 = vmatpush1.bf16.xpose.msra.mxu0 0
    %3148 = vmatprep.subr.bf16.mxu0 0
    %3149 = vmatpush1.bf16.xpose.msra.mxu0 0
    %3150 = vmatprep.subr.bf16.mxu0 0
    %3151 = vmatpush1.bf16.xpose.msra.mxu0 0
    %3152 = vmatprep.subr.bf16.mxu0 0
    %3153 = vmatpush1.bf16.xpose.msra.mxu0 0
    %3154 = vmatprep.subr.bf16.mxu0 0
    %3155 = vmatpush1.bf16.xpose.msra.mxu0 0
    %3156 = vmatprep.subr.bf16.mxu0 0
    %3157 = vmatpush1.bf16.xpose.msra.mxu0 0
    %3158 = vmatprep.subr.bf16.mxu0 0
    %3159 = vmatpush1.bf16.xpose.msra.mxu0 0
    %3160 = vmatprep.subr.bf16.mxu0 0
    %3161 = vmatpush1.bf16.xpose.msra.mxu0 0
    %3162 = vmatprep.mubr.bf16.mxu0 0
    %3163 = vmatmul.mubr.bf16.gmra.mrb[0].mxu0 %v3125
    %v3164 = vpop.f32.mrb[0].mxu0
    %v3165 = vadd.f32 0.0, %v3164
    %v3166 = vpop.f32.mrb[0].mxu0
    %v3167 = vpop.f32.mrb[0].mxu0
    %v3168 = vpop.f32.mrb[0].mxu0
    %3169 = vdwg.mxu0
    %v3171 = vsel %vm1062, %v2331, 0
    %v3174 = vsel %vm1062, %v2635, 0
    %3176 = vmatprep.subr.bf16.mxu0 0
    %3177 = vmatpush1.bf16.xpose.msra.mxu0 %v3174
    %3178 = vmatprep.subr.bf16.mxu0 0
    %3179 = vmatpush1.bf16.xpose.msra.mxu0 0
    %3180 = vmatprep.subr.bf16.mxu0 0
    %3181 = vmatpush1.bf16.xpose.msra.mxu0 0
    %3182 = vmatprep.subr.bf16.mxu0 0
    %3183 = vmatpush1.bf16.xpose.msra.mxu0 0
    %3184 = vmatprep.subr.bf16.mxu0 0
    %3185 = vmatpush1.bf16.xpose.msra.mxu0 0
    %3186 = vmatprep.subr.bf16.mxu0 0
    %3187 = vmatpush1.bf16.xpose.msra.mxu0 0
    %3188 = vmatprep.subr.bf16.mxu0 0
    %3189 = vmatpush1.bf16.xpose.msra.mxu0 0
    %3190 = vmatprep.subr.bf16.mxu0 0
    %3191 = vmatpush1.bf16.xpose.msra.mxu0 0
    %3192 = vmatprep.subr.bf16.mxu0 0
    %3193 = vmatpush1.bf16.xpose.msra.mxu0 0
    %3194 = vmatprep.subr.bf16.mxu0 0
    %3195 = vmatpush1.bf16.xpose.msra.mxu0 0
    %3196 = vmatprep.subr.bf16.mxu0 0
    %3197 = vmatpush1.bf16.xpose.msra.mxu0 0
    %3198 = vmatprep.subr.bf16.mxu0 0
    %3199 = vmatpush1.bf16.xpose.msra.mxu0 0
    %3200 = vmatprep.subr.bf16.mxu0 0
    %3201 = vmatpush1.bf16.xpose.msra.mxu0 0
    %3202 = vmatprep.subr.bf16.mxu0 0
    %3203 = vmatpush1.bf16.xpose.msra.mxu0 0
    %3204 = vmatprep.subr.bf16.mxu0 0
    %3205 = vmatpush1.bf16.xpose.msra.mxu0 0
    %3206 = vmatprep.subr.bf16.mxu0 0
    %3207 = vmatpush1.bf16.xpose.msra.mxu0 0
    %3208 = vmatprep.mubr.bf16.mxu0 0
    %3209 = vmatmul.mubr.bf16.gmra.mrb[0].mxu0 %v3171
    %v3210 = vpop.f32.mrb[0].mxu0
    %v3211 = vadd.f32 0.0, %v3210
    %v3212 = vpop.f32.mrb[0].mxu0
    %v3213 = vpop.f32.mrb[0].mxu0
    %v3214 = vpop.f32.mrb[0].mxu0
    %3215 = vdwg.mxu0
    %v3217 = vsel %vm1062, %v2332, 0
    %v3220 = vsel %vm1062, %v2636, 0
    %3222 = vmatprep.subr.bf16.mxu0 0
    %3223 = vmatpush1.bf16.xpose.msra.mxu0 %v3220
    %3224 = vmatprep.subr.bf16.mxu0 0
    %3225 = vmatpush1.bf16.xpose.msra.mxu0 0
    %3226 = vmatprep.subr.bf16.mxu0 0
    %3227 = vmatpush1.bf16.xpose.msra.mxu0 0
    %3228 = vmatprep.subr.bf16.mxu0 0
    %3229 = vmatpush1.bf16.xpose.msra.mxu0 0
    %3230 = vmatprep.subr.bf16.mxu0 0
    %3231 = vmatpush1.bf16.xpose.msra.mxu0 0
    %3232 = vmatprep.subr.bf16.mxu0 0
    %3233 = vmatpush1.bf16.xpose.msra.mxu0 0
    %3234 = vmatprep.subr.bf16.mxu0 0
    %3235 = vmatpush1.bf16.xpose.msra.mxu0 0
    %3236 = vmatprep.subr.bf16.mxu0 0
    %3237 = vmatpush1.bf16.xpose.msra.mxu0 0
    %3238 = vmatprep.subr.bf16.mxu0 0
    %3239 = vmatpush1.bf16.xpose.msra.mxu0 0
    %3240 = vmatprep.subr.bf16.mxu0 0
    %3241 = vmatpush1.bf16.xpose.msra.mxu0 0
    %3242 = vmatprep.subr.bf16.mxu0 0
    %3243 = vmatpush1.bf16.xpose.msra.mxu0 0
    %3244 = vmatprep.subr.bf16.mxu0 0
    %3245 = vmatpush1.bf16.xpose.msra.mxu0 0
    %3246 = vmatprep.subr.bf16.mxu0 0
    %3247 = vmatpush1.bf16.xpose.msra.mxu0 0
    %3248 = vmatprep.subr.bf16.mxu0 0
    %3249 = vmatpush1.bf16.xpose.msra.mxu0 0
    %3250 = vmatprep.subr.bf16.mxu0 0
    %3251 = vmatpush1.bf16.xpose.msra.mxu0 0
    %3252 = vmatprep.subr.bf16.mxu0 0
    %3253 = vmatpush1.bf16.xpose.msra.mxu0 0
    %3254 = vmatprep.mubr.bf16.mxu0 0
    %3255 = vmatmul.mubr.bf16.gmra.mrb[0].mxu0 %v3217
    %v3256 = vpop.f32.mrb[0].mxu0
    %v3257 = vadd.f32 0.0, %v3256
    %v3258 = vpop.f32.mrb[0].mxu0
    %v3259 = vpop.f32.mrb[0].mxu0
    %v3260 = vpop.f32.mrb[0].mxu0
    %3261 = vdwg.mxu0
    %v3263 = vsel %vm1062, %v2333, 0
    %v3266 = vsel %vm1062, %v2637, 0
    %3268 = vmatprep.subr.bf16.mxu0 0
    %3269 = vmatpush1.bf16.xpose.msra.mxu0 %v3266
    %3270 = vmatprep.subr.bf16.mxu0 0
    %3271 = vmatpush1.bf16.xpose.msra.mxu0 0
    %3272 = vmatprep.subr.bf16.mxu0 0
    %3273 = vmatpush1.bf16.xpose.msra.mxu0 0
    %3274 = vmatprep.subr.bf16.mxu0 0
    %3275 = vmatpush1.bf16.xpose.msra.mxu0 0
    %3276 = vmatprep.subr.bf16.mxu0 0
    %3277 = vmatpush1.bf16.xpose.msra.mxu0 0
    %3278 = vmatprep.subr.bf16.mxu0 0
    %3279 = vmatpush1.bf16.xpose.msra.mxu0 0
    %3280 = vmatprep.subr.bf16.mxu0 0
    %3281 = vmatpush1.bf16.xpose.msra.mxu0 0
    %3282 = vmatprep.subr.bf16.mxu0 0
    %3283 = vmatpush1.bf16.xpose.msra.mxu0 0
    %3284 = vmatprep.subr.bf16.mxu0 0
    %3285 = vmatpush1.bf16.xpose.msra.mxu0 0
    %3286 = vmatprep.subr.bf16.mxu0 0
    %3287 = vmatpush1.bf16.xpose.msra.mxu0 0
    %3288 = vmatprep.subr.bf16.mxu0 0
    %3289 = vmatpush1.bf16.xpose.msra.mxu0 0
    %3290 = vmatprep.subr.bf16.mxu0 0
    %3291 = vmatpush1.bf16.xpose.msra.mxu0 0
    %3292 = vmatprep.subr.bf16.mxu0 0
    %3293 = vmatpush1.bf16.xpose.msra.mxu0 0
    %3294 = vmatprep.subr.bf16.mxu0 0
    %3295 = vmatpush1.bf16.xpose.msra.mxu0 0
    %3296 = vmatprep.subr.bf16.mxu0 0
    %3297 = vmatpush1.bf16.xpose.msra.mxu0 0
    %3298 = vmatprep.subr.bf16.mxu0 0
    %3299 = vmatpush1.bf16.xpose.msra.mxu0 0
    %3300 = vmatprep.mubr.bf16.mxu0 0
    %3301 = vmatmul.mubr.bf16.gmra.mrb[0].mxu0 %v3263
    %v3302 = vpop.f32.mrb[0].mxu0
    %v3303 = vadd.f32 0.0, %v3302
    %v3304 = vpop.f32.mrb[0].mxu0
    %v3305 = vpop.f32.mrb[0].mxu0
    %v3306 = vpop.f32.mrb[0].mxu0
    %3307 = vdwg.mxu0
    %v3308 = vsel %vm1062, %v2981, -inf
    %3309 = vmax.xlane.f32.xlu0 %v3308
    %v3310 = vpop.xlane.xlu0 %3309
    %v3311 = vsel %vm1062, %v3027, -inf
    %3312 = vmax.xlane.f32.xlu0 %v3311
    %v3313 = vpop.xlane.xlu0 %3312
    %v3314 = vsel %vm1062, %v3073, -inf
    %3315 = vmax.xlane.f32.xlu0 %v3314
    %v3316 = vpop.xlane.xlu0 %3315
    %v3317 = vsel %vm1062, %v3119, -inf
    %3318 = vmax.xlane.f32.xlu0 %v3317
    %v3319 = vpop.xlane.xlu0 %3318
    %v3320 = vsel %vm1062, %v3165, -inf
    %3321 = vmax.xlane.f32.xlu0 %v3320
    %v3322 = vpop.xlane.xlu0 %3321
    %v3323 = vsel %vm1062, %v3211, -inf
    %3324 = vmax.xlane.f32.xlu0 %v3323
    %v3325 = vpop.xlane.xlu0 %3324
    %v3326 = vsel %vm1062, %v3257, -inf
    %3327 = vmax.xlane.f32.xlu0 %v3326
    %v3328 = vpop.xlane.xlu0 %3327
    %v3329 = vsel %vm1062, %v3303, -inf
    %3330 = vmax.xlane.f32.xlu0 %v3329
    %v3331 = vpop.xlane.xlu0 %3330
    %v3332 = vsub.f32 %v2981, %v3310
    %v3333 = vsub.f32 %v3027, %v3313
    %v3334 = vsub.f32 %v3073, %v3316
    %v3335 = vsub.f32 %v3119, %v3319
    %v3336 = vsub.f32 %v3165, %v3322
    %v3337 = vsub.f32 %v3211, %v3325
    %v3338 = vsub.f32 %v3257, %v3328
    %v3339 = vsub.f32 %v3303, %v3331
    %v3340 = vmul.f32 %v3332, 1.442695
    %v3341 = vpow.pop %v3340
    %v3342 = vmul.f32 %v3333, 1.442695
    %v3343 = vpow.pop %v3342
    %v3344 = vmul.f32 %v3334, 1.442695
    %v3345 = vpow.pop %v3344
    %v3346 = vmul.f32 %v3335, 1.442695
    %v3347 = vpow.pop %v3346
    %v3348 = vmul.f32 %v3336, 1.442695
    %v3349 = vpow.pop %v3348
    %v3350 = vmul.f32 %v3337, 1.442695
    %v3351 = vpow.pop %v3350
    %v3352 = vmul.f32 %v3338, 1.442695
    %v3353 = vpow.pop %v3352
    %v3354 = vmul.f32 %v3339, 1.442695
    %v3355 = vpow.pop %v3354
    %v3356 = vsel %vm1062, %v3341, 0.0
    %3357 = vadd.xlane.f32.xlu0 %v3356
    %v3358 = vpop.xlane.xlu0 %3357
    %v3359 = vsel %vm1062, %v3343, 0.0
    %3360 = vadd.xlane.f32.xlu0 %v3359
    %v3361 = vpop.xlane.xlu0 %3360
    %v3362 = vsel %vm1062, %v3345, 0.0
    %3363 = vadd.xlane.f32.xlu0 %v3362
    %v3364 = vpop.xlane.xlu0 %3363
    %v3365 = vsel %vm1062, %v3347, 0.0
    %3366 = vadd.xlane.f32.xlu0 %v3365
    %v3367 = vpop.xlane.xlu0 %3366
    %v3368 = vsel %vm1062, %v3349, 0.0
    %3369 = vadd.xlane.f32.xlu0 %v3368
    %v3370 = vpop.xlane.xlu0 %3369
    %v3371 = vsel %vm1062, %v3351, 0.0
    %3372 = vadd.xlane.f32.xlu0 %v3371
    %v3373 = vpop.xlane.xlu0 %3372
    %v3374 = vsel %vm1062, %v3353, 0.0
    %3375 = vadd.xlane.f32.xlu0 %v3374
    %v3376 = vpop.xlane.xlu0 %3375
    %v3377 = vsel %vm1062, %v3355, 0.0
    %3378 = vadd.xlane.f32.xlu0 %v3377
    %v3379 = vpop.xlane.xlu0 %3378
    %v3380 = vrcp.pop %v3358
    %v3381 = vmul.f32 %v3341, %v3380
    %v3382 = vrcp.pop %v3361
    %v3383 = vmul.f32 %v3343, %v3382
    %v3384 = vrcp.pop %v3364
    %v3385 = vmul.f32 %v3345, %v3384
    %v3386 = vrcp.pop %v3367
    %v3387 = vmul.f32 %v3347, %v3386
    %v3388 = vrcp.pop %v3370
    %v3389 = vmul.f32 %v3349, %v3388
    %v3390 = vrcp.pop %v3373
    %v3391 = vmul.f32 %v3351, %v3390
    %v3392 = vrcp.pop %v3376
    %v3393 = vmul.f32 %v3353, %v3392
    %v3394 = vrcp.pop %v3379
    %v3395 = vmul.f32 %v3355, %v3394
    %v3396 = vpack.c.bf16 %v3381, %v3381
    %v3397 = vpack.c.bf16 %v3383, %v3383
    %v3398 = vpack.c.bf16 %v3385, %v3385
    %v3399 = vpack.c.bf16 %v3387, %v3387
    %v3400 = vpack.c.bf16 %v3389, %v3389
    %v3401 = vpack.c.bf16 %v3391, %v3391
    %v3402 = vpack.c.bf16 %v3393, %v3393
    %v3403 = vpack.c.bf16 %v3395, %v3395
    %v3405 = vsel %vm1062, %v3396, 0
    %v3408 = vsel %vm1530, %v2932, 0
    %3410 = vmatprep.subr.bf16.mxu0 0
    %3411 = vmatpush1.bf16.msra.mxu0 %v3408
    %3412 = vmatprep.subr.bf16.mxu0 0
    %3413 = vmatpush1.bf16.msra.mxu0 0
    %3414 = vmatprep.subr.bf16.mxu0 0
    %3415 = vmatpush1.bf16.msra.mxu0 0
    %3416 = vmatprep.subr.bf16.mxu0 0
    %3417 = vmatpush1.bf16.msra.mxu0 0
    %3418 = vmatprep.subr.bf16.mxu0 0
    %3419 = vmatpush1.bf16.msra.mxu0 0
    %3420 = vmatprep.subr.bf16.mxu0 0
    %3421 = vmatpush1.bf16.msra.mxu0 0
    %3422 = vmatprep.subr.bf16.mxu0 0
    %3423 = vmatpush1.bf16.msra.mxu0 0
    %3424 = vmatprep.subr.bf16.mxu0 0
    %3425 = vmatpush1.bf16.msra.mxu0 0
    %3426 = vmatprep.subr.bf16.mxu0 0
    %3427 = vmatpush1.bf16.msra.mxu0 0
    %3428 = vmatprep.subr.bf16.mxu0 0
    %3429 = vmatpush1.bf16.msra.mxu0 0
    %3430 = vmatprep.subr.bf16.mxu0 0
    %3431 = vmatpush1.bf16.msra.mxu0 0
    %3432 = vmatprep.subr.bf16.mxu0 0
    %3433 = vmatpush1.bf16.msra.mxu0 0
    %3434 = vmatprep.subr.bf16.mxu0 0
    %3435 = vmatpush1.bf16.msra.mxu0 0
    %3436 = vmatprep.subr.bf16.mxu0 0
    %3437 = vmatpush1.bf16.msra.mxu0 0
    %3438 = vmatprep.subr.bf16.mxu0 0
    %3439 = vmatpush1.bf16.msra.mxu0 0
    %3440 = vmatprep.subr.bf16.mxu0 0
    %3441 = vmatpush1.bf16.msra.mxu0 0
    %3442 = vmatprep.mubr.bf16.mxu0 0
    %3443 = vmatmul.mubr.bf16.gmra.mrb[0].mxu0 %v3405
    %v3444 = vpop.f32.mrb[0].mxu0
    %v3445 = vadd.f32 0.0, %v3444
    %v3446 = vpop.f32.mrb[0].mxu0
    %v3447 = vpop.f32.mrb[0].mxu0
    %v3448 = vpop.f32.mrb[0].mxu0
    %3449 = vdwg.mxu0
    %v3451 = vsel %vm1062, %v3397, 0
    %v3454 = vsel %vm1530, %v2933, 0
    %3456 = vmatprep.subr.bf16.mxu0 0
    %3457 = vmatpush1.bf16.msra.mxu0 %v3454
    %3458 = vmatprep.subr.bf16.mxu0 0
    %3459 = vmatpush1.bf16.msra.mxu0 0
    %3460 = vmatprep.subr.bf16.mxu0 0
    %3461 = vmatpush1.bf16.msra.mxu0 0
    %3462 = vmatprep.subr.bf16.mxu0 0
    %3463 = vmatpush1.bf16.msra.mxu0 0
    %3464 = vmatprep.subr.bf16.mxu0 0
    %3465 = vmatpush1.bf16.msra.mxu0 0
    %3466 = vmatprep.subr.bf16.mxu0 0
    %3467 = vmatpush1.bf16.msra.mxu0 0
    %3468 = vmatprep.subr.bf16.mxu0 0
    %3469 = vmatpush1.bf16.msra.mxu0 0
    %3470 = vmatprep.subr.bf16.mxu0 0
    %3471 = vmatpush1.bf16.msra.mxu0 0
    %3472 = vmatprep.subr.bf16.mxu0 0
    %3473 = vmatpush1.bf16.msra.mxu0 0
    %3474 = vmatprep.subr.bf16.mxu0 0
    %3475 = vmatpush1.bf16.msra.mxu0 0
    %3476 = vmatprep.subr.bf16.mxu0 0
    %3477 = vmatpush1.bf16.msra.mxu0 0
    %3478 = vmatprep.subr.bf16.mxu0 0
    %3479 = vmatpush1.bf16.msra.mxu0 0
    %3480 = vmatprep.subr.bf16.mxu0 0
    %3481 = vmatpush1.bf16.msra.mxu0 0
    %3482 = vmatprep.subr.bf16.mxu0 0
    %3483 = vmatpush1.bf16.msra.mxu0 0
    %3484 = vmatprep.subr.bf16.mxu0 0
    %3485 = vmatpush1.bf16.msra.mxu0 0
    %3486 = vmatprep.subr.bf16.mxu0 0
    %3487 = vmatpush1.bf16.msra.mxu0 0
    %3488 = vmatprep.mubr.bf16.mxu0 0
    %3489 = vmatmul.mubr.bf16.gmra.mrb[0].mxu0 %v3451
    %v3490 = vpop.f32.mrb[0].mxu0
    %v3491 = vadd.f32 0.0, %v3490
    %v3492 = vpop.f32.mrb[0].mxu0
    %v3493 = vpop.f32.mrb[0].mxu0
    %v3494 = vpop.f32.mrb[0].mxu0
    %3495 = vdwg.mxu0
    %v3497 = vsel %vm1062, %v3398, 0
    %v3500 = vsel %vm1530, %v2934, 0
    %3502 = vmatprep.subr.bf16.mxu0 0
    %3503 = vmatpush1.bf16.msra.mxu0 %v3500
    %3504 = vmatprep.subr.bf16.mxu0 0
    %3505 = vmatpush1.bf16.msra.mxu0 0
    %3506 = vmatprep.subr.bf16.mxu0 0
    %3507 = vmatpush1.bf16.msra.mxu0 0
    %3508 = vmatprep.subr.bf16.mxu0 0
    %3509 = vmatpush1.bf16.msra.mxu0 0
    %3510 = vmatprep.subr.bf16.mxu0 0
    %3511 = vmatpush1.bf16.msra.mxu0 0
    %3512 = vmatprep.subr.bf16.mxu0 0
    %3513 = vmatpush1.bf16.msra.mxu0 0
    %3514 = vmatprep.subr.bf16.mxu0 0
    %3515 = vmatpush1.bf16.msra.mxu0 0
    %3516 = vmatprep.subr.bf16.mxu0 0
    %3517 = vmatpush1.bf16.msra.mxu0 0
    %3518 = vmatprep.subr.bf16.mxu0 0
    %3519 = vmatpush1.bf16.msra.mxu0 0
    %3520 = vmatprep.subr.bf16.mxu0 0
    %3521 = vmatpush1.bf16.msra.mxu0 0
    %3522 = vmatprep.subr.bf16.mxu0 0
    %3523 = vmatpush1.bf16.msra.mxu0 0
    %3524 = vmatprep.subr.bf16.mxu0 0
    %3525 = vmatpush1.bf16.msra.mxu0 0
    %3526 = vmatprep.subr.bf16.mxu0 0
    %3527 = vmatpush1.bf16.msra.mxu0 0
    %3528 = vmatprep.subr.bf16.mxu0 0
    %3529 = vmatpush1.bf16.msra.mxu0 0
    %3530 = vmatprep.subr.bf16.mxu0 0
    %3531 = vmatpush1.bf16.msra.mxu0 0
    %3532 = vmatprep.subr.bf16.mxu0 0
    %3533 = vmatpush1.bf16.msra.mxu0 0
    %3534 = vmatprep.mubr.bf16.mxu0 0
    %3535 = vmatmul.mubr.bf16.gmra.mrb[0].mxu0 %v3497
    %v3536 = vpop.f32.mrb[0].mxu0
    %v3537 = vadd.f32 0.0, %v3536
    %v3538 = vpop.f32.mrb[0].mxu0
    %v3539 = vpop.f32.mrb[0].mxu0
    %v3540 = vpop.f32.mrb[0].mxu0
    %3541 = vdwg.mxu0
    %v3543 = vsel %vm1062, %v3399, 0
    %v3546 = vsel %vm1530, %v2935, 0
    %3548 = vmatprep.subr.bf16.mxu0 0
    %3549 = vmatpush1.bf16.msra.mxu0 %v3546
    %3550 = vmatprep.subr.bf16.mxu0 0
    %3551 = vmatpush1.bf16.msra.mxu0 0
    %3552 = vmatprep.subr.bf16.mxu0 0
    %3553 = vmatpush1.bf16.msra.mxu0 0
    %3554 = vmatprep.subr.bf16.mxu0 0
    %3555 = vmatpush1.bf16.msra.mxu0 0
    %3556 = vmatprep.subr.bf16.mxu0 0
    %3557 = vmatpush1.bf16.msra.mxu0 0
    %3558 = vmatprep.subr.bf16.mxu0 0
    %3559 = vmatpush1.bf16.msra.mxu0 0
    %3560 = vmatprep.subr.bf16.mxu0 0
    %3561 = vmatpush1.bf16.msra.mxu0 0
    %3562 = vmatprep.subr.bf16.mxu0 0
    %3563 = vmatpush1.bf16.msra.mxu0 0
    %3564 = vmatprep.subr.bf16.mxu0 0
    %3565 = vmatpush1.bf16.msra.mxu0 0
    %3566 = vmatprep.subr.bf16.mxu0 0
    %3567 = vmatpush1.bf16.msra.mxu0 0
    %3568 = vmatprep.subr.bf16.mxu0 0
    %3569 = vmatpush1.bf16.msra.mxu0 0
    %3570 = vmatprep.subr.bf16.mxu0 0
    %3571 = vmatpush1.bf16.msra.mxu0 0
    %3572 = vmatprep.subr.bf16.mxu0 0
    %3573 = vmatpush1.bf16.msra.mxu0 0
    %3574 = vmatprep.subr.bf16.mxu0 0
    %3575 = vmatpush1.bf16.msra.mxu0 0
    %3576 = vmatprep.subr.bf16.mxu0 0
    %3577 = vmatpush1.bf16.msra.mxu0 0
    %3578 = vmatprep.subr.bf16.mxu0 0
    %3579 = vmatpush1.bf16.msra.mxu0 0
    %3580 = vmatprep.mubr.bf16.mxu0 0
    %3581 = vmatmul.mubr.bf16.gmra.mrb[0].mxu0 %v3543
    %v3582 = vpop.f32.mrb[0].mxu0
    %v3583 = vadd.f32 0.0, %v3582
    %v3584 = vpop.f32.mrb[0].mxu0
    %v3585 = vpop.f32.mrb[0].mxu0
    %v3586 = vpop.f32.mrb[0].mxu0
    %3587 = vdwg.mxu0
    %v3589 = vsel %vm1062, %v3400, 0
    %v3592 = vsel %vm1530, %v2936, 0
    %3594 = vmatprep.subr.bf16.mxu0 0
    %3595 = vmatpush1.bf16.msra.mxu0 %v3592
    %3596 = vmatprep.subr.bf16.mxu0 0
    %3597 = vmatpush1.bf16.msra.mxu0 0
    %3598 = vmatprep.subr.bf16.mxu0 0
    %3599 = vmatpush1.bf16.msra.mxu0 0
    %3600 = vmatprep.subr.bf16.mxu0 0
    %3601 = vmatpush1.bf16.msra.mxu0 0
    %3602 = vmatprep.subr.bf16.mxu0 0
    %3603 = vmatpush1.bf16.msra.mxu0 0
    %3604 = vmatprep.subr.bf16.mxu0 0
    %3605 = vmatpush1.bf16.msra.mxu0 0
    %3606 = vmatprep.subr.bf16.mxu0 0
    %3607 = vmatpush1.bf16.msra.mxu0 0
    %3608 = vmatprep.subr.bf16.mxu0 0
    %3609 = vmatpush1.bf16.msra.mxu0 0
    %3610 = vmatprep.subr.bf16.mxu0 0
    %3611 = vmatpush1.bf16.msra.mxu0 0
    %3612 = vmatprep.subr.bf16.mxu0 0
    %3613 = vmatpush1.bf16.msra.mxu0 0
    %3614 = vmatprep.subr.bf16.mxu0 0
    %3615 = vmatpush1.bf16.msra.mxu0 0
    %3616 = vmatprep.subr.bf16.mxu0 0
    %3617 = vmatpush1.bf16.msra.mxu0 0
    %3618 = vmatprep.subr.bf16.mxu0 0
    %3619 = vmatpush1.bf16.msra.mxu0 0
    %3620 = vmatprep.subr.bf16.mxu0 0
    %3621 = vmatpush1.bf16.msra.mxu0 0
    %3622 = vmatprep.subr.bf16.mxu0 0
    %3623 = vmatpush1.bf16.msra.mxu0 0
    %3624 = vmatprep.subr.bf16.mxu0 0
    %3625 = vmatpush1.bf16.msra.mxu0 0
    %3626 = vmatprep.mubr.bf16.mxu0 0
    %3627 = vmatmul.mubr.bf16.gmra.mrb[0].mxu0 %v3589
    %v3628 = vpop.f32.mrb[0].mxu0
    %v3629 = vadd.f32 0.0, %v3628
    %v3630 = vpop.f32.mrb[0].mxu0
    %v3631 = vpop.f32.mrb[0].mxu0
    %v3632 = vpop.f32.mrb[0].mxu0
    %3633 = vdwg.mxu0
    %v3635 = vsel %vm1062, %v3401, 0
    %v3638 = vsel %vm1530, %v2937, 0
    %3640 = vmatprep.subr.bf16.mxu0 0
    %3641 = vmatpush1.bf16.msra.mxu0 %v3638
    %3642 = vmatprep.subr.bf16.mxu0 0
    %3643 = vmatpush1.bf16.msra.mxu0 0
    %3644 = vmatprep.subr.bf16.mxu0 0
    %3645 = vmatpush1.bf16.msra.mxu0 0
    %3646 = vmatprep.subr.bf16.mxu0 0
    %3647 = vmatpush1.bf16.msra.mxu0 0
    %3648 = vmatprep.subr.bf16.mxu0 0
    %3649 = vmatpush1.bf16.msra.mxu0 0
    %3650 = vmatprep.subr.bf16.mxu0 0
    %3651 = vmatpush1.bf16.msra.mxu0 0
    %3652 = vmatprep.subr.bf16.mxu0 0
    %3653 = vmatpush1.bf16.msra.mxu0 0
    %3654 = vmatprep.subr.bf16.mxu0 0
    %3655 = vmatpush1.bf16.msra.mxu0 0
    %3656 = vmatprep.subr.bf16.mxu0 0
    %3657 = vmatpush1.bf16.msra.mxu0 0
    %3658 = vmatprep.subr.bf16.mxu0 0
    %3659 = vmatpush1.bf16.msra.mxu0 0
    %3660 = vmatprep.subr.bf16.mxu0 0
    %3661 = vmatpush1.bf16.msra.mxu0 0
    %3662 = vmatprep.subr.bf16.mxu0 0
    %3663 = vmatpush1.bf16.msra.mxu0 0
    %3664 = vmatprep.subr.bf16.mxu0 0
    %3665 = vmatpush1.bf16.msra.mxu0 0
    %3666 = vmatprep.subr.bf16.mxu0 0
    %3667 = vmatpush1.bf16.msra.mxu0 0
    %3668 = vmatprep.subr.bf16.mxu0 0
    %3669 = vmatpush1.bf16.msra.mxu0 0
    %3670 = vmatprep.subr.bf16.mxu0 0
    %3671 = vmatpush1.bf16.msra.mxu0 0
    %3672 = vmatprep.mubr.bf16.mxu0 0
    %3673 = vmatmul.mubr.bf16.gmra.mrb[0].mxu0 %v3635
    %v3674 = vpop.f32.mrb[0].mxu0
    %v3675 = vadd.f32 0.0, %v3674
    %v3676 = vpop.f32.mrb[0].mxu0
    %v3677 = vpop.f32.mrb[0].mxu0
    %v3678 = vpop.f32.mrb[0].mxu0
    %3679 = vdwg.mxu0
    %v3681 = vsel %vm1062, %v3402, 0
    %v3684 = vsel %vm1530, %v2938, 0
    %3686 = vmatprep.subr.bf16.mxu0 0
    %3687 = vmatpush1.bf16.msra.mxu0 %v3684
    %3688 = vmatprep.subr.bf16.mxu0 0
    %3689 = vmatpush1.bf16.msra.mxu0 0
    %3690 = vmatprep.subr.bf16.mxu0 0
    %3691 = vmatpush1.bf16.msra.mxu0 0
    %3692 = vmatprep.subr.bf16.mxu0 0
    %3693 = vmatpush1.bf16.msra.mxu0 0
    %3694 = vmatprep.subr.bf16.mxu0 0
    %3695 = vmatpush1.bf16.msra.mxu0 0
    %3696 = vmatprep.subr.bf16.mxu0 0
    %3697 = vmatpush1.bf16.msra.mxu0 0
    %3698 = vmatprep.subr.bf16.mxu0 0
    %3699 = vmatpush1.bf16.msra.mxu0 0
    %3700 = vmatprep.subr.bf16.mxu0 0
    %3701 = vmatpush1.bf16.msra.mxu0 0
    %3702 = vmatprep.subr.bf16.mxu0 0
    %3703 = vmatpush1.bf16.msra.mxu0 0
    %3704 = vmatprep.subr.bf16.mxu0 0
    %3705 = vmatpush1.bf16.msra.mxu0 0
    %3706 = vmatprep.subr.bf16.mxu0 0
    %3707 = vmatpush1.bf16.msra.mxu0 0
    %3708 = vmatprep.subr.bf16.mxu0 0
    %3709 = vmatpush1.bf16.msra.mxu0 0
    %3710 = vmatprep.subr.bf16.mxu0 0
    %3711 = vmatpush1.bf16.msra.mxu0 0
    %3712 = vmatprep.subr.bf16.mxu0 0
    %3713 = vmatpush1.bf16.msra.mxu0 0
    %3714 = vmatprep.subr.bf16.mxu0 0
    %3715 = vmatpush1.bf16.msra.mxu0 0
    %3716 = vmatprep.subr.bf16.mxu0 0
    %3717 = vmatpush1.bf16.msra.mxu0 0
    %3718 = vmatprep.mubr.bf16.mxu0 0
    %3719 = vmatmul.mubr.bf16.gmra.mrb[0].mxu0 %v3681
    %v3720 = vpop.f32.mrb[0].mxu0
    %v3721 = vadd.f32 0.0, %v3720
    %v3722 = vpop.f32.mrb[0].mxu0
    %v3723 = vpop.f32.mrb[0].mxu0
    %v3724 = vpop.f32.mrb[0].mxu0
    %3725 = vdwg.mxu0
    %v3727 = vsel %vm1062, %v3403, 0
    %v3730 = vsel %vm1530, %v2939, 0
    %3732 = vmatprep.subr.bf16.mxu0 0
    %3733 = vmatpush1.bf16.msra.mxu0 %v3730
    %3734 = vmatprep.subr.bf16.mxu0 0
    %3735 = vmatpush1.bf16.msra.mxu0 0
    %3736 = vmatprep.subr.bf16.mxu0 0
    %3737 = vmatpush1.bf16.msra.mxu0 0
    %3738 = vmatprep.subr.bf16.mxu0 0
    %3739 = vmatpush1.bf16.msra.mxu0 0
    %3740 = vmatprep.subr.bf16.mxu0 0
    %3741 = vmatpush1.bf16.msra.mxu0 0
    %3742 = vmatprep.subr.bf16.mxu0 0
    %3743 = vmatpush1.bf16.msra.mxu0 0
    %3744 = vmatprep.subr.bf16.mxu0 0
    %3745 = vmatpush1.bf16.msra.mxu0 0
    %3746 = vmatprep.subr.bf16.mxu0 0
    %3747 = vmatpush1.bf16.msra.mxu0 0
    %3748 = vmatprep.subr.bf16.mxu0 0
    %3749 = vmatpush1.bf16.msra.mxu0 0
    %3750 = vmatprep.subr.bf16.mxu0 0
    %3751 = vmatpush1.bf16.msra.mxu0 0
    %3752 = vmatprep.subr.bf16.mxu0 0
    %3753 = vmatpush1.bf16.msra.mxu0 0
    %3754 = vmatprep.subr.bf16.mxu0 0
    %3755 = vmatpush1.bf16.msra.mxu0 0
    %3756 = vmatprep.subr.bf16.mxu0 0
    %3757 = vmatpush1.bf16.msra.mxu0 0
    %3758 = vmatprep.subr.bf16.mxu0 0
    %3759 = vmatpush1.bf16.msra.mxu0 0
    %3760 = vmatprep.subr.bf16.mxu0 0
    %3761 = vmatpush1.bf16.msra.mxu0 0
    %3762 = vmatprep.subr.bf16.mxu0 0
    %3763 = vmatpush1.bf16.msra.mxu0 0
    %3764 = vmatprep.mubr.bf16.mxu0 0
    %3765 = vmatmul.mubr.bf16.gmra.mrb[0].mxu0 %v3727
    %v3766 = vpop.f32.mrb[0].mxu0
    %v3767 = vadd.f32 0.0, %v3766
    %v3768 = vpop.f32.mrb[0].mxu0
    %v3769 = vpop.f32.mrb[0].mxu0
    %v3770 = vpop.f32.mrb[0].mxu0
    %3771 = vdwg.mxu0
    %v3772 = vcombine.low %v3445, %v3537
    %v3773 = vcombine.high %v3445, %v3537
    %v3775 = vunpack.c.l.s4 1983009808
    %v3776 = vunpack.c.0.s8 %v3775
    %v3777 = vlaneseq
    %v3778 = vshrl.u32 %v3777, 7
    %v3779 = vsub.s32 %v3776, %v3778
    %v3780 = vrot.slane %v3772, %v3779
    %v3782 = vunpack.c.l.s4 1983009808
    %v3783 = vunpack.c.0.s8 %v3782
    %v3784 = vlaneseq
    %v3785 = vshrl.u32 %v3784, 7
    %v3786 = vsub.s32 %v3783, %v3785
    %v3787 = vrot.slane %v3773, %v3786
    %v3788 = vcombine.low %v3491, %v3583
    %v3789 = vcombine.high %v3491, %v3583
    %v3791 = vunpack.c.l.s4 1983009808
    %v3792 = vunpack.c.0.s8 %v3791
    %v3793 = vlaneseq
    %v3794 = vshrl.u32 %v3793, 7
    %v3795 = vsub.s32 %v3792, %v3794
    %v3796 = vrot.slane %v3788, %v3795
    %v3798 = vunpack.c.l.s4 1983009808
    %v3799 = vunpack.c.0.s8 %v3798
    %v3800 = vlaneseq
    %v3801 = vshrl.u32 %v3800, 7
    %v3802 = vsub.s32 %v3799, %v3801
    %v3803 = vrot.slane %v3789, %v3802
    %v3804 = vcombine.low %v3629, %v3721
    %v3805 = vcombine.high %v3629, %v3721
    %v3807 = vunpack.c.l.s4 1983009808
    %v3808 = vunpack.c.0.s8 %v3807
    %v3809 = vlaneseq
    %v3810 = vshrl.u32 %v3809, 7
    %v3811 = vsub.s32 %v3808, %v3810
    %v3812 = vrot.slane %v3804, %v3811
    %v3814 = vunpack.c.l.s4 1983009808
    %v3815 = vunpack.c.0.s8 %v3814
    %v3816 = vlaneseq
    %v3817 = vshrl.u32 %v3816, 7
    %v3818 = vsub.s32 %v3815, %v3817
    %v3819 = vrot.slane %v3805, %v3818
    %v3820 = vcombine.low %v3675, %v3767
    %v3821 = vcombine.high %v3675, %v3767
    %v3823 = vunpack.c.l.s4 1983009808
    %v3824 = vunpack.c.0.s8 %v3823
    %v3825 = vlaneseq
    %v3826 = vshrl.u32 %v3825, 7
    %v3827 = vsub.s32 %v3824, %v3826
    %v3828 = vrot.slane %v3820, %v3827
    %v3830 = vunpack.c.l.s4 1983009808
    %v3831 = vunpack.c.0.s8 %v3830
    %v3832 = vlaneseq
    %v3833 = vshrl.u32 %v3832, 7
    %v3834 = vsub.s32 %v3831, %v3833
    %v3835 = vrot.slane %v3821, %v3834
    %v3836 = vcombine.low %v3780, %v3796
    %v3837 = vcombine.high %v3780, %v3796
    %v3839 = vunpack.c.l.s4 1934713408
    %v3840 = vunpack.c.0.s8 %v3839
    %v3841 = vlaneseq
    %v3842 = vshrl.u32 %v3841, 7
    %v3843 = vsub.s32 %v3840, %v3842
    %v3844 = vrot.slane %v3836, %v3843
    %v3846 = vunpack.c.l.s4 1934713408
    %v3847 = vunpack.c.0.s8 %v3846
    %v3848 = vlaneseq
    %v3849 = vshrl.u32 %v3848, 7
    %v3850 = vsub.s32 %v3847, %v3849
    %v3851 = vrot.slane %v3837, %v3850
    %v3852 = vcombine.low %v3787, %v3803
    %v3853 = vcombine.high %v3787, %v3803
    %v3855 = vunpack.c.l.s4 1934713408
    %v3856 = vunpack.c.0.s8 %v3855
    %v3857 = vlaneseq
    %v3858 = vshrl.u32 %v3857, 7
    %v3859 = vsub.s32 %v3856, %v3858
    %v3860 = vrot.slane %v3852, %v3859
    %v3862 = vunpack.c.l.s4 1934713408
    %v3863 = vunpack.c.0.s8 %v3862
    %v3864 = vlaneseq
    %v3865 = vshrl.u32 %v3864, 7
    %v3866 = vsub.s32 %v3863, %v3865
    %v3867 = vrot.slane %v3853, %v3866
    %v3868 = vcombine.low %v3812, %v3828
    %v3869 = vcombine.high %v3812, %v3828
    %v3871 = vunpack.c.l.s4 1934713408
    %v3872 = vunpack.c.0.s8 %v3871
    %v3873 = vlaneseq
    %v3874 = vshrl.u32 %v3873, 7
    %v3875 = vsub.s32 %v3872, %v3874
    %v3876 = vrot.slane %v3868, %v3875
    %v3878 = vunpack.c.l.s4 1934713408
    %v3879 = vunpack.c.0.s8 %v3878
    %v3880 = vlaneseq
    %v3881 = vshrl.u32 %v3880, 7
    %v3882 = vsub.s32 %v3879, %v3881
    %v3883 = vrot.slane %v3869, %v3882
    %v3884 = vcombine.low %v3819, %v3835
    %v3885 = vcombine.high %v3819, %v3835
    %v3887 = vunpack.c.l.s4 1934713408
    %v3888 = vunpack.c.0.s8 %v3887
    %v3889 = vlaneseq
    %v3890 = vshrl.u32 %v3889, 7
    %v3891 = vsub.s32 %v3888, %v3890
    %v3892 = vrot.slane %v3884, %v3891
    %v3894 = vunpack.c.l.s4 1934713408
    %v3895 = vunpack.c.0.s8 %v3894
    %v3896 = vlaneseq
    %v3897 = vshrl.u32 %v3896, 7
    %v3898 = vsub.s32 %v3895, %v3897
    %v3899 = vrot.slane %v3885, %v3898
    %v3900 = vcombine.low %v3844, %v3876
    %v3901 = vcombine.high %v3844, %v3876
    %v3902 = vcombine.low %v3851, %v3883
    %v3903 = vcombine.high %v3851, %v3883
    %v3904 = vcombine.low %v3860, %v3892
    %v3905 = vcombine.high %v3860, %v3892
    %v3906 = vcombine.low %v3867, %v3899
    %v3907 = vcombine.high %v3867, %v3899
    %v3908 = vcombine.low %v2024, %v2026
    %v3909 = vcombine.high %v2024, %v2026
    %v3911 = vunpack.c.l.s4 1983009808
    %v3912 = vunpack.c.0.s8 %v3911
    %v3913 = vlaneseq
    %v3914 = vshrl.u32 %v3913, 7
    %v3915 = vsub.s32 %v3912, %v3914
    %v3916 = vrot.slane %v3908, %v3915
    %v3918 = vunpack.c.l.s4 1983009808
    %v3919 = vunpack.c.0.s8 %v3918
    %v3920 = vlaneseq
    %v3921 = vshrl.u32 %v3920, 7
    %v3922 = vsub.s32 %v3919, %v3921
    %v3923 = vrot.slane %v3909, %v3922
    %v3924 = vcombine.low %v2025, %v2027
    %v3925 = vcombine.high %v2025, %v2027
    %v3927 = vunpack.c.l.s4 1983009808
    %v3928 = vunpack.c.0.s8 %v3927
    %v3929 = vlaneseq
    %v3930 = vshrl.u32 %v3929, 7
    %v3931 = vsub.s32 %v3928, %v3930
    %v3932 = vrot.slane %v3924, %v3931
    %v3934 = vunpack.c.l.s4 1983009808
    %v3935 = vunpack.c.0.s8 %v3934
    %v3936 = vlaneseq
    %v3937 = vshrl.u32 %v3936, 7
    %v3938 = vsub.s32 %v3935, %v3937
    %v3939 = vrot.slane %v3925, %v3938
    %v3940 = vcombine.low %v2028, %v2030
    %v3941 = vcombine.high %v2028, %v2030
    %v3943 = vunpack.c.l.s4 1983009808
    %v3944 = vunpack.c.0.s8 %v3943
    %v3945 = vlaneseq
    %v3946 = vshrl.u32 %v3945, 7
    %v3947 = vsub.s32 %v3944, %v3946
    %v3948 = vrot.slane %v3940, %v3947
    %v3950 = vunpack.c.l.s4 1983009808
    %v3951 = vunpack.c.0.s8 %v3950
    %v3952 = vlaneseq
    %v3953 = vshrl.u32 %v3952, 7
    %v3954 = vsub.s32 %v3951, %v3953
    %v3955 = vrot.slane %v3941, %v3954
    %v3956 = vcombine.low %v2029, %v2031
    %v3957 = vcombine.high %v2029, %v2031
    %v3959 = vunpack.c.l.s4 1983009808
    %v3960 = vunpack.c.0.s8 %v3959
    %v3961 = vlaneseq
    %v3962 = vshrl.u32 %v3961, 7
    %v3963 = vsub.s32 %v3960, %v3962
    %v3964 = vrot.slane %v3956, %v3963
    %v3966 = vunpack.c.l.s4 1983009808
    %v3967 = vunpack.c.0.s8 %v3966
    %v3968 = vlaneseq
    %v3969 = vshrl.u32 %v3968, 7
    %v3970 = vsub.s32 %v3967, %v3969
    %v3971 = vrot.slane %v3957, %v3970
    %v3972 = vcombine.low %v3916, %v3932
    %v3973 = vcombine.high %v3916, %v3932
    %v3975 = vunpack.c.l.s4 1934713408
    %v3976 = vunpack.c.0.s8 %v3975
    %v3977 = vlaneseq
    %v3978 = vshrl.u32 %v3977, 7
    %v3979 = vsub.s32 %v3976, %v3978
    %v3980 = vrot.slane %v3972, %v3979
    %v3982 = vunpack.c.l.s4 1934713408
    %v3983 = vunpack.c.0.s8 %v3982
    %v3984 = vlaneseq
    %v3985 = vshrl.u32 %v3984, 7
    %v3986 = vsub.s32 %v3983, %v3985
    %v3987 = vrot.slane %v3973, %v3986
    %v3988 = vcombine.low %v3923, %v3939
    %v3989 = vcombine.high %v3923, %v3939
    %v3991 = vunpack.c.l.s4 1934713408
    %v3992 = vunpack.c.0.s8 %v3991
    %v3993 = vlaneseq
    %v3994 = vshrl.u32 %v3993, 7
    %v3995 = vsub.s32 %v3992, %v3994
    %v3996 = vrot.slane %v3988, %v3995
    %v3998 = vunpack.c.l.s4 1934713408
    %v3999 = vunpack.c.0.s8 %v3998
    %v4000 = vlaneseq
    %v4001 = vshrl.u32 %v4000, 7
    %v4002 = vsub.s32 %v3999, %v4001
    %v4003 = vrot.slane %v3989, %v4002
    %v4004 = vcombine.low %v3948, %v3964
    %v4005 = vcombine.high %v3948, %v3964
    %v4007 = vunpack.c.l.s4 1934713408
    %v4008 = vunpack.c.0.s8 %v4007
    %v4009 = vlaneseq
    %v4010 = vshrl.u32 %v4009, 7
    %v4011 = vsub.s32 %v4008, %v4010
    %v4012 = vrot.slane %v4004, %v4011
    %v4014 = vunpack.c.l.s4 1934713408
    %v4015 = vunpack.c.0.s8 %v4014
    %v4016 = vlaneseq
    %v4017 = vshrl.u32 %v4016, 7
    %v4018 = vsub.s32 %v4015, %v4017
    %v4019 = vrot.slane %v4005, %v4018
    %v4020 = vcombine.low %v3955, %v3971
    %v4021 = vcombine.high %v3955, %v3971
    %v4023 = vunpack.c.l.s4 1934713408
    %v4024 = vunpack.c.0.s8 %v4023
    %v4025 = vlaneseq
    %v4026 = vshrl.u32 %v4025, 7
    %v4027 = vsub.s32 %v4024, %v4026
    %v4028 = vrot.slane %v4020, %v4027
    %v4030 = vunpack.c.l.s4 1934713408
    %v4031 = vunpack.c.0.s8 %v4030
    %v4032 = vlaneseq
    %v4033 = vshrl.u32 %v4032, 7
    %v4034 = vsub.s32 %v4031, %v4033
    %v4035 = vrot.slane %v4021, %v4034
    %v4036 = vcombine.low %v3980, %v4012
    %v4037 = vcombine.high %v3980, %v4012
    %v4038 = vcombine.low %v3987, %v4019
    %v4039 = vcombine.high %v3987, %v4019
    %v4040 = vcombine.low %v3996, %v4028
    %v4041 = vcombine.high %v3996, %v4028
    %v4042 = vcombine.low %v4003, %v4035
    %v4043 = vcombine.high %v4003, %v4035
    %4045 = vrot.lane.b32.xlu0 %v4037, 8
    %v4046 = vpop.permute.xlu0 %4045
    %4049 = vrot.lane.b32.xlu0 %v4038, 16
    %v4050 = vpop.permute.xlu0 %4049
    %4053 = vrot.lane.b32.xlu0 %v4039, 24
    %v4054 = vpop.permute.xlu0 %4053
    %4057 = vrot.lane.b32.xlu0 %v4040, 32
    %v4058 = vpop.permute.xlu0 %4057
    %4061 = vrot.lane.b32.xlu0 %v4041, 40
    %v4062 = vpop.permute.xlu0 %4061
    %4065 = vrot.lane.b32.xlu0 %v4042, 48
    %v4066 = vpop.permute.xlu0 %4065
    %4069 = vrot.lane.b32.xlu0 %v4043, 56
    %v4070 = vpop.permute.xlu0 %4069
    %v4072 = vsel %vm1062, %v4036, %v4046
    %vm4073 = vcmask 130048
    %v4074 = vsel %vm4073, %v4072, %v4050
    %vm4075 = vcmask 195584
    %v4076 = vsel %vm4075, %v4074, %v4054
    %vm4077 = vcmask 261120
    %v4078 = vsel %vm4077, %v4076, %v4058
    %vm4079 = vcmask 326656
    %v4080 = vsel %vm4079, %v4078, %v4062
    %vm4081 = vcmask 392192
    %v4082 = vsel %vm4081, %v4080, %v4066
    %vm4083 = vcmask 457728
    %v4084 = vsel %vm4083, %v4082, %v4070
    %v4085 = vcombine.low %v3900, %v3902
    %v4086 = vcombine.high %v3900, %v3902
    %v4088 = vunpack.c.l.s4 1983009808
    %v4089 = vunpack.c.0.s8 %v4088
    %v4090 = vlaneseq
    %v4091 = vshrl.u32 %v4090, 7
    %v4092 = vsub.s32 %v4089, %v4091
    %v4093 = vrot.slane %v4085, %v4092
    %v4095 = vunpack.c.l.s4 1983009808
    %v4096 = vunpack.c.0.s8 %v4095
    %v4097 = vlaneseq
    %v4098 = vshrl.u32 %v4097, 7
    %v4099 = vsub.s32 %v4096, %v4098
    %v4100 = vrot.slane %v4086, %v4099
    %v4101 = vcombine.low %v3901, %v3903
    %v4102 = vcombine.high %v3901, %v3903
    %v4104 = vunpack.c.l.s4 1983009808
    %v4105 = vunpack.c.0.s8 %v4104
    %v4106 = vlaneseq
    %v4107 = vshrl.u32 %v4106, 7
    %v4108 = vsub.s32 %v4105, %v4107
    %v4109 = vrot.slane %v4101, %v4108
    %v4111 = vunpack.c.l.s4 1983009808
    %v4112 = vunpack.c.0.s8 %v4111
    %v4113 = vlaneseq
    %v4114 = vshrl.u32 %v4113, 7
    %v4115 = vsub.s32 %v4112, %v4114
    %v4116 = vrot.slane %v4102, %v4115
    %v4117 = vcombine.low %v3904, %v3906
    %v4118 = vcombine.high %v3904, %v3906
    %v4120 = vunpack.c.l.s4 1983009808
    %v4121 = vunpack.c.0.s8 %v4120
    %v4122 = vlaneseq
    %v4123 = vshrl.u32 %v4122, 7
    %v4124 = vsub.s32 %v4121, %v4123
    %v4125 = vrot.slane %v4117, %v4124
    %v4127 = vunpack.c.l.s4 1983009808
    %v4128 = vunpack.c.0.s8 %v4127
    %v4129 = vlaneseq
    %v4130 = vshrl.u32 %v4129, 7
    %v4131 = vsub.s32 %v4128, %v4130
    %v4132 = vrot.slane %v4118, %v4131
    %v4133 = vcombine.low %v3905, %v3907
    %v4134 = vcombine.high %v3905, %v3907
    %v4136 = vunpack.c.l.s4 1983009808
    %v4137 = vunpack.c.0.s8 %v4136
    %v4138 = vlaneseq
    %v4139 = vshrl.u32 %v4138, 7
    %v4140 = vsub.s32 %v4137, %v4139
    %v4141 = vrot.slane %v4133, %v4140
    %v4143 = vunpack.c.l.s4 1983009808
    %v4144 = vunpack.c.0.s8 %v4143
    %v4145 = vlaneseq
    %v4146 = vshrl.u32 %v4145, 7
    %v4147 = vsub.s32 %v4144, %v4146
    %v4148 = vrot.slane %v4134, %v4147
    %v4149 = vcombine.low %v4093, %v4109
    %v4150 = vcombine.high %v4093, %v4109
    %v4152 = vunpack.c.l.s4 1934713408
    %v4153 = vunpack.c.0.s8 %v4152
    %v4154 = vlaneseq
    %v4155 = vshrl.u32 %v4154, 7
    %v4156 = vsub.s32 %v4153, %v4155
    %v4157 = vrot.slane %v4149, %v4156
    %v4159 = vunpack.c.l.s4 1934713408
    %v4160 = vunpack.c.0.s8 %v4159
    %v4161 = vlaneseq
    %v4162 = vshrl.u32 %v4161, 7
    %v4163 = vsub.s32 %v4160, %v4162
    %v4164 = vrot.slane %v4150, %v4163
    %v4165 = vcombine.low %v4100, %v4116
    %v4166 = vcombine.high %v4100, %v4116
    %v4168 = vunpack.c.l.s4 1934713408
    %v4169 = vunpack.c.0.s8 %v4168
    %v4170 = vlaneseq
    %v4171 = vshrl.u32 %v4170, 7
    %v4172 = vsub.s32 %v4169, %v4171
    %v4173 = vrot.slane %v4165, %v4172
    %v4175 = vunpack.c.l.s4 1934713408
    %v4176 = vunpack.c.0.s8 %v4175
    %v4177 = vlaneseq
    %v4178 = vshrl.u32 %v4177, 7
    %v4179 = vsub.s32 %v4176, %v4178
    %v4180 = vrot.slane %v4166, %v4179
    %v4181 = vcombine.low %v4125, %v4141
    %v4182 = vcombine.high %v4125, %v4141
    %v4184 = vunpack.c.l.s4 1934713408
    %v4185 = vunpack.c.0.s8 %v4184
    %v4186 = vlaneseq
    %v4187 = vshrl.u32 %v4186, 7
    %v4188 = vsub.s32 %v4185, %v4187
    %v4189 = vrot.slane %v4181, %v4188
    %v4191 = vunpack.c.l.s4 1934713408
    %v4192 = vunpack.c.0.s8 %v4191
    %v4193 = vlaneseq
    %v4194 = vshrl.u32 %v4193, 7
    %v4195 = vsub.s32 %v4192, %v4194
    %v4196 = vrot.slane %v4182, %v4195
    %v4197 = vcombine.low %v4132, %v4148
    %v4198 = vcombine.high %v4132, %v4148
    %v4200 = vunpack.c.l.s4 1934713408
    %v4201 = vunpack.c.0.s8 %v4200
    %v4202 = vlaneseq
    %v4203 = vshrl.u32 %v4202, 7
    %v4204 = vsub.s32 %v4201, %v4203
    %v4205 = vrot.slane %v4197, %v4204
    %v4207 = vunpack.c.l.s4 1934713408
    %v4208 = vunpack.c.0.s8 %v4207
    %v4209 = vlaneseq
    %v4210 = vshrl.u32 %v4209, 7
    %v4211 = vsub.s32 %v4208, %v4210
    %v4212 = vrot.slane %v4198, %v4211
    %v4213 = vcombine.low %v4157, %v4189
    %v4214 = vcombine.high %v4157, %v4189
    %v4215 = vcombine.low %v4164, %v4196
    %v4216 = vcombine.high %v4164, %v4196
    %v4217 = vcombine.low %v4173, %v4205
    %v4218 = vcombine.high %v4173, %v4205
    %v4219 = vcombine.low %v4180, %v4212
    %v4220 = vcombine.high %v4180, %v4212
    %4222 = vrot.lane.b32.xlu0 %v4214, 8
    %v4223 = vpop.permute.xlu0 %4222
    %4226 = vrot.lane.b32.xlu0 %v4215, 16
    %v4227 = vpop.permute.xlu0 %4226
    %4230 = vrot.lane.b32.xlu0 %v4216, 24
    %v4231 = vpop.permute.xlu0 %4230
    %4234 = vrot.lane.b32.xlu0 %v4217, 32
    %v4235 = vpop.permute.xlu0 %4234
    %4238 = vrot.lane.b32.xlu0 %v4218, 40
    %v4239 = vpop.permute.xlu0 %4238
    %4242 = vrot.lane.b32.xlu0 %v4219, 48
    %v4243 = vpop.permute.xlu0 %4242
    %4246 = vrot.lane.b32.xlu0 %v4220, 56
    %v4247 = vpop.permute.xlu0 %4246
    %v4249 = vsel %vm1062, %v4213, %v4223
    %v4250 = vsel %vm4073, %v4249, %v4227
    %v4251 = vsel %vm4075, %v4250, %v4231
    %v4252 = vsel %vm4077, %v4251, %v4235
    %v4253 = vsel %vm4079, %v4252, %v4239
    %v4254 = vsel %vm4081, %v4253, %v4243
    %v4255 = vsel %vm4083, %v4254, %v4247
    %4256 = vst.msk [vmem:[#allocation7] sm:$0xff] %vm107, %v4084
    %4257 = vst.msk [vmem:[#allocation7 + $0x8] sm:$0xff] %vm107, %v4255
    // Predicated region
    $region22: #{tpu_custom_call.1} parent=1 // pred_check
      _
    $region23: #{tpu_custom_call.1} parent=1 // pred_check_branch
      %4259 = sbr.rel (0) target = $region25
    $region24: #{tpu_custom_call.1} parent=1 // pred_region
      %s4261 = ssub.s32 256, 256
      %4262 = vsyncadd [#allocation4], %s4261
      %s4263 = sshll.u32 [#allocation7], 4
      %s4264 = int_to_ptr.vmem [resolvable:$true] %s4263
      %4269 = dma.vmem_to_hbm [thread:$0]  %s4264, 256, %s3, [#allocation4], 128, 128, 8
    $region25: #{tpu_custom_call.1} parent=1 // pred_fallthru
      _
    // Predicated region
    $region26: #{tpu_custom_call.1} parent=1 // pred_check
      _
    $region27: #{tpu_custom_call.1} parent=1 // pred_check_branch
      %4271 = sbr.rel (0) target = $region29
    $region28: #{tpu_custom_call.1} parent=1 // pred_region
      %4272 = dma.done [#allocation4], 256
    $region29: #{tpu_custom_call.1} parent=1 // pred_fallthru
      _
    %4273 = vsyncpa [#allocation3], 1
    %4274 = vsyncpa [#allocation6], 1
    %4275 = vsyncpa [#allocation4], 1

</llo_original>
